<compile_context>
chip_gen: v7x
topology: tpu7x:2x2x1
jax: 0.10.0
libtpu: 0.0.40
codegen_flags: <defaults>
</compile_context>

<pallas_src>
import math
from functools import partial

import jax
import jax.numpy as jnp
from jax import lax
from jax.experimental import pallas as pl
from jax.experimental.pallas import tpu as pltpu

SEG = 4  # segment length hard-coded in the torch forward


def _strided_perm(num_segments, stride):
    """Indices matching torch.cat([x[:, i::stride] for i in range(stride)], dim=1)."""
    return tuple(j for i in range(stride) for j in range(i, num_segments, stride))


# -----------------------------------------------------------------------------
# Fused kernel: LSTM1 -> segment gather + permutations -> LSTM2 (all VMEM-resident)
# -----------------------------------------------------------------------------
def _fused_custom_rnn_kernel(xg1_ref, w_hh1_ref, w_ih2_ref, w_hh2_ref, b2_ref,
                             o_ref, seg_ref, x2_ref, xg2_ref, *, perms):
    """Refs:
      xg1_ref  : (T, B, 4*H1) f32  precomputed x @ W_ih1 + b1 (time-major)
      w_hh1_ref: (H1, 4*H1)   bf16
      w_ih2_ref: (H1, 4*O)    bf16
      w_hh2_ref: (O, 4*O)     bf16
      b2_ref   : (1, 4*O)     f32
      o_ref    : (S, 4B, O)   f32  LSTM2 hidden states, 4 variants batched
      seg_ref  : (S, B, H1)   f32  VMEM scratch (segment-last LSTM1 states)
      x2_ref   : (S, 4B, H1)  f32  VMEM scratch (permuted LSTM2 inputs)
      xg2_ref  : (S, 4B, 4*O) f32  VMEM scratch (LSTM2 input projection)
    PyTorch gate order: i, f, g, o.
    """
    T, B, G1 = xg1_ref.shape
    H1 = G1 // 4
    O = w_hh2_ref.shape[0]
    S = T // SEG
    NV = len(perms)

    # ---------------- phase 1: LSTM1 recurrence ----------------
    # Only `h @ W_hh1` + elementwise is on the per-step critical path (review item 1).
    def lstm1_segment(s, carry):
        h, c = carry
        t0 = pl.multiple_of(s * SEG, SEG)
        for k in range(SEG):  # short static unroll inside the fori_loop body
            gates = xg1_ref[t0 + k] + jnp.dot(
                h.astype(jnp.bfloat16), w_hh1_ref[...],
                preferred_element_type=jnp.float32)              # (B, 4*H1) f32
            i_g = jax.nn.sigmoid(gates[:, 0 * H1:1 * H1])
            f_g = jax.nn.sigmoid(gates[:, 1 * H1:2 * H1])
            g_g = jnp.tanh(gates[:, 2 * H1:3 * H1])
            o_g = jax.nn.sigmoid(gates[:, 3 * H1:4 * H1])
            c = f_g * c + i_g * g_g
            h = o_g * jnp.tanh(c)
        seg_ref[s] = h  # only the segment-last step is consumed downstream
        return h, c

    zeros1 = jnp.zeros((B, H1), jnp.float32)
    _ = lax.fori_loop(0, S, lstm1_segment, (zeros1, zeros1))

    # ------- phase 2: static permutations + LSTM2 input projection (one matmul) -------
    # Permutation indices are Python constants -> plain VMEM copies, no gather op.
    for v, perm in enumerate(perms):
        for j, src in enumerate(perm):
            x2_ref[j, v * B:(v + 1) * B, :] = seg_ref[src]

    x2 = x2_ref[...].reshape(S * NV * B, H1).astype(jnp.bfloat16)   # lane-dense (S*4B, 128)
    xg2 = jnp.dot(x2, w_ih2_ref[...],
                  preferred_element_type=jnp.float32) + b2_ref[...]
    xg2_ref[...] = xg2.reshape(S, NV * B, 4 * O)

    # ---------------- phase 3: LSTM2 recurrence (4 variants batched along batch) ----------------
    # TODO(synk): (review item 7) the 32-lane gate slices below may cost lane realignment on the
    # critical path; a static column/lane re-layout of W_*2 would remove it if it shows in the dump.
    h2 = jnp.zeros((NV * B, O), jnp.float32)
    c2 = jnp.zeros((NV * B, O), jnp.float32)
    for j in range(S):  # S=16: short static unroll, static store indices
        gates = xg2_ref[j] + jnp.dot(
            h2.astype(jnp.bfloat16), w_hh2_ref[...],
            preferred_element_type=jnp.float32)                   # (4B, 4*O) f32
        i_g = jax.nn.sigmoid(gates[:, 0 * O:1 * O])
        f_g = jax.nn.sigmoid(gates[:, 1 * O:2 * O])
        g_g = jnp.tanh(gates[:, 2 * O:3 * O])
        o_g = jax.nn.sigmoid(gates[:, 3 * O:4 * O])
        c2 = f_g * c2 + i_g * g_g
        h2 = o_g * jnp.tanh(c2)
        # TODO(synk): (review item 6) output last dim is O=32 -> masked vst; accumulate into a
        # lane-dense (4B, S*O) slab if this ever matters (output volume is ~16 KB here).
        o_ref[j] = h2


# -----------------------------------------------------------------------------
# Full CustomRNN forward (single fused Pallas launch + wrapper-side layout plumbing)
# -----------------------------------------------------------------------------
def custom_rnn_forward(x, params1, params2):
    """x: (B, T, input_size) f32, T % 4 == 0. Returns (B, 4*(T//4), output_size)."""
    w_ih1, w_hh1, b_ih1, b_hh1 = params1
    w_ih2, w_hh2, b_ih2, b_hh2 = params2
    B, T, D = x.shape
    H1 = w_hh1.shape[1]
    O = w_hh2.shape[1]
    assert H1 == 128, "hard-coded .view(..., 128) in the torch forward forces hidden_size=128"
    assert T % SEG == 0
    S = T // SEG

    # LSTM1 input projection hoisted out of the recurrence: one (T*B, D) @ (D, 4H1) XLA matmul.
    x_tm = jnp.transpose(x, (1, 0, 2)).reshape(T * B, D)          # row = t*B + b (time-major)
    xg1 = (x_tm @ w_ih1.T + (b_ih1 + b_hh1)).reshape(T, B, 4 * H1).astype(jnp.float32)

    # bf16 matmul operands (cast once); everything else stays f32.
    w_hh1_t = w_hh1.T.astype(jnp.bfloat16)                        # (H1, 4*H1)
    w_ih2_t = w_ih2.T.astype(jnp.bfloat16)                        # (H1, 4*O)
    w_hh2_t = w_hh2.T.astype(jnp.bfloat16)                        # (O, 4*O)
    b2 = (b_ih2 + b_hh2)[None, :].astype(jnp.float32)             # (1, 4*O)

    # identity + stride-13/16/19 permutations of the segment axis (static Python tuples)
    perms = (tuple(range(S)),
             _strided_perm(S, 13), _strided_perm(S, 16), _strided_perm(S, 19))
    NV = len(perms)

    kernel = partial(_fused_custom_rnn_kernel, perms=perms)

    cost = pl.CostEstimate(
        flops=int(2 * T * B * H1 * 4 * H1 + 2 * S * NV * B * (H1 + O) * 4 * O),
        transcendentals=int(T * B * 5 * H1 + S * NV * B * 5 * O),
        bytes_accessed=int(4 * (xg1.size + S * NV * B * O + b2.size)
                           + 2 * (w_hh1_t.size + w_ih2_t.size + w_hh2_t.size)),
    )

    out = pl.pallas_call(
        kernel,
        out_shape=jax.ShapeDtypeStruct((S, NV * B, O), jnp.float32),
        grid=(1,),
        in_specs=[
            pl.BlockSpec((T, B, 4 * H1), lambda i: (0, 0, 0)),    # xg1 (VMEM resident)
            pl.BlockSpec((H1, 4 * H1), lambda i: (0, 0)),         # W_hh1 (bf16, resident)
            pl.BlockSpec((H1, 4 * O), lambda i: (0, 0)),          # W_ih2 (bf16, resident)
            pl.BlockSpec((O, 4 * O), lambda i: (0, 0)),           # W_hh2 (bf16, resident)
            pl.BlockSpec((1, 4 * O), lambda i: (0, 0)),           # bias2
        ],
        out_specs=pl.BlockSpec((S, NV * B, O), lambda i: (0, 0, 0)),
        scratch_shapes=[
            pltpu.VMEM((S, B, H1), jnp.float32),                  # seg (segment-last h1)
            pltpu.VMEM((S, NV * B, H1), jnp.float32),             # x2  (permuted variants)
            pltpu.VMEM((S, NV * B, 4 * O), jnp.float32),          # xg2 (LSTM2 input proj)
        ],
        compiler_params=pltpu.CompilerParams(
            dimension_semantics=("arbitrary",),                   # single sequential step
        ),
        cost_estimate=cost,
    )(xg1, w_hh1_t, w_ih2_t, w_hh2_t, b2)

    # back to torch layout: cat([o1, o13, o16, o19], dim=1) -> (B, 4S, O)
    out = out.reshape(S, NV, B, O)
    return jnp.transpose(out, (2, 1, 0, 3)).reshape(B, NV * S, O)


# -----------------------------------------------------------------------------
# Parameter init (mirrors nn.LSTM default U(-1/sqrt(H), 1/sqrt(H)), torch layouts)
# -----------------------------------------------------------------------------
def init_lstm_params(key, input_size, hidden_size):
    k1, k2, k3, k4 = jax.random.split(key, 4)
    bound = 1.0 / math.sqrt(hidden_size)
    w_ih = jax.random.uniform(k1, (4 * hidden_size, input_size), jnp.float32, -bound, bound)
    w_hh = jax.random.uniform(k2, (4 * hidden_size, hidden_size), jnp.float32, -bound, bound)
    b_ih = jax.random.uniform(k3, (4 * hidden_size,), jnp.float32, -bound, bound)
    b_hh = jax.random.uniform(k4, (4 * hidden_size,), jnp.float32, -bound, bound)
    return w_ih, w_hh, b_ih, b_hh


# -----------------------------------------------------------------------------
# Plain-JAX f32 reference (direct transcription of the PyTorch forward) for validation
# -----------------------------------------------------------------------------
def _lstm_ref(x, w_ih, w_hh, b_ih, b_hh):
    B = x.shape[0]
    H = w_hh.shape[1]

    def step(carry, x_t):
        h, c = carry
        gates = x_t @ w_ih.T + h @ w_hh.T + b_ih + b_hh
        i = jax.nn.sigmoid(gates[:, 0 * H:1 * H])
        f = jax.nn.sigmoid(gates[:, 1 * H:2 * H])
        g = jnp.tanh(gates[:, 2 * H:3 * H])
        o = jax.nn.sigmoid(gates[:, 3 * H:4 * H])
        c = f * c + i * g
        h = o * jnp.tanh(c)
        return (h, c), h

    carry0 = (jnp.zeros((B, H), jnp.float32), jnp.zeros((B, H), jnp.float32))
    _, hs = lax.scan(step, carry0, jnp.transpose(x, (1, 0, 2)))
    return jnp.transpose(hs, (1, 0, 2))  # (B, T, H)


def custom_rnn_ref(x, params1, params2):
    B, T, _ = x.shape
    H = params1[1].shape[1]
    S = T // SEG
    h1 = _lstm_ref(x, *params1)                          # (B, T, H)
    seg = h1.reshape(B, S, SEG, H)[:, :, -1, :]          # (B, S, H)
    s13 = jnp.concatenate([seg[:, i::13] for i in range(13)], axis=1)
    s16 = jnp.concatenate([seg[:, i::16] for i in range(16)], axis=1)
    s19 = jnp.concatenate([seg[:, i::19] for i in range(19)], axis=1)
    outs = [_lstm_ref(s, *params2) for s in (seg, s13, s16, s19)]
    return jnp.concatenate(outs, axis=1)                 # (B, 4S, O)


if __name__ == "__main__":
    key = jax.random.PRNGKey(0)
    k_x, k_p1, k_p2 = jax.random.split(key, 3)

    INPUT_SIZE = 16
    HIDDEN_SIZE = 128     # forced by the hard-coded `.view(..., 128)` in the torch forward
    OUTPUT_SIZE = 32
    B, T = 2, 64          # T % 4 == 0 -> 16 segments

    x = jax.random.normal(k_x, (B, T, INPUT_SIZE), jnp.float32)
    params1 = init_lstm_params(k_p1, INPUT_SIZE, HIDDEN_SIZE)
    params2 = init_lstm_params(k_p2, HIDDEN_SIZE, OUTPUT_SIZE)

    fwd = jax.jit(custom_rnn_forward)
    out = jax.block_until_ready(fwd(x, params1, params2))

    S = T // SEG
    assert out.shape == (B, 4 * S, OUTPUT_SIZE), out.shape

    # f32 reference; tolerance covers the bf16 recurrent-matmul operands (review item 2).
    ref = jax.block_until_ready(custom_rnn_ref(x, params1, params2))
    err = float(jnp.max(jnp.abs(out - ref)))
    assert err < 3e-2, f"max abs err vs f32 reference: {err}"

    print("KERNEL_OK")
</pallas_src>

<mosaic_0001>
module attributes {stable_mosaic.version = 11 : i64} {
  func.func @_fused_custom_rnn_kernel(%arg0: i32, %arg1: memref<64x2x512xf32, #tpu.memory_space<vmem>>, %arg2: memref<128x512xbf16, #tpu.memory_space<vmem>>, %arg3: memref<128x128xbf16, #tpu.memory_space<vmem>>, %arg4: memref<32x128xbf16, #tpu.memory_space<vmem>>, %arg5: memref<1x128xf32, #tpu.memory_space<vmem>>, %arg6: memref<16x8x32xf32, #tpu.memory_space<vmem>>, %arg7: memref<16x2x128xf32, #tpu.memory_space<vmem>>, %arg8: memref<16x8x128xf32, #tpu.memory_space<vmem>>, %arg9: memref<16x8x128xf32, #tpu.memory_space<vmem>>) attributes {dimension_semantics = [#tpu.dimension_semantics<arbitrary>], iteration_bounds = array<i64: 1>, scalar_prefetch = 0 : i64, scratch_operands = 3 : i64, tpu.core_type = #tpu.core_type<tc>, window_params = [{pipeline_mode = #tpu.pipeline_mode<synchronous>, transform_indices = @transform_0, window_bounds = array<i64: 64, 2, 512>}, {pipeline_mode = #tpu.pipeline_mode<synchronous>, transform_indices = @transform_1, window_bounds = array<i64: 128, 512>}, {pipeline_mode = #tpu.pipeline_mode<synchronous>, transform_indices = @transform_2, window_bounds = array<i64: 128, 128>}, {pipeline_mode = #tpu.pipeline_mode<synchronous>, transform_indices = @transform_3, window_bounds = array<i64: 32, 128>}, {pipeline_mode = #tpu.pipeline_mode<synchronous>, transform_indices = @transform_4, window_bounds = array<i64: 1, 128>}, {pipeline_mode = #tpu.pipeline_mode<synchronous>, transform_indices = @transform_5, window_bounds = array<i64: 16, 8, 32>}]} {
    %cst = arith.constant 0.000000e+00 : f32
    %0 = vector.broadcast %cst : f32 to vector<2x128xf32>
    %c0_i32 = arith.constant 0 : i32
    %c16_i32 = arith.constant 16 : i32
    %1 = arith.addi %c0_i32, %c16_i32 : i32
    %c1_i32 = arith.constant 1 : i32
    %2:2 = scf.for %arg10 = %c0_i32 to %1 step %c1_i32 iter_args(%arg11 = %0, %arg12 = %0) -> (vector<2x128xf32>, vector<2x128xf32>)  : i32 {
      %c4_i32 = arith.constant 4 : i32
      %879 = arith.muli %arg10, %c4_i32 : i32
      %880 = tpu.assume_multiple %879, 4 : i32
      %c0_i32_574 = arith.constant 0 : i32
      %881 = arith.addi %880, %c0_i32_574 : i32
      %882 = arith.index_cast %881 : i32 to index
      %c0_575 = arith.constant 0 : index
      %c0_576 = arith.constant 0 : index
      %883 = vector.load %arg1[%882, %c0_575, %c0_576] : memref<64x2x512xf32, #tpu.memory_space<vmem>>, vector<1x2x512xf32>
      %884 = vector.shape_cast %883 : vector<1x2x512xf32> to vector<2x512xf32>
      %885 = arith.truncf %arg11 : vector<2x128xf32> to vector<2x128xbf16>
      %c0_577 = arith.constant 0 : index
      %c0_578 = arith.constant 0 : index
      %886 = vector.load %arg2[%c0_577, %c0_578] : memref<128x512xbf16, #tpu.memory_space<vmem>>, vector<128x512xbf16>
      %cst_579 = arith.constant dense<0.000000e+00> : vector<2x512xf32>
      %887 = tpu.matmul %885, %886, %cst_579 {dimension_numbers = #tpu.dot_dimension_numbers<[1], [0], [0], [1], [0, 0, 1, 1], [], []>} : vector<2x128xbf16>, vector<128x512xbf16>, vector<2x512xf32> -> vector<2x512xf32>
      %888 = arith.addf %884, %887 : vector<2x512xf32>
      %889 = vector.extract_strided_slice %888 {offsets = [0, 0], sizes = [2, 128], strides = [1, 1]} : vector<2x512xf32> to vector<2x128xf32>
      %890 = arith.negf %889 : vector<2x128xf32>
      %891 = math.exp %890 : vector<2x128xf32>
      %cst_580 = arith.constant 1.000000e+00 : f32
      %892 = vector.broadcast %cst_580 : f32 to vector<2x128xf32>
      %893 = arith.addf %892, %891 : vector<2x128xf32>
      %894 = arith.divf %892, %893 : vector<2x128xf32>
      %895 = vector.extract_strided_slice %888 {offsets = [0, 128], sizes = [2, 128], strides = [1, 1]} : vector<2x512xf32> to vector<2x128xf32>
      %896 = arith.negf %895 : vector<2x128xf32>
      %897 = math.exp %896 : vector<2x128xf32>
      %cst_581 = arith.constant 1.000000e+00 : f32
      %898 = vector.broadcast %cst_581 : f32 to vector<2x128xf32>
      %899 = arith.addf %898, %897 : vector<2x128xf32>
      %900 = arith.divf %898, %899 : vector<2x128xf32>
      %901 = vector.extract_strided_slice %888 {offsets = [0, 256], sizes = [2, 128], strides = [1, 1]} : vector<2x512xf32> to vector<2x128xf32>
      %902 = math.tanh %901 : vector<2x128xf32>
      %903 = vector.extract_strided_slice %888 {offsets = [0, 384], sizes = [2, 128], strides = [1, 1]} : vector<2x512xf32> to vector<2x128xf32>
      %904 = arith.negf %903 : vector<2x128xf32>
      %905 = math.exp %904 : vector<2x128xf32>
      %cst_582 = arith.constant 1.000000e+00 : f32
      %906 = vector.broadcast %cst_582 : f32 to vector<2x128xf32>
      %907 = arith.addf %906, %905 : vector<2x128xf32>
      %908 = arith.divf %906, %907 : vector<2x128xf32>
      %909 = arith.mulf %900, %arg12 : vector<2x128xf32>
      %910 = arith.mulf %894, %902 : vector<2x128xf32>
      %911 = arith.addf %909, %910 : vector<2x128xf32>
      %912 = math.tanh %911 : vector<2x128xf32>
      %913 = arith.mulf %908, %912 : vector<2x128xf32>
      %c1_i32_583 = arith.constant 1 : i32
      %914 = arith.addi %880, %c1_i32_583 : i32
      %915 = arith.index_cast %914 : i32 to index
      %c0_584 = arith.constant 0 : index
      %c0_585 = arith.constant 0 : index
      %916 = vector.load %arg1[%915, %c0_584, %c0_585] : memref<64x2x512xf32, #tpu.memory_space<vmem>>, vector<1x2x512xf32>
      %917 = vector.shape_cast %916 : vector<1x2x512xf32> to vector<2x512xf32>
      %918 = arith.truncf %913 : vector<2x128xf32> to vector<2x128xbf16>
      %c0_586 = arith.constant 0 : index
      %c0_587 = arith.constant 0 : index
      %919 = vector.load %arg2[%c0_586, %c0_587] : memref<128x512xbf16, #tpu.memory_space<vmem>>, vector<128x512xbf16>
      %cst_588 = arith.constant dense<0.000000e+00> : vector<2x512xf32>
      %920 = tpu.matmul %918, %919, %cst_588 {dimension_numbers = #tpu.dot_dimension_numbers<[1], [0], [0], [1], [0, 0, 1, 1], [], []>} : vector<2x128xbf16>, vector<128x512xbf16>, vector<2x512xf32> -> vector<2x512xf32>
      %921 = arith.addf %917, %920 : vector<2x512xf32>
      %922 = vector.extract_strided_slice %921 {offsets = [0, 0], sizes = [2, 128], strides = [1, 1]} : vector<2x512xf32> to vector<2x128xf32>
      %923 = arith.negf %922 : vector<2x128xf32>
      %924 = math.exp %923 : vector<2x128xf32>
      %cst_589 = arith.constant 1.000000e+00 : f32
      %925 = vector.broadcast %cst_589 : f32 to vector<2x128xf32>
      %926 = arith.addf %925, %924 : vector<2x128xf32>
      %927 = arith.divf %925, %926 : vector<2x128xf32>
      %928 = vector.extract_strided_slice %921 {offsets = [0, 128], sizes = [2, 128], strides = [1, 1]} : vector<2x512xf32> to vector<2x128xf32>
      %929 = arith.negf %928 : vector<2x128xf32>
      %930 = math.exp %929 : vector<2x128xf32>
      %cst_590 = arith.constant 1.000000e+00 : f32
      %931 = vector.broadcast %cst_590 : f32 to vector<2x128xf32>
      %932 = arith.addf %931, %930 : vector<2x128xf32>
      %933 = arith.divf %931, %932 : vector<2x128xf32>
      %934 = vector.extract_strided_slice %921 {offsets = [0, 256], sizes = [2, 128], strides = [1, 1]} : vector<2x512xf32> to vector<2x128xf32>
      %935 = math.tanh %934 : vector<2x128xf32>
      %936 = vector.extract_strided_slice %921 {offsets = [0, 384], sizes = [2, 128], strides = [1, 1]} : vector<2x512xf32> to vector<2x128xf32>
      %937 = arith.negf %936 : vector<2x128xf32>
      %938 = math.exp %937 : vector<2x128xf32>
      %cst_591 = arith.constant 1.000000e+00 : f32
      %939 = vector.broadcast %cst_591 : f32 to vector<2x128xf32>
      %940 = arith.addf %939, %938 : vector<2x128xf32>
      %941 = arith.divf %939, %940 : vector<2x128xf32>
      %942 = arith.mulf %933, %911 : vector<2x128xf32>
      %943 = arith.mulf %927, %935 : vector<2x128xf32>
      %944 = arith.addf %942, %943 : vector<2x128xf32>
      %945 = math.tanh %944 : vector<2x128xf32>
      %946 = arith.mulf %941, %945 : vector<2x128xf32>
      %c2_i32 = arith.constant 2 : i32
      %947 = arith.addi %880, %c2_i32 : i32
      %948 = arith.index_cast %947 : i32 to index
      %c0_592 = arith.constant 0 : index
      %c0_593 = arith.constant 0 : index
      %949 = vector.load %arg1[%948, %c0_592, %c0_593] : memref<64x2x512xf32, #tpu.memory_space<vmem>>, vector<1x2x512xf32>
      %950 = vector.shape_cast %949 : vector<1x2x512xf32> to vector<2x512xf32>
      %951 = arith.truncf %946 : vector<2x128xf32> to vector<2x128xbf16>
      %c0_594 = arith.constant 0 : index
      %c0_595 = arith.constant 0 : index
      %952 = vector.load %arg2[%c0_594, %c0_595] : memref<128x512xbf16, #tpu.memory_space<vmem>>, vector<128x512xbf16>
      %cst_596 = arith.constant dense<0.000000e+00> : vector<2x512xf32>
      %953 = tpu.matmul %951, %952, %cst_596 {dimension_numbers = #tpu.dot_dimension_numbers<[1], [0], [0], [1], [0, 0, 1, 1], [], []>} : vector<2x128xbf16>, vector<128x512xbf16>, vector<2x512xf32> -> vector<2x512xf32>
      %954 = arith.addf %950, %953 : vector<2x512xf32>
      %955 = vector.extract_strided_slice %954 {offsets = [0, 0], sizes = [2, 128], strides = [1, 1]} : vector<2x512xf32> to vector<2x128xf32>
      %956 = arith.negf %955 : vector<2x128xf32>
      %957 = math.exp %956 : vector<2x128xf32>
      %cst_597 = arith.constant 1.000000e+00 : f32
      %958 = vector.broadcast %cst_597 : f32 to vector<2x128xf32>
      %959 = arith.addf %958, %957 : vector<2x128xf32>
      %960 = arith.divf %958, %959 : vector<2x128xf32>
      %961 = vector.extract_strided_slice %954 {offsets = [0, 128], sizes = [2, 128], strides = [1, 1]} : vector<2x512xf32> to vector<2x128xf32>
      %962 = arith.negf %961 : vector<2x128xf32>
      %963 = math.exp %962 : vector<2x128xf32>
      %cst_598 = arith.constant 1.000000e+00 : f32
      %964 = vector.broadcast %cst_598 : f32 to vector<2x128xf32>
      %965 = arith.addf %964, %963 : vector<2x128xf32>
      %966 = arith.divf %964, %965 : vector<2x128xf32>
      %967 = vector.extract_strided_slice %954 {offsets = [0, 256], sizes = [2, 128], strides = [1, 1]} : vector<2x512xf32> to vector<2x128xf32>
      %968 = math.tanh %967 : vector<2x128xf32>
      %969 = vector.extract_strided_slice %954 {offsets = [0, 384], sizes = [2, 128], strides = [1, 1]} : vector<2x512xf32> to vector<2x128xf32>
      %970 = arith.negf %969 : vector<2x128xf32>
      %971 = math.exp %970 : vector<2x128xf32>
      %cst_599 = arith.constant 1.000000e+00 : f32
      %972 = vector.broadcast %cst_599 : f32 to vector<2x128xf32>
      %973 = arith.addf %972, %971 : vector<2x128xf32>
      %974 = arith.divf %972, %973 : vector<2x128xf32>
      %975 = arith.mulf %966, %944 : vector<2x128xf32>
      %976 = arith.mulf %960, %968 : vector<2x128xf32>
      %977 = arith.addf %975, %976 : vector<2x128xf32>
      %978 = math.tanh %977 : vector<2x128xf32>
      %979 = arith.mulf %974, %978 : vector<2x128xf32>
      %c3_i32 = arith.constant 3 : i32
      %980 = arith.addi %880, %c3_i32 : i32
      %981 = arith.index_cast %980 : i32 to index
      %c0_600 = arith.constant 0 : index
      %c0_601 = arith.constant 0 : index
      %982 = vector.load %arg1[%981, %c0_600, %c0_601] : memref<64x2x512xf32, #tpu.memory_space<vmem>>, vector<1x2x512xf32>
      %983 = vector.shape_cast %982 : vector<1x2x512xf32> to vector<2x512xf32>
      %984 = arith.truncf %979 : vector<2x128xf32> to vector<2x128xbf16>
      %c0_602 = arith.constant 0 : index
      %c0_603 = arith.constant 0 : index
      %985 = vector.load %arg2[%c0_602, %c0_603] : memref<128x512xbf16, #tpu.memory_space<vmem>>, vector<128x512xbf16>
      %cst_604 = arith.constant dense<0.000000e+00> : vector<2x512xf32>
      %986 = tpu.matmul %984, %985, %cst_604 {dimension_numbers = #tpu.dot_dimension_numbers<[1], [0], [0], [1], [0, 0, 1, 1], [], []>} : vector<2x128xbf16>, vector<128x512xbf16>, vector<2x512xf32> -> vector<2x512xf32>
      %987 = arith.addf %983, %986 : vector<2x512xf32>
      %988 = vector.extract_strided_slice %987 {offsets = [0, 0], sizes = [2, 128], strides = [1, 1]} : vector<2x512xf32> to vector<2x128xf32>
      %989 = arith.negf %988 : vector<2x128xf32>
      %990 = math.exp %989 : vector<2x128xf32>
      %cst_605 = arith.constant 1.000000e+00 : f32
      %991 = vector.broadcast %cst_605 : f32 to vector<2x128xf32>
      %992 = arith.addf %991, %990 : vector<2x128xf32>
      %993 = arith.divf %991, %992 : vector<2x128xf32>
      %994 = vector.extract_strided_slice %987 {offsets = [0, 128], sizes = [2, 128], strides = [1, 1]} : vector<2x512xf32> to vector<2x128xf32>
      %995 = arith.negf %994 : vector<2x128xf32>
      %996 = math.exp %995 : vector<2x128xf32>
      %cst_606 = arith.constant 1.000000e+00 : f32
      %997 = vector.broadcast %cst_606 : f32 to vector<2x128xf32>
      %998 = arith.addf %997, %996 : vector<2x128xf32>
      %999 = arith.divf %997, %998 : vector<2x128xf32>
      %1000 = vector.extract_strided_slice %987 {offsets = [0, 256], sizes = [2, 128], strides = [1, 1]} : vector<2x512xf32> to vector<2x128xf32>
      %1001 = math.tanh %1000 : vector<2x128xf32>
      %1002 = vector.extract_strided_slice %987 {offsets = [0, 384], sizes = [2, 128], strides = [1, 1]} : vector<2x512xf32> to vector<2x128xf32>
      %1003 = arith.negf %1002 : vector<2x128xf32>
      %1004 = math.exp %1003 : vector<2x128xf32>
      %cst_607 = arith.constant 1.000000e+00 : f32
      %1005 = vector.broadcast %cst_607 : f32 to vector<2x128xf32>
      %1006 = arith.addf %1005, %1004 : vector<2x128xf32>
      %1007 = arith.divf %1005, %1006 : vector<2x128xf32>
      %1008 = arith.mulf %999, %977 : vector<2x128xf32>
      %1009 = arith.mulf %993, %1001 : vector<2x128xf32>
      %1010 = arith.addf %1008, %1009 : vector<2x128xf32>
      %1011 = math.tanh %1010 : vector<2x128xf32>
      %1012 = arith.mulf %1007, %1011 : vector<2x128xf32>
      %1013 = arith.index_cast %arg10 : i32 to index
      %c0_608 = arith.constant 0 : index
      %c0_609 = arith.constant 0 : index
      %1014 = vector.load %arg7[%1013, %c0_608, %c0_609] : memref<16x2x128xf32, #tpu.memory_space<vmem>>, vector<1x2x128xf32>
      %1015 = vector.shape_cast %1014 : vector<1x2x128xf32> to vector<2x128xf32>
      %1016 = vector.shape_cast %1012 : vector<2x128xf32> to vector<1x2x128xf32>
      tpu.vector_store %arg7[%1013, %c0_608, %c0_609], %1016 {strides = array<i32>} : memref<16x2x128xf32, #tpu.memory_space<vmem>>, vector<1x2x128xf32>,
      scf.yield %1012, %1010 : vector<2x128xf32>, vector<2x128xf32>
    }
    %c16_i32_0 = arith.constant 16 : i32
    %c0 = arith.constant 0 : index
    %c0_1 = arith.constant 0 : index
    %c0_2 = arith.constant 0 : index
    %3 = vector.load %arg7[%c0, %c0_1, %c0_2] : memref<16x2x128xf32, #tpu.memory_space<vmem>>, vector<1x2x128xf32>
    %4 = vector.shape_cast %3 : vector<1x2x128xf32> to vector<2x128xf32>
    %c0_3 = arith.constant 0 : index
    %c0_4 = arith.constant 0 : index
    %c0_5 = arith.constant 0 : index
    %5 = vector.load %arg8[%c0_3, %c0_4, %c0_5] : memref<16x8x128xf32, #tpu.memory_space<vmem>>, vector<1x2x128xf32>
    %6 = vector.shape_cast %5 : vector<1x2x128xf32> to vector<2x128xf32>
    %7 = vector.shape_cast %4 : vector<2x128xf32> to vector<1x2x128xf32>
    tpu.vector_store %arg8[%c0_3, %c0_4, %c0_5], %7 {strides = array<i32>} : memref<16x8x128xf32, #tpu.memory_space<vmem>>, vector<1x2x128xf32>,
    %c1 = arith.constant 1 : index
    %c0_6 = arith.constant 0 : index
    %c0_7 = arith.constant 0 : index
    %8 = vector.load %arg7[%c1, %c0_6, %c0_7] : memref<16x2x128xf32, #tpu.memory_space<vmem>>, vector<1x2x128xf32>
    %9 = vector.shape_cast %8 : vector<1x2x128xf32> to vector<2x128xf32>
    %c1_8 = arith.constant 1 : index
    %c0_9 = arith.constant 0 : index
    %c0_10 = arith.constant 0 : index
    %10 = vector.load %arg8[%c1_8, %c0_9, %c0_10] : memref<16x8x128xf32, #tpu.memory_space<vmem>>, vector<1x2x128xf32>
    %11 = vector.shape_cast %10 : vector<1x2x128xf32> to vector<2x128xf32>
    %12 = vector.shape_cast %9 : vector<2x128xf32> to vector<1x2x128xf32>
    tpu.vector_store %arg8[%c1_8, %c0_9, %c0_10], %12 {strides = array<i32>} : memref<16x8x128xf32, #tpu.memory_space<vmem>>, vector<1x2x128xf32>,
    %c2 = arith.constant 2 : index
    %c0_11 = arith.constant 0 : index
    %c0_12 = arith.constant 0 : index
    %13 = vector.load %arg7[%c2, %c0_11, %c0_12] : memref<16x2x128xf32, #tpu.memory_space<vmem>>, vector<1x2x128xf32>
    %14 = vector.shape_cast %13 : vector<1x2x128xf32> to vector<2x128xf32>
    %c2_13 = arith.constant 2 : index
    %c0_14 = arith.constant 0 : index
    %c0_15 = arith.constant 0 : index
    %15 = vector.load %arg8[%c2_13, %c0_14, %c0_15] : memref<16x8x128xf32, #tpu.memory_space<vmem>>, vector<1x2x128xf32>
    %16 = vector.shape_cast %15 : vector<1x2x128xf32> to vector<2x128xf32>
    %17 = vector.shape_cast %14 : vector<2x128xf32> to vector<1x2x128xf32>
    tpu.vector_store %arg8[%c2_13, %c0_14, %c0_15], %17 {strides = array<i32>} : memref<16x8x128xf32, #tpu.memory_space<vmem>>, vector<1x2x128xf32>,
    %c3 = arith.constant 3 : index
    %c0_16 = arith.constant 0 : index
    %c0_17 = arith.constant 0 : index
    %18 = vector.load %arg7[%c3, %c0_16, %c0_17] : memref<16x2x128xf32, #tpu.memory_space<vmem>>, vector<1x2x128xf32>
    %19 = vector.shape_cast %18 : vector<1x2x128xf32> to vector<2x128xf32>
    %c3_18 = arith.constant 3 : index
    %c0_19 = arith.constant 0 : index
    %c0_20 = arith.constant 0 : index
    %20 = vector.load %arg8[%c3_18, %c0_19, %c0_20] : memref<16x8x128xf32, #tpu.memory_space<vmem>>, vector<1x2x128xf32>
    %21 = vector.shape_cast %20 : vector<1x2x128xf32> to vector<2x128xf32>
    %22 = vector.shape_cast %19 : vector<2x128xf32> to vector<1x2x128xf32>
    tpu.vector_store %arg8[%c3_18, %c0_19, %c0_20], %22 {strides = array<i32>} : memref<16x8x128xf32, #tpu.memory_space<vmem>>, vector<1x2x128xf32>,
    %c4 = arith.constant 4 : index
    %c0_21 = arith.constant 0 : index
    %c0_22 = arith.constant 0 : index
    %23 = vector.load %arg7[%c4, %c0_21, %c0_22] : memref<16x2x128xf32, #tpu.memory_space<vmem>>, vector<1x2x128xf32>
    %24 = vector.shape_cast %23 : vector<1x2x128xf32> to vector<2x128xf32>
    %c4_23 = arith.constant 4 : index
    %c0_24 = arith.constant 0 : index
    %c0_25 = arith.constant 0 : index
    %25 = vector.load %arg8[%c4_23, %c0_24, %c0_25] : memref<16x8x128xf32, #tpu.memory_space<vmem>>, vector<1x2x128xf32>
    %26 = vector.shape_cast %25 : vector<1x2x128xf32> to vector<2x128xf32>
    %27 = vector.shape_cast %24 : vector<2x128xf32> to vector<1x2x128xf32>
    tpu.vector_store %arg8[%c4_23, %c0_24, %c0_25], %27 {strides = array<i32>} : memref<16x8x128xf32, #tpu.memory_space<vmem>>, vector<1x2x128xf32>,
    %c5 = arith.constant 5 : index
    %c0_26 = arith.constant 0 : index
    %c0_27 = arith.constant 0 : index
    %28 = vector.load %arg7[%c5, %c0_26, %c0_27] : memref<16x2x128xf32, #tpu.memory_space<vmem>>, vector<1x2x128xf32>
    %29 = vector.shape_cast %28 : vector<1x2x128xf32> to vector<2x128xf32>
    %c5_28 = arith.constant 5 : index
    %c0_29 = arith.constant 0 : index
    %c0_30 = arith.constant 0 : index
    %30 = vector.load %arg8[%c5_28, %c0_29, %c0_30] : memref<16x8x128xf32, #tpu.memory_space<vmem>>, vector<1x2x128xf32>
    %31 = vector.shape_cast %30 : vector<1x2x128xf32> to vector<2x128xf32>
    %32 = vector.shape_cast %29 : vector<2x128xf32> to vector<1x2x128xf32>
    tpu.vector_store %arg8[%c5_28, %c0_29, %c0_30], %32 {strides = array<i32>} : memref<16x8x128xf32, #tpu.memory_space<vmem>>, vector<1x2x128xf32>,
    %c6 = arith.constant 6 : index
    %c0_31 = arith.constant 0 : index
    %c0_32 = arith.constant 0 : index
    %33 = vector.load %arg7[%c6, %c0_31, %c0_32] : memref<16x2x128xf32, #tpu.memory_space<vmem>>, vector<1x2x128xf32>
    %34 = vector.shape_cast %33 : vector<1x2x128xf32> to vector<2x128xf32>
    %c6_33 = arith.constant 6 : index
    %c0_34 = arith.constant 0 : index
    %c0_35 = arith.constant 0 : index
    %35 = vector.load %arg8[%c6_33, %c0_34, %c0_35] : memref<16x8x128xf32, #tpu.memory_space<vmem>>, vector<1x2x128xf32>
    %36 = vector.shape_cast %35 : vector<1x2x128xf32> to vector<2x128xf32>
    %37 = vector.shape_cast %34 : vector<2x128xf32> to vector<1x2x128xf32>
    tpu.vector_store %arg8[%c6_33, %c0_34, %c0_35], %37 {strides = array<i32>} : memref<16x8x128xf32, #tpu.memory_space<vmem>>, vector<1x2x128xf32>,
    %c7 = arith.constant 7 : index
    %c0_36 = arith.constant 0 : index
    %c0_37 = arith.constant 0 : index
    %38 = vector.load %arg7[%c7, %c0_36, %c0_37] : memref<16x2x128xf32, #tpu.memory_space<vmem>>, vector<1x2x128xf32>
    %39 = vector.shape_cast %38 : vector<1x2x128xf32> to vector<2x128xf32>
    %c7_38 = arith.constant 7 : index
    %c0_39 = arith.constant 0 : index
    %c0_40 = arith.constant 0 : index
    %40 = vector.load %arg8[%c7_38, %c0_39, %c0_40] : memref<16x8x128xf32, #tpu.memory_space<vmem>>, vector<1x2x128xf32>
    %41 = vector.shape_cast %40 : vector<1x2x128xf32> to vector<2x128xf32>
    %42 = vector.shape_cast %39 : vector<2x128xf32> to vector<1x2x128xf32>
    tpu.vector_store %arg8[%c7_38, %c0_39, %c0_40], %42 {strides = array<i32>} : memref<16x8x128xf32, #tpu.memory_space<vmem>>, vector<1x2x128xf32>,
    %c8 = arith.constant 8 : index
    %c0_41 = arith.constant 0 : index
    %c0_42 = arith.constant 0 : index
    %43 = vector.load %arg7[%c8, %c0_41, %c0_42] : memref<16x2x128xf32, #tpu.memory_space<vmem>>, vector<1x2x128xf32>
    %44 = vector.shape_cast %43 : vector<1x2x128xf32> to vector<2x128xf32>
    %c8_43 = arith.constant 8 : index
    %c0_44 = arith.constant 0 : index
    %c0_45 = arith.constant 0 : index
    %45 = vector.load %arg8[%c8_43, %c0_44, %c0_45] : memref<16x8x128xf32, #tpu.memory_space<vmem>>, vector<1x2x128xf32>
    %46 = vector.shape_cast %45 : vector<1x2x128xf32> to vector<2x128xf32>
    %47 = vector.shape_cast %44 : vector<2x128xf32> to vector<1x2x128xf32>
    tpu.vector_store %arg8[%c8_43, %c0_44, %c0_45], %47 {strides = array<i32>} : memref<16x8x128xf32, #tpu.memory_space<vmem>>, vector<1x2x128xf32>,
    %c9 = arith.constant 9 : index
    %c0_46 = arith.constant 0 : index
    %c0_47 = arith.constant 0 : index
    %48 = vector.load %arg7[%c9, %c0_46, %c0_47] : memref<16x2x128xf32, #tpu.memory_space<vmem>>, vector<1x2x128xf32>
    %49 = vector.shape_cast %48 : vector<1x2x128xf32> to vector<2x128xf32>
    %c9_48 = arith.constant 9 : index
    %c0_49 = arith.constant 0 : index
    %c0_50 = arith.constant 0 : index
    %50 = vector.load %arg8[%c9_48, %c0_49, %c0_50] : memref<16x8x128xf32, #tpu.memory_space<vmem>>, vector<1x2x128xf32>
    %51 = vector.shape_cast %50 : vector<1x2x128xf32> to vector<2x128xf32>
    %52 = vector.shape_cast %49 : vector<2x128xf32> to vector<1x2x128xf32>
    tpu.vector_store %arg8[%c9_48, %c0_49, %c0_50], %52 {strides = array<i32>} : memref<16x8x128xf32, #tpu.memory_space<vmem>>, vector<1x2x128xf32>,
    %c10 = arith.constant 10 : index
    %c0_51 = arith.constant 0 : index
    %c0_52 = arith.constant 0 : index
    %53 = vector.load %arg7[%c10, %c0_51, %c0_52] : memref<16x2x128xf32, #tpu.memory_space<vmem>>, vector<1x2x128xf32>
    %54 = vector.shape_cast %53 : vector<1x2x128xf32> to vector<2x128xf32>
    %c10_53 = arith.constant 10 : index
    %c0_54 = arith.constant 0 : index
    %c0_55 = arith.constant 0 : index
    %55 = vector.load %arg8[%c10_53, %c0_54, %c0_55] : memref<16x8x128xf32, #tpu.memory_space<vmem>>, vector<1x2x128xf32>
    %56 = vector.shape_cast %55 : vector<1x2x128xf32> to vector<2x128xf32>
    %57 = vector.shape_cast %54 : vector<2x128xf32> to vector<1x2x128xf32>
    tpu.vector_store %arg8[%c10_53, %c0_54, %c0_55], %57 {strides = array<i32>} : memref<16x8x128xf32, #tpu.memory_space<vmem>>, vector<1x2x128xf32>,
    %c11 = arith.constant 11 : index
    %c0_56 = arith.constant 0 : index
    %c0_57 = arith.constant 0 : index
    %58 = vector.load %arg7[%c11, %c0_56, %c0_57] : memref<16x2x128xf32, #tpu.memory_space<vmem>>, vector<1x2x128xf32>
    %59 = vector.shape_cast %58 : vector<1x2x128xf32> to vector<2x128xf32>
    %c11_58 = arith.constant 11 : index
    %c0_59 = arith.constant 0 : index
    %c0_60 = arith.constant 0 : index
    %60 = vector.load %arg8[%c11_58, %c0_59, %c0_60] : memref<16x8x128xf32, #tpu.memory_space<vmem>>, vector<1x2x128xf32>
    %61 = vector.shape_cast %60 : vector<1x2x128xf32> to vector<2x128xf32>
    %62 = vector.shape_cast %59 : vector<2x128xf32> to vector<1x2x128xf32>
    tpu.vector_store %arg8[%c11_58, %c0_59, %c0_60], %62 {strides = array<i32>} : memref<16x8x128xf32, #tpu.memory_space<vmem>>, vector<1x2x128xf32>,
    %c12 = arith.constant 12 : index
    %c0_61 = arith.constant 0 : index
    %c0_62 = arith.constant 0 : index
    %63 = vector.load %arg7[%c12, %c0_61, %c0_62] : memref<16x2x128xf32, #tpu.memory_space<vmem>>, vector<1x2x128xf32>
    %64 = vector.shape_cast %63 : vector<1x2x128xf32> to vector<2x128xf32>
    %c12_63 = arith.constant 12 : index
    %c0_64 = arith.constant 0 : index
    %c0_65 = arith.constant 0 : index
    %65 = vector.load %arg8[%c12_63, %c0_64, %c0_65] : memref<16x8x128xf32, #tpu.memory_space<vmem>>, vector<1x2x128xf32>
    %66 = vector.shape_cast %65 : vector<1x2x128xf32> to vector<2x128xf32>
    %67 = vector.shape_cast %64 : vector<2x128xf32> to vector<1x2x128xf32>
    tpu.vector_store %arg8[%c12_63, %c0_64, %c0_65], %67 {strides = array<i32>} : memref<16x8x128xf32, #tpu.memory_space<vmem>>, vector<1x2x128xf32>,
    %c13 = arith.constant 13 : index
    %c0_66 = arith.constant 0 : index
    %c0_67 = arith.constant 0 : index
    %68 = vector.load %arg7[%c13, %c0_66, %c0_67] : memref<16x2x128xf32, #tpu.memory_space<vmem>>, vector<1x2x128xf32>
    %69 = vector.shape_cast %68 : vector<1x2x128xf32> to vector<2x128xf32>
    %c13_68 = arith.constant 13 : index
    %c0_69 = arith.constant 0 : index
    %c0_70 = arith.constant 0 : index
    %70 = vector.load %arg8[%c13_68, %c0_69, %c0_70] : memref<16x8x128xf32, #tpu.memory_space<vmem>>, vector<1x2x128xf32>
    %71 = vector.shape_cast %70 : vector<1x2x128xf32> to vector<2x128xf32>
    %72 = vector.shape_cast %69 : vector<2x128xf32> to vector<1x2x128xf32>
    tpu.vector_store %arg8[%c13_68, %c0_69, %c0_70], %72 {strides = array<i32>} : memref<16x8x128xf32, #tpu.memory_space<vmem>>, vector<1x2x128xf32>,
    %c14 = arith.constant 14 : index
    %c0_71 = arith.constant 0 : index
    %c0_72 = arith.constant 0 : index
    %73 = vector.load %arg7[%c14, %c0_71, %c0_72] : memref<16x2x128xf32, #tpu.memory_space<vmem>>, vector<1x2x128xf32>
    %74 = vector.shape_cast %73 : vector<1x2x128xf32> to vector<2x128xf32>
    %c14_73 = arith.constant 14 : index
    %c0_74 = arith.constant 0 : index
    %c0_75 = arith.constant 0 : index
    %75 = vector.load %arg8[%c14_73, %c0_74, %c0_75] : memref<16x8x128xf32, #tpu.memory_space<vmem>>, vector<1x2x128xf32>
    %76 = vector.shape_cast %75 : vector<1x2x128xf32> to vector<2x128xf32>
    %77 = vector.shape_cast %74 : vector<2x128xf32> to vector<1x2x128xf32>
    tpu.vector_store %arg8[%c14_73, %c0_74, %c0_75], %77 {strides = array<i32>} : memref<16x8x128xf32, #tpu.memory_space<vmem>>, vector<1x2x128xf32>,
    %c15 = arith.constant 15 : index
    %c0_76 = arith.constant 0 : index
    %c0_77 = arith.constant 0 : index
    %78 = vector.load %arg7[%c15, %c0_76, %c0_77] : memref<16x2x128xf32, #tpu.memory_space<vmem>>, vector<1x2x128xf32>
    %79 = vector.shape_cast %78 : vector<1x2x128xf32> to vector<2x128xf32>
    %c15_78 = arith.constant 15 : index
    %c0_79 = arith.constant 0 : index
    %c0_80 = arith.constant 0 : index
    %80 = vector.load %arg8[%c15_78, %c0_79, %c0_80] : memref<16x8x128xf32, #tpu.memory_space<vmem>>, vector<1x2x128xf32>
    %81 = vector.shape_cast %80 : vector<1x2x128xf32> to vector<2x128xf32>
    %82 = vector.shape_cast %79 : vector<2x128xf32> to vector<1x2x128xf32>
    tpu.vector_store %arg8[%c15_78, %c0_79, %c0_80], %82 {strides = array<i32>} : memref<16x8x128xf32, #tpu.memory_space<vmem>>, vector<1x2x128xf32>,
    %c0_81 = arith.constant 0 : index
    %c0_82 = arith.constant 0 : index
    %c0_83 = arith.constant 0 : index
    %83 = vector.load %arg7[%c0_81, %c0_82, %c0_83] : memref<16x2x128xf32, #tpu.memory_space<vmem>>, vector<1x2x128xf32>
    %84 = vector.shape_cast %83 : vector<1x2x128xf32> to vector<2x128xf32>
    %c0_84 = arith.constant 0 : index
    %c2_85 = arith.constant 2 : index
    %c0_86 = arith.constant 0 : index
    %85 = vector.load %arg8[%c0_84, %c2_85, %c0_86] : memref<16x8x128xf32, #tpu.memory_space<vmem>>, vector<1x2x128xf32>
    %86 = vector.shape_cast %85 : vector<1x2x128xf32> to vector<2x128xf32>
    %87 = vector.shape_cast %84 : vector<2x128xf32> to vector<1x2x128xf32>
    tpu.vector_store %arg8[%c0_84, %c2_85, %c0_86], %87 {strides = array<i32>} : memref<16x8x128xf32, #tpu.memory_space<vmem>>, vector<1x2x128xf32>,
    %c13_87 = arith.constant 13 : index
    %c0_88 = arith.constant 0 : index
    %c0_89 = arith.constant 0 : index
    %88 = vector.load %arg7[%c13_87, %c0_88, %c0_89] : memref<16x2x128xf32, #tpu.memory_space<vmem>>, vector<1x2x128xf32>
    %89 = vector.shape_cast %88 : vector<1x2x128xf32> to vector<2x128xf32>
    %c1_90 = arith.constant 1 : index
    %c2_91 = arith.constant 2 : index
    %c0_92 = arith.constant 0 : index
    %90 = vector.load %arg8[%c1_90, %c2_91, %c0_92] : memref<16x8x128xf32, #tpu.memory_space<vmem>>, vector<1x2x128xf32>
    %91 = vector.shape_cast %90 : vector<1x2x128xf32> to vector<2x128xf32>
    %92 = vector.shape_cast %89 : vector<2x128xf32> to vector<1x2x128xf32>
    tpu.vector_store %arg8[%c1_90, %c2_91, %c0_92], %92 {strides = array<i32>} : memref<16x8x128xf32, #tpu.memory_space<vmem>>, vector<1x2x128xf32>,
    %c1_93 = arith.constant 1 : index
    %c0_94 = arith.constant 0 : index
    %c0_95 = arith.constant 0 : index
    %93 = vector.load %arg7[%c1_93, %c0_94, %c0_95] : memref<16x2x128xf32, #tpu.memory_space<vmem>>, vector<1x2x128xf32>
    %94 = vector.shape_cast %93 : vector<1x2x128xf32> to vector<2x128xf32>
    %c2_96 = arith.constant 2 : index
    %c2_97 = arith.constant 2 : index
    %c0_98 = arith.constant 0 : index
    %95 = vector.load %arg8[%c2_96, %c2_97, %c0_98] : memref<16x8x128xf32, #tpu.memory_space<vmem>>, vector<1x2x128xf32>
    %96 = vector.shape_cast %95 : vector<1x2x128xf32> to vector<2x128xf32>
    %97 = vector.shape_cast %94 : vector<2x128xf32> to vector<1x2x128xf32>
    tpu.vector_store %arg8[%c2_96, %c2_97, %c0_98], %97 {strides = array<i32>} : memref<16x8x128xf32, #tpu.memory_space<vmem>>, vector<1x2x128xf32>,
    %c14_99 = arith.constant 14 : index
    %c0_100 = arith.constant 0 : index
    %c0_101 = arith.constant 0 : index
    %98 = vector.load %arg7[%c14_99, %c0_100, %c0_101] : memref<16x2x128xf32, #tpu.memory_space<vmem>>, vector<1x2x128xf32>
    %99 = vector.shape_cast %98 : vector<1x2x128xf32> to vector<2x128xf32>
    %c3_102 = arith.constant 3 : index
    %c2_103 = arith.constant 2 : index
    %c0_104 = arith.constant 0 : index
    %100 = vector.load %arg8[%c3_102, %c2_103, %c0_104] : memref<16x8x128xf32, #tpu.memory_space<vmem>>, vector<1x2x128xf32>
    %101 = vector.shape_cast %100 : vector<1x2x128xf32> to vector<2x128xf32>
    %102 = vector.shape_cast %99 : vector<2x128xf32> to vector<1x2x128xf32>
    tpu.vector_store %arg8[%c3_102, %c2_103, %c0_104], %102 {strides = array<i32>} : memref<16x8x128xf32, #tpu.memory_space<vmem>>, vector<1x2x128xf32>,
    %c2_105 = arith.constant 2 : index
    %c0_106 = arith.constant 0 : index
    %c0_107 = arith.constant 0 : index
    %103 = vector.load %arg7[%c2_105, %c0_106, %c0_107] : memref<16x2x128xf32, #tpu.memory_space<vmem>>, vector<1x2x128xf32>
    %104 = vector.shape_cast %103 : vector<1x2x128xf32> to vector<2x128xf32>
    %c4_108 = arith.constant 4 : index
    %c2_109 = arith.constant 2 : index
    %c0_110 = arith.constant 0 : index
    %105 = vector.load %arg8[%c4_108, %c2_109, %c0_110] : memref<16x8x128xf32, #tpu.memory_space<vmem>>, vector<1x2x128xf32>
    %106 = vector.shape_cast %105 : vector<1x2x128xf32> to vector<2x128xf32>
    %107 = vector.shape_cast %104 : vector<2x128xf32> to vector<1x2x128xf32>
    tpu.vector_store %arg8[%c4_108, %c2_109, %c0_110], %107 {strides = array<i32>} : memref<16x8x128xf32, #tpu.memory_space<vmem>>, vector<1x2x128xf32>,
    %c15_111 = arith.constant 15 : index
    %c0_112 = arith.constant 0 : index
    %c0_113 = arith.constant 0 : index
    %108 = vector.load %arg7[%c15_111, %c0_112, %c0_113] : memref<16x2x128xf32, #tpu.memory_space<vmem>>, vector<1x2x128xf32>
    %109 = vector.shape_cast %108 : vector<1x2x128xf32> to vector<2x128xf32>
    %c5_114 = arith.constant 5 : index
    %c2_115 = arith.constant 2 : index
    %c0_116 = arith.constant 0 : index
    %110 = vector.load %arg8[%c5_114, %c2_115, %c0_116] : memref<16x8x128xf32, #tpu.memory_space<vmem>>, vector<1x2x128xf32>
    %111 = vector.shape_cast %110 : vector<1x2x128xf32> to vector<2x128xf32>
    %112 = vector.shape_cast %109 : vector<2x128xf32> to vector<1x2x128xf32>
    tpu.vector_store %arg8[%c5_114, %c2_115, %c0_116], %112 {strides = array<i32>} : memref<16x8x128xf32, #tpu.memory_space<vmem>>, vector<1x2x128xf32>,
    %c3_117 = arith.constant 3 : index
    %c0_118 = arith.constant 0 : index
    %c0_119 = arith.constant 0 : index
    %113 = vector.load %arg7[%c3_117, %c0_118, %c0_119] : memref<16x2x128xf32, #tpu.memory_space<vmem>>, vector<1x2x128xf32>
    %114 = vector.shape_cast %113 : vector<1x2x128xf32> to vector<2x128xf32>
    %c6_120 = arith.constant 6 : index
    %c2_121 = arith.constant 2 : index
    %c0_122 = arith.constant 0 : index
    %115 = vector.load %arg8[%c6_120, %c2_121, %c0_122] : memref<16x8x128xf32, #tpu.memory_space<vmem>>, vector<1x2x128xf32>
    %116 = vector.shape_cast %115 : vector<1x2x128xf32> to vector<2x128xf32>
    %117 = vector.shape_cast %114 : vector<2x128xf32> to vector<1x2x128xf32>
    tpu.vector_store %arg8[%c6_120, %c2_121, %c0_122], %117 {strides = array<i32>} : memref<16x8x128xf32, #tpu.memory_space<vmem>>, vector<1x2x128xf32>,
    %c4_123 = arith.constant 4 : index
    %c0_124 = arith.constant 0 : index
    %c0_125 = arith.constant 0 : index
    %118 = vector.load %arg7[%c4_123, %c0_124, %c0_125] : memref<16x2x128xf32, #tpu.memory_space<vmem>>, vector<1x2x128xf32>
    %119 = vector.shape_cast %118 : vector<1x2x128xf32> to vector<2x128xf32>
    %c7_126 = arith.constant 7 : index
    %c2_127 = arith.constant 2 : index
    %c0_128 = arith.constant 0 : index
    %120 = vector.load %arg8[%c7_126, %c2_127, %c0_128] : memref<16x8x128xf32, #tpu.memory_space<vmem>>, vector<1x2x128xf32>
    %121 = vector.shape_cast %120 : vector<1x2x128xf32> to vector<2x128xf32>
    %122 = vector.shape_cast %119 : vector<2x128xf32> to vector<1x2x128xf32>
    tpu.vector_store %arg8[%c7_126, %c2_127, %c0_128], %122 {strides = array<i32>} : memref<16x8x128xf32, #tpu.memory_space<vmem>>, vector<1x2x128xf32>,
    %c5_129 = arith.constant 5 : index
    %c0_130 = arith.constant 0 : index
    %c0_131 = arith.constant 0 : index
    %123 = vector.load %arg7[%c5_129, %c0_130, %c0_131] : memref<16x2x128xf32, #tpu.memory_space<vmem>>, vector<1x2x128xf32>
    %124 = vector.shape_cast %123 : vector<1x2x128xf32> to vector<2x128xf32>
    %c8_132 = arith.constant 8 : index
    %c2_133 = arith.constant 2 : index
    %c0_134 = arith.constant 0 : index
    %125 = vector.load %arg8[%c8_132, %c2_133, %c0_134] : memref<16x8x128xf32, #tpu.memory_space<vmem>>, vector<1x2x128xf32>
    %126 = vector.shape_cast %125 : vector<1x2x128xf32> to vector<2x128xf32>
    %127 = vector.shape_cast %124 : vector<2x128xf32> to vector<1x2x128xf32>
    tpu.vector_store %arg8[%c8_132, %c2_133, %c0_134], %127 {strides = array<i32>} : memref<16x8x128xf32, #tpu.memory_space<vmem>>, vector<1x2x128xf32>,
    %c6_135 = arith.constant 6 : index
    %c0_136 = arith.constant 0 : index
    %c0_137 = arith.constant 0 : index
    %128 = vector.load %arg7[%c6_135, %c0_136, %c0_137] : memref<16x2x128xf32, #tpu.memory_space<vmem>>, vector<1x2x128xf32>
    %129 = vector.shape_cast %128 : vector<1x2x128xf32> to vector<2x128xf32>
    %c9_138 = arith.constant 9 : index
    %c2_139 = arith.constant 2 : index
    %c0_140 = arith.constant 0 : index
    %130 = vector.load %arg8[%c9_138, %c2_139, %c0_140] : memref<16x8x128xf32, #tpu.memory_space<vmem>>, vector<1x2x128xf32>
    %131 = vector.shape_cast %130 : vector<1x2x128xf32> to vector<2x128xf32>
    %132 = vector.shape_cast %129 : vector<2x128xf32> to vector<1x2x128xf32>
    tpu.vector_store %arg8[%c9_138, %c2_139, %c0_140], %132 {strides = array<i32>} : memref<16x8x128xf32, #tpu.memory_space<vmem>>, vector<1x2x128xf32>,
    %c7_141 = arith.constant 7 : index
    %c0_142 = arith.constant 0 : index
    %c0_143 = arith.constant 0 : index
    %133 = vector.load %arg7[%c7_141, %c0_142, %c0_143] : memref<16x2x128xf32, #tpu.memory_space<vmem>>, vector<1x2x128xf32>
    %134 = vector.shape_cast %133 : vector<1x2x128xf32> to vector<2x128xf32>
    %c10_144 = arith.constant 10 : index
    %c2_145 = arith.constant 2 : index
    %c0_146 = arith.constant 0 : index
    %135 = vector.load %arg8[%c10_144, %c2_145, %c0_146] : memref<16x8x128xf32, #tpu.memory_space<vmem>>, vector<1x2x128xf32>
    %136 = vector.shape_cast %135 : vector<1x2x128xf32> to vector<2x128xf32>
    %137 = vector.shape_cast %134 : vector<2x128xf32> to vector<1x2x128xf32>
    tpu.vector_store %arg8[%c10_144, %c2_145, %c0_146], %137 {strides = array<i32>} : memref<16x8x128xf32, #tpu.memory_space<vmem>>, vector<1x2x128xf32>,
    %c8_147 = arith.constant 8 : index
    %c0_148 = arith.constant 0 : index
    %c0_149 = arith.constant 0 : index
    %138 = vector.load %arg7[%c8_147, %c0_148, %c0_149] : memref<16x2x128xf32, #tpu.memory_space<vmem>>, vector<1x2x128xf32>
    %139 = vector.shape_cast %138 : vector<1x2x128xf32> to vector<2x128xf32>
    %c11_150 = arith.constant 11 : index
    %c2_151 = arith.constant 2 : index
    %c0_152 = arith.constant 0 : index
    %140 = vector.load %arg8[%c11_150, %c2_151, %c0_152] : memref<16x8x128xf32, #tpu.memory_space<vmem>>, vector<1x2x128xf32>
    %141 = vector.shape_cast %140 : vector<1x2x128xf32> to vector<2x128xf32>
    %142 = vector.shape_cast %139 : vector<2x128xf32> to vector<1x2x128xf32>
    tpu.vector_store %arg8[%c11_150, %c2_151, %c0_152], %142 {strides = array<i32>} : memref<16x8x128xf32, #tpu.memory_space<vmem>>, vector<1x2x128xf32>,
    %c9_153 = arith.constant 9 : index
    %c0_154 = arith.constant 0 : index
    %c0_155 = arith.constant 0 : index
    %143 = vector.load %arg7[%c9_153, %c0_154, %c0_155] : memref<16x2x128xf32, #tpu.memory_space<vmem>>, vector<1x2x128xf32>
    %144 = vector.shape_cast %143 : vector<1x2x128xf32> to vector<2x128xf32>
    %c12_156 = arith.constant 12 : index
    %c2_157 = arith.constant 2 : index
    %c0_158 = arith.constant 0 : index
    %145 = vector.load %arg8[%c12_156, %c2_157, %c0_158] : memref<16x8x128xf32, #tpu.memory_space<vmem>>, vector<1x2x128xf32>
    %146 = vector.shape_cast %145 : vector<1x2x128xf32> to vector<2x128xf32>
    %147 = vector.shape_cast %144 : vector<2x128xf32> to vector<1x2x128xf32>
    tpu.vector_store %arg8[%c12_156, %c2_157, %c0_158], %147 {strides = array<i32>} : memref<16x8x128xf32, #tpu.memory_space<vmem>>, vector<1x2x128xf32>,
    %c10_159 = arith.constant 10 : index
    %c0_160 = arith.constant 0 : index
    %c0_161 = arith.constant 0 : index
    %148 = vector.load %arg7[%c10_159, %c0_160, %c0_161] : memref<16x2x128xf32, #tpu.memory_space<vmem>>, vector<1x2x128xf32>
    %149 = vector.shape_cast %148 : vector<1x2x128xf32> to vector<2x128xf32>
    %c13_162 = arith.constant 13 : index
    %c2_163 = arith.constant 2 : index
    %c0_164 = arith.constant 0 : index
    %150 = vector.load %arg8[%c13_162, %c2_163, %c0_164] : memref<16x8x128xf32, #tpu.memory_space<vmem>>, vector<1x2x128xf32>
    %151 = vector.shape_cast %150 : vector<1x2x128xf32> to vector<2x128xf32>
    %152 = vector.shape_cast %149 : vector<2x128xf32> to vector<1x2x128xf32>
    tpu.vector_store %arg8[%c13_162, %c2_163, %c0_164], %152 {strides = array<i32>} : memref<16x8x128xf32, #tpu.memory_space<vmem>>, vector<1x2x128xf32>,
    %c11_165 = arith.constant 11 : index
    %c0_166 = arith.constant 0 : index
    %c0_167 = arith.constant 0 : index
    %153 = vector.load %arg7[%c11_165, %c0_166, %c0_167] : memref<16x2x128xf32, #tpu.memory_space<vmem>>, vector<1x2x128xf32>
    %154 = vector.shape_cast %153 : vector<1x2x128xf32> to vector<2x128xf32>
    %c14_168 = arith.constant 14 : index
    %c2_169 = arith.constant 2 : index
    %c0_170 = arith.constant 0 : index
    %155 = vector.load %arg8[%c14_168, %c2_169, %c0_170] : memref<16x8x128xf32, #tpu.memory_space<vmem>>, vector<1x2x128xf32>
    %156 = vector.shape_cast %155 : vector<1x2x128xf32> to vector<2x128xf32>
    %157 = vector.shape_cast %154 : vector<2x128xf32> to vector<1x2x128xf32>
    tpu.vector_store %arg8[%c14_168, %c2_169, %c0_170], %157 {strides = array<i32>} : memref<16x8x128xf32, #tpu.memory_space<vmem>>, vector<1x2x128xf32>,
    %c12_171 = arith.constant 12 : index
    %c0_172 = arith.constant 0 : index
    %c0_173 = arith.constant 0 : index
    %158 = vector.load %arg7[%c12_171, %c0_172, %c0_173] : memref<16x2x128xf32, #tpu.memory_space<vmem>>, vector<1x2x128xf32>
    %159 = vector.shape_cast %158 : vector<1x2x128xf32> to vector<2x128xf32>
    %c15_174 = arith.constant 15 : index
    %c2_175 = arith.constant 2 : index
    %c0_176 = arith.constant 0 : index
    %160 = vector.load %arg8[%c15_174, %c2_175, %c0_176] : memref<16x8x128xf32, #tpu.memory_space<vmem>>, vector<1x2x128xf32>
    %161 = vector.shape_cast %160 : vector<1x2x128xf32> to vector<2x128xf32>
    %162 = vector.shape_cast %159 : vector<2x128xf32> to vector<1x2x128xf32>
    tpu.vector_store %arg8[%c15_174, %c2_175, %c0_176], %162 {strides = array<i32>} : memref<16x8x128xf32, #tpu.memory_space<vmem>>, vector<1x2x128xf32>,
    %c0_177 = arith.constant 0 : index
    %c0_178 = arith.constant 0 : index
    %c0_179 = arith.constant 0 : index
    %163 = vector.load %arg7[%c0_177, %c0_178, %c0_179] : memref<16x2x128xf32, #tpu.memory_space<vmem>>, vector<1x2x128xf32>
    %164 = vector.shape_cast %163 : vector<1x2x128xf32> to vector<2x128xf32>
    %c0_180 = arith.constant 0 : index
    %c4_181 = arith.constant 4 : index
    %c0_182 = arith.constant 0 : index
    %165 = vector.load %arg8[%c0_180, %c4_181, %c0_182] : memref<16x8x128xf32, #tpu.memory_space<vmem>>, vector<1x2x128xf32>
    %166 = vector.shape_cast %165 : vector<1x2x128xf32> to vector<2x128xf32>
    %167 = vector.shape_cast %164 : vector<2x128xf32> to vector<1x2x128xf32>
    tpu.vector_store %arg8[%c0_180, %c4_181, %c0_182], %167 {strides = array<i32>} : memref<16x8x128xf32, #tpu.memory_space<vmem>>, vector<1x2x128xf32>,
    %c1_183 = arith.constant 1 : index
    %c0_184 = arith.constant 0 : index
    %c0_185 = arith.constant 0 : index
    %168 = vector.load %arg7[%c1_183, %c0_184, %c0_185] : memref<16x2x128xf32, #tpu.memory_space<vmem>>, vector<1x2x128xf32>
    %169 = vector.shape_cast %168 : vector<1x2x128xf32> to vector<2x128xf32>
    %c1_186 = arith.constant 1 : index
    %c4_187 = arith.constant 4 : index
    %c0_188 = arith.constant 0 : index
    %170 = vector.load %arg8[%c1_186, %c4_187, %c0_188] : memref<16x8x128xf32, #tpu.memory_space<vmem>>, vector<1x2x128xf32>
    %171 = vector.shape_cast %170 : vector<1x2x128xf32> to vector<2x128xf32>
    %172 = vector.shape_cast %169 : vector<2x128xf32> to vector<1x2x128xf32>
    tpu.vector_store %arg8[%c1_186, %c4_187, %c0_188], %172 {strides = array<i32>} : memref<16x8x128xf32, #tpu.memory_space<vmem>>, vector<1x2x128xf32>,
    %c2_189 = arith.constant 2 : index
    %c0_190 = arith.constant 0 : index
    %c0_191 = arith.constant 0 : index
    %173 = vector.load %arg7[%c2_189, %c0_190, %c0_191] : memref<16x2x128xf32, #tpu.memory_space<vmem>>, vector<1x2x128xf32>
    %174 = vector.shape_cast %173 : vector<1x2x128xf32> to vector<2x128xf32>
    %c2_192 = arith.constant 2 : index
    %c4_193 = arith.constant 4 : index
    %c0_194 = arith.constant 0 : index
    %175 = vector.load %arg8[%c2_192, %c4_193, %c0_194] : memref<16x8x128xf32, #tpu.memory_space<vmem>>, vector<1x2x128xf32>
    %176 = vector.shape_cast %175 : vector<1x2x128xf32> to vector<2x128xf32>
    %177 = vector.shape_cast %174 : vector<2x128xf32> to vector<1x2x128xf32>
    tpu.vector_store %arg8[%c2_192, %c4_193, %c0_194], %177 {strides = array<i32>} : memref<16x8x128xf32, #tpu.memory_space<vmem>>, vector<1x2x128xf32>,
    %c3_195 = arith.constant 3 : index
    %c0_196 = arith.constant 0 : index
    %c0_197 = arith.constant 0 : index
    %178 = vector.load %arg7[%c3_195, %c0_196, %c0_197] : memref<16x2x128xf32, #tpu.memory_space<vmem>>, vector<1x2x128xf32>
    %179 = vector.shape_cast %178 : vector<1x2x128xf32> to vector<2x128xf32>
    %c3_198 = arith.constant 3 : index
    %c4_199 = arith.constant 4 : index
    %c0_200 = arith.constant 0 : index
    %180 = vector.load %arg8[%c3_198, %c4_199, %c0_200] : memref<16x8x128xf32, #tpu.memory_space<vmem>>, vector<1x2x128xf32>
    %181 = vector.shape_cast %180 : vector<1x2x128xf32> to vector<2x128xf32>
    %182 = vector.shape_cast %179 : vector<2x128xf32> to vector<1x2x128xf32>
    tpu.vector_store %arg8[%c3_198, %c4_199, %c0_200], %182 {strides = array<i32>} : memref<16x8x128xf32, #tpu.memory_space<vmem>>, vector<1x2x128xf32>,
    %c4_201 = arith.constant 4 : index
    %c0_202 = arith.constant 0 : index
    %c0_203 = arith.constant 0 : index
    %183 = vector.load %arg7[%c4_201, %c0_202, %c0_203] : memref<16x2x128xf32, #tpu.memory_space<vmem>>, vector<1x2x128xf32>
    %184 = vector.shape_cast %183 : vector<1x2x128xf32> to vector<2x128xf32>
    %c4_204 = arith.constant 4 : index
    %c4_205 = arith.constant 4 : index
    %c0_206 = arith.constant 0 : index
    %185 = vector.load %arg8[%c4_204, %c4_205, %c0_206] : memref<16x8x128xf32, #tpu.memory_space<vmem>>, vector<1x2x128xf32>
    %186 = vector.shape_cast %185 : vector<1x2x128xf32> to vector<2x128xf32>
    %187 = vector.shape_cast %184 : vector<2x128xf32> to vector<1x2x128xf32>
    tpu.vector_store %arg8[%c4_204, %c4_205, %c0_206], %187 {strides = array<i32>} : memref<16x8x128xf32, #tpu.memory_space<vmem>>, vector<1x2x128xf32>,
    %c5_207 = arith.constant 5 : index
    %c0_208 = arith.constant 0 : index
    %c0_209 = arith.constant 0 : index
    %188 = vector.load %arg7[%c5_207, %c0_208, %c0_209] : memref<16x2x128xf32, #tpu.memory_space<vmem>>, vector<1x2x128xf32>
    %189 = vector.shape_cast %188 : vector<1x2x128xf32> to vector<2x128xf32>
    %c5_210 = arith.constant 5 : index
    %c4_211 = arith.constant 4 : index
    %c0_212 = arith.constant 0 : index
    %190 = vector.load %arg8[%c5_210, %c4_211, %c0_212] : memref<16x8x128xf32, #tpu.memory_space<vmem>>, vector<1x2x128xf32>
    %191 = vector.shape_cast %190 : vector<1x2x128xf32> to vector<2x128xf32>
    %192 = vector.shape_cast %189 : vector<2x128xf32> to vector<1x2x128xf32>
    tpu.vector_store %arg8[%c5_210, %c4_211, %c0_212], %192 {strides = array<i32>} : memref<16x8x128xf32, #tpu.memory_space<vmem>>, vector<1x2x128xf32>,
    %c6_213 = arith.constant 6 : index
    %c0_214 = arith.constant 0 : index
    %c0_215 = arith.constant 0 : index
    %193 = vector.load %arg7[%c6_213, %c0_214, %c0_215] : memref<16x2x128xf32, #tpu.memory_space<vmem>>, vector<1x2x128xf32>
    %194 = vector.shape_cast %193 : vector<1x2x128xf32> to vector<2x128xf32>
    %c6_216 = arith.constant 6 : index
    %c4_217 = arith.constant 4 : index
    %c0_218 = arith.constant 0 : index
    %195 = vector.load %arg8[%c6_216, %c4_217, %c0_218] : memref<16x8x128xf32, #tpu.memory_space<vmem>>, vector<1x2x128xf32>
    %196 = vector.shape_cast %195 : vector<1x2x128xf32> to vector<2x128xf32>
    %197 = vector.shape_cast %194 : vector<2x128xf32> to vector<1x2x128xf32>
    tpu.vector_store %arg8[%c6_216, %c4_217, %c0_218], %197 {strides = array<i32>} : memref<16x8x128xf32, #tpu.memory_space<vmem>>, vector<1x2x128xf32>,
    %c7_219 = arith.constant 7 : index
    %c0_220 = arith.constant 0 : index
    %c0_221 = arith.constant 0 : index
    %198 = vector.load %arg7[%c7_219, %c0_220, %c0_221] : memref<16x2x128xf32, #tpu.memory_space<vmem>>, vector<1x2x128xf32>
    %199 = vector.shape_cast %198 : vector<1x2x128xf32> to vector<2x128xf32>
    %c7_222 = arith.constant 7 : index
    %c4_223 = arith.constant 4 : index
    %c0_224 = arith.constant 0 : index
    %200 = vector.load %arg8[%c7_222, %c4_223, %c0_224] : memref<16x8x128xf32, #tpu.memory_space<vmem>>, vector<1x2x128xf32>
    %201 = vector.shape_cast %200 : vector<1x2x128xf32> to vector<2x128xf32>
    %202 = vector.shape_cast %199 : vector<2x128xf32> to vector<1x2x128xf32>
    tpu.vector_store %arg8[%c7_222, %c4_223, %c0_224], %202 {strides = array<i32>} : memref<16x8x128xf32, #tpu.memory_space<vmem>>, vector<1x2x128xf32>,
    %c8_225 = arith.constant 8 : index
    %c0_226 = arith.constant 0 : index
    %c0_227 = arith.constant 0 : index
    %203 = vector.load %arg7[%c8_225, %c0_226, %c0_227] : memref<16x2x128xf32, #tpu.memory_space<vmem>>, vector<1x2x128xf32>
    %204 = vector.shape_cast %203 : vector<1x2x128xf32> to vector<2x128xf32>
    %c8_228 = arith.constant 8 : index
    %c4_229 = arith.constant 4 : index
    %c0_230 = arith.constant 0 : index
    %205 = vector.load %arg8[%c8_228, %c4_229, %c0_230] : memref<16x8x128xf32, #tpu.memory_space<vmem>>, vector<1x2x128xf32>
    %206 = vector.shape_cast %205 : vector<1x2x128xf32> to vector<2x128xf32>
    %207 = vector.shape_cast %204 : vector<2x128xf32> to vector<1x2x128xf32>
    tpu.vector_store %arg8[%c8_228, %c4_229, %c0_230], %207 {strides = array<i32>} : memref<16x8x128xf32, #tpu.memory_space<vmem>>, vector<1x2x128xf32>,
    %c9_231 = arith.constant 9 : index
    %c0_232 = arith.constant 0 : index
    %c0_233 = arith.constant 0 : index
    %208 = vector.load %arg7[%c9_231, %c0_232, %c0_233] : memref<16x2x128xf32, #tpu.memory_space<vmem>>, vector<1x2x128xf32>
    %209 = vector.shape_cast %208 : vector<1x2x128xf32> to vector<2x128xf32>
    %c9_234 = arith.constant 9 : index
    %c4_235 = arith.constant 4 : index
    %c0_236 = arith.constant 0 : index
    %210 = vector.load %arg8[%c9_234, %c4_235, %c0_236] : memref<16x8x128xf32, #tpu.memory_space<vmem>>, vector<1x2x128xf32>
    %211 = vector.shape_cast %210 : vector<1x2x128xf32> to vector<2x128xf32>
    %212 = vector.shape_cast %209 : vector<2x128xf32> to vector<1x2x128xf32>
    tpu.vector_store %arg8[%c9_234, %c4_235, %c0_236], %212 {strides = array<i32>} : memref<16x8x128xf32, #tpu.memory_space<vmem>>, vector<1x2x128xf32>,
    %c10_237 = arith.constant 10 : index
    %c0_238 = arith.constant 0 : index
    %c0_239 = arith.constant 0 : index
    %213 = vector.load %arg7[%c10_237, %c0_238, %c0_239] : memref<16x2x128xf32, #tpu.memory_space<vmem>>, vector<1x2x128xf32>
    %214 = vector.shape_cast %213 : vector<1x2x128xf32> to vector<2x128xf32>
    %c10_240 = arith.constant 10 : index
    %c4_241 = arith.constant 4 : index
    %c0_242 = arith.constant 0 : index
    %215 = vector.load %arg8[%c10_240, %c4_241, %c0_242] : memref<16x8x128xf32, #tpu.memory_space<vmem>>, vector<1x2x128xf32>
    %216 = vector.shape_cast %215 : vector<1x2x128xf32> to vector<2x128xf32>
    %217 = vector.shape_cast %214 : vector<2x128xf32> to vector<1x2x128xf32>
    tpu.vector_store %arg8[%c10_240, %c4_241, %c0_242], %217 {strides = array<i32>} : memref<16x8x128xf32, #tpu.memory_space<vmem>>, vector<1x2x128xf32>,
    %c11_243 = arith.constant 11 : index
    %c0_244 = arith.constant 0 : index
    %c0_245 = arith.constant 0 : index
    %218 = vector.load %arg7[%c11_243, %c0_244, %c0_245] : memref<16x2x128xf32, #tpu.memory_space<vmem>>, vector<1x2x128xf32>
    %219 = vector.shape_cast %218 : vector<1x2x128xf32> to vector<2x128xf32>
    %c11_246 = arith.constant 11 : index
    %c4_247 = arith.constant 4 : index
    %c0_248 = arith.constant 0 : index
    %220 = vector.load %arg8[%c11_246, %c4_247, %c0_248] : memref<16x8x128xf32, #tpu.memory_space<vmem>>, vector<1x2x128xf32>
    %221 = vector.shape_cast %220 : vector<1x2x128xf32> to vector<2x128xf32>
    %222 = vector.shape_cast %219 : vector<2x128xf32> to vector<1x2x128xf32>
    tpu.vector_store %arg8[%c11_246, %c4_247, %c0_248], %222 {strides = array<i32>} : memref<16x8x128xf32, #tpu.memory_space<vmem>>, vector<1x2x128xf32>,
    %c12_249 = arith.constant 12 : index
    %c0_250 = arith.constant 0 : index
    %c0_251 = arith.constant 0 : index
    %223 = vector.load %arg7[%c12_249, %c0_250, %c0_251] : memref<16x2x128xf32, #tpu.memory_space<vmem>>, vector<1x2x128xf32>
    %224 = vector.shape_cast %223 : vector<1x2x128xf32> to vector<2x128xf32>
    %c12_252 = arith.constant 12 : index
    %c4_253 = arith.constant 4 : index
    %c0_254 = arith.constant 0 : index
    %225 = vector.load %arg8[%c12_252, %c4_253, %c0_254] : memref<16x8x128xf32, #tpu.memory_space<vmem>>, vector<1x2x128xf32>
    %226 = vector.shape_cast %225 : vector<1x2x128xf32> to vector<2x128xf32>
    %227 = vector.shape_cast %224 : vector<2x128xf32> to vector<1x2x128xf32>
    tpu.vector_store %arg8[%c12_252, %c4_253, %c0_254], %227 {strides = array<i32>} : memref<16x8x128xf32, #tpu.memory_space<vmem>>, vector<1x2x128xf32>,
    %c13_255 = arith.constant 13 : index
    %c0_256 = arith.constant 0 : index
    %c0_257 = arith.constant 0 : index
    %228 = vector.load %arg7[%c13_255, %c0_256, %c0_257] : memref<16x2x128xf32, #tpu.memory_space<vmem>>, vector<1x2x128xf32>
    %229 = vector.shape_cast %228 : vector<1x2x128xf32> to vector<2x128xf32>
    %c13_258 = arith.constant 13 : index
    %c4_259 = arith.constant 4 : index
    %c0_260 = arith.constant 0 : index
    %230 = vector.load %arg8[%c13_258, %c4_259, %c0_260] : memref<16x8x128xf32, #tpu.memory_space<vmem>>, vector<1x2x128xf32>
    %231 = vector.shape_cast %230 : vector<1x2x128xf32> to vector<2x128xf32>
    %232 = vector.shape_cast %229 : vector<2x128xf32> to vector<1x2x128xf32>
    tpu.vector_store %arg8[%c13_258, %c4_259, %c0_260], %232 {strides = array<i32>} : memref<16x8x128xf32, #tpu.memory_space<vmem>>, vector<1x2x128xf32>,
    %c14_261 = arith.constant 14 : index
    %c0_262 = arith.constant 0 : index
    %c0_263 = arith.constant 0 : index
    %233 = vector.load %arg7[%c14_261, %c0_262, %c0_263] : memref<16x2x128xf32, #tpu.memory_space<vmem>>, vector<1x2x128xf32>
    %234 = vector.shape_cast %233 : vector<1x2x128xf32> to vector<2x128xf32>
    %c14_264 = arith.constant 14 : index
    %c4_265 = arith.constant 4 : index
    %c0_266 = arith.constant 0 : index
    %235 = vector.load %arg8[%c14_264, %c4_265, %c0_266] : memref<16x8x128xf32, #tpu.memory_space<vmem>>, vector<1x2x128xf32>
    %236 = vector.shape_cast %235 : vector<1x2x128xf32> to vector<2x128xf32>
    %237 = vector.shape_cast %234 : vector<2x128xf32> to vector<1x2x128xf32>
    tpu.vector_store %arg8[%c14_264, %c4_265, %c0_266], %237 {strides = array<i32>} : memref<16x8x128xf32, #tpu.memory_space<vmem>>, vector<1x2x128xf32>,
    %c15_267 = arith.constant 15 : index
    %c0_268 = arith.constant 0 : index
    %c0_269 = arith.constant 0 : index
    %238 = vector.load %arg7[%c15_267, %c0_268, %c0_269] : memref<16x2x128xf32, #tpu.memory_space<vmem>>, vector<1x2x128xf32>
    %239 = vector.shape_cast %238 : vector<1x2x128xf32> to vector<2x128xf32>
    %c15_270 = arith.constant 15 : index
    %c4_271 = arith.constant 4 : index
    %c0_272 = arith.constant 0 : index
    %240 = vector.load %arg8[%c15_270, %c4_271, %c0_272] : memref<16x8x128xf32, #tpu.memory_space<vmem>>, vector<1x2x128xf32>
    %241 = vector.shape_cast %240 : vector<1x2x128xf32> to vector<2x128xf32>
    %242 = vector.shape_cast %239 : vector<2x128xf32> to vector<1x2x128xf32>
    tpu.vector_store %arg8[%c15_270, %c4_271, %c0_272], %242 {strides = array<i32>} : memref<16x8x128xf32, #tpu.memory_space<vmem>>, vector<1x2x128xf32>,
    %c0_273 = arith.constant 0 : index
    %c0_274 = arith.constant 0 : index
    %c0_275 = arith.constant 0 : index
    %243 = vector.load %arg7[%c0_273, %c0_274, %c0_275] : memref<16x2x128xf32, #tpu.memory_space<vmem>>, vector<1x2x128xf32>
    %244 = vector.shape_cast %243 : vector<1x2x128xf32> to vector<2x128xf32>
    %c0_276 = arith.constant 0 : index
    %c6_277 = arith.constant 6 : index
    %c0_278 = arith.constant 0 : index
    %245 = vector.load %arg8[%c0_276, %c6_277, %c0_278] : memref<16x8x128xf32, #tpu.memory_space<vmem>>, vector<1x2x128xf32>
    %246 = vector.shape_cast %245 : vector<1x2x128xf32> to vector<2x128xf32>
    %247 = vector.shape_cast %244 : vector<2x128xf32> to vector<1x2x128xf32>
    tpu.vector_store %arg8[%c0_276, %c6_277, %c0_278], %247 {strides = array<i32>} : memref<16x8x128xf32, #tpu.memory_space<vmem>>, vector<1x2x128xf32>,
    %c1_279 = arith.constant 1 : index
    %c0_280 = arith.constant 0 : index
    %c0_281 = arith.constant 0 : index
    %248 = vector.load %arg7[%c1_279, %c0_280, %c0_281] : memref<16x2x128xf32, #tpu.memory_space<vmem>>, vector<1x2x128xf32>
    %249 = vector.shape_cast %248 : vector<1x2x128xf32> to vector<2x128xf32>
    %c1_282 = arith.constant 1 : index
    %c6_283 = arith.constant 6 : index
    %c0_284 = arith.constant 0 : index
    %250 = vector.load %arg8[%c1_282, %c6_283, %c0_284] : memref<16x8x128xf32, #tpu.memory_space<vmem>>, vector<1x2x128xf32>
    %251 = vector.shape_cast %250 : vector<1x2x128xf32> to vector<2x128xf32>
    %252 = vector.shape_cast %249 : vector<2x128xf32> to vector<1x2x128xf32>
    tpu.vector_store %arg8[%c1_282, %c6_283, %c0_284], %252 {strides = array<i32>} : memref<16x8x128xf32, #tpu.memory_space<vmem>>, vector<1x2x128xf32>,
    %c2_285 = arith.constant 2 : index
    %c0_286 = arith.constant 0 : index
    %c0_287 = arith.constant 0 : index
    %253 = vector.load %arg7[%c2_285, %c0_286, %c0_287] : memref<16x2x128xf32, #tpu.memory_space<vmem>>, vector<1x2x128xf32>
    %254 = vector.shape_cast %253 : vector<1x2x128xf32> to vector<2x128xf32>
    %c2_288 = arith.constant 2 : index
    %c6_289 = arith.constant 6 : index
    %c0_290 = arith.constant 0 : index
    %255 = vector.load %arg8[%c2_288, %c6_289, %c0_290] : memref<16x8x128xf32, #tpu.memory_space<vmem>>, vector<1x2x128xf32>
    %256 = vector.shape_cast %255 : vector<1x2x128xf32> to vector<2x128xf32>
    %257 = vector.shape_cast %254 : vector<2x128xf32> to vector<1x2x128xf32>
    tpu.vector_store %arg8[%c2_288, %c6_289, %c0_290], %257 {strides = array<i32>} : memref<16x8x128xf32, #tpu.memory_space<vmem>>, vector<1x2x128xf32>,
    %c3_291 = arith.constant 3 : index
    %c0_292 = arith.constant 0 : index
    %c0_293 = arith.constant 0 : index
    %258 = vector.load %arg7[%c3_291, %c0_292, %c0_293] : memref<16x2x128xf32, #tpu.memory_space<vmem>>, vector<1x2x128xf32>
    %259 = vector.shape_cast %258 : vector<1x2x128xf32> to vector<2x128xf32>
    %c3_294 = arith.constant 3 : index
    %c6_295 = arith.constant 6 : index
    %c0_296 = arith.constant 0 : index
    %260 = vector.load %arg8[%c3_294, %c6_295, %c0_296] : memref<16x8x128xf32, #tpu.memory_space<vmem>>, vector<1x2x128xf32>
    %261 = vector.shape_cast %260 : vector<1x2x128xf32> to vector<2x128xf32>
    %262 = vector.shape_cast %259 : vector<2x128xf32> to vector<1x2x128xf32>
    tpu.vector_store %arg8[%c3_294, %c6_295, %c0_296], %262 {strides = array<i32>} : memref<16x8x128xf32, #tpu.memory_space<vmem>>, vector<1x2x128xf32>,
    %c4_297 = arith.constant 4 : index
    %c0_298 = arith.constant 0 : index
    %c0_299 = arith.constant 0 : index
    %263 = vector.load %arg7[%c4_297, %c0_298, %c0_299] : memref<16x2x128xf32, #tpu.memory_space<vmem>>, vector<1x2x128xf32>
    %264 = vector.shape_cast %263 : vector<1x2x128xf32> to vector<2x128xf32>
    %c4_300 = arith.constant 4 : index
    %c6_301 = arith.constant 6 : index
    %c0_302 = arith.constant 0 : index
    %265 = vector.load %arg8[%c4_300, %c6_301, %c0_302] : memref<16x8x128xf32, #tpu.memory_space<vmem>>, vector<1x2x128xf32>
    %266 = vector.shape_cast %265 : vector<1x2x128xf32> to vector<2x128xf32>
    %267 = vector.shape_cast %264 : vector<2x128xf32> to vector<1x2x128xf32>
    tpu.vector_store %arg8[%c4_300, %c6_301, %c0_302], %267 {strides = array<i32>} : memref<16x8x128xf32, #tpu.memory_space<vmem>>, vector<1x2x128xf32>,
    %c5_303 = arith.constant 5 : index
    %c0_304 = arith.constant 0 : index
    %c0_305 = arith.constant 0 : index
    %268 = vector.load %arg7[%c5_303, %c0_304, %c0_305] : memref<16x2x128xf32, #tpu.memory_space<vmem>>, vector<1x2x128xf32>
    %269 = vector.shape_cast %268 : vector<1x2x128xf32> to vector<2x128xf32>
    %c5_306 = arith.constant 5 : index
    %c6_307 = arith.constant 6 : index
    %c0_308 = arith.constant 0 : index
    %270 = vector.load %arg8[%c5_306, %c6_307, %c0_308] : memref<16x8x128xf32, #tpu.memory_space<vmem>>, vector<1x2x128xf32>
    %271 = vector.shape_cast %270 : vector<1x2x128xf32> to vector<2x128xf32>
    %272 = vector.shape_cast %269 : vector<2x128xf32> to vector<1x2x128xf32>
    tpu.vector_store %arg8[%c5_306, %c6_307, %c0_308], %272 {strides = array<i32>} : memref<16x8x128xf32, #tpu.memory_space<vmem>>, vector<1x2x128xf32>,
    %c6_309 = arith.constant 6 : index
    %c0_310 = arith.constant 0 : index
    %c0_311 = arith.constant 0 : index
    %273 = vector.load %arg7[%c6_309, %c0_310, %c0_311] : memref<16x2x128xf32, #tpu.memory_space<vmem>>, vector<1x2x128xf32>
    %274 = vector.shape_cast %273 : vector<1x2x128xf32> to vector<2x128xf32>
    %c6_312 = arith.constant 6 : index
    %c6_313 = arith.constant 6 : index
    %c0_314 = arith.constant 0 : index
    %275 = vector.load %arg8[%c6_312, %c6_313, %c0_314] : memref<16x8x128xf32, #tpu.memory_space<vmem>>, vector<1x2x128xf32>
    %276 = vector.shape_cast %275 : vector<1x2x128xf32> to vector<2x128xf32>
    %277 = vector.shape_cast %274 : vector<2x128xf32> to vector<1x2x128xf32>
    tpu.vector_store %arg8[%c6_312, %c6_313, %c0_314], %277 {strides = array<i32>} : memref<16x8x128xf32, #tpu.memory_space<vmem>>, vector<1x2x128xf32>,
    %c7_315 = arith.constant 7 : index
    %c0_316 = arith.constant 0 : index
    %c0_317 = arith.constant 0 : index
    %278 = vector.load %arg7[%c7_315, %c0_316, %c0_317] : memref<16x2x128xf32, #tpu.memory_space<vmem>>, vector<1x2x128xf32>
    %279 = vector.shape_cast %278 : vector<1x2x128xf32> to vector<2x128xf32>
    %c7_318 = arith.constant 7 : index
    %c6_319 = arith.constant 6 : index
    %c0_320 = arith.constant 0 : index
    %280 = vector.load %arg8[%c7_318, %c6_319, %c0_320] : memref<16x8x128xf32, #tpu.memory_space<vmem>>, vector<1x2x128xf32>
    %281 = vector.shape_cast %280 : vector<1x2x128xf32> to vector<2x128xf32>
    %282 = vector.shape_cast %279 : vector<2x128xf32> to vector<1x2x128xf32>
    tpu.vector_store %arg8[%c7_318, %c6_319, %c0_320], %282 {strides = array<i32>} : memref<16x8x128xf32, #tpu.memory_space<vmem>>, vector<1x2x128xf32>,
    %c8_321 = arith.constant 8 : index
    %c0_322 = arith.constant 0 : index
    %c0_323 = arith.constant 0 : index
    %283 = vector.load %arg7[%c8_321, %c0_322, %c0_323] : memref<16x2x128xf32, #tpu.memory_space<vmem>>, vector<1x2x128xf32>
    %284 = vector.shape_cast %283 : vector<1x2x128xf32> to vector<2x128xf32>
    %c8_324 = arith.constant 8 : index
    %c6_325 = arith.constant 6 : index
    %c0_326 = arith.constant 0 : index
    %285 = vector.load %arg8[%c8_324, %c6_325, %c0_326] : memref<16x8x128xf32, #tpu.memory_space<vmem>>, vector<1x2x128xf32>
    %286 = vector.shape_cast %285 : vector<1x2x128xf32> to vector<2x128xf32>
    %287 = vector.shape_cast %284 : vector<2x128xf32> to vector<1x2x128xf32>
    tpu.vector_store %arg8[%c8_324, %c6_325, %c0_326], %287 {strides = array<i32>} : memref<16x8x128xf32, #tpu.memory_space<vmem>>, vector<1x2x128xf32>,
    %c9_327 = arith.constant 9 : index
    %c0_328 = arith.constant 0 : index
    %c0_329 = arith.constant 0 : index
    %288 = vector.load %arg7[%c9_327, %c0_328, %c0_329] : memref<16x2x128xf32, #tpu.memory_space<vmem>>, vector<1x2x128xf32>
    %289 = vector.shape_cast %288 : vector<1x2x128xf32> to vector<2x128xf32>
    %c9_330 = arith.constant 9 : index
    %c6_331 = arith.constant 6 : index
    %c0_332 = arith.constant 0 : index
    %290 = vector.load %arg8[%c9_330, %c6_331, %c0_332] : memref<16x8x128xf32, #tpu.memory_space<vmem>>, vector<1x2x128xf32>
    %291 = vector.shape_cast %290 : vector<1x2x128xf32> to vector<2x128xf32>
    %292 = vector.shape_cast %289 : vector<2x128xf32> to vector<1x2x128xf32>
    tpu.vector_store %arg8[%c9_330, %c6_331, %c0_332], %292 {strides = array<i32>} : memref<16x8x128xf32, #tpu.memory_space<vmem>>, vector<1x2x128xf32>,
    %c10_333 = arith.constant 10 : index
    %c0_334 = arith.constant 0 : index
    %c0_335 = arith.constant 0 : index
    %293 = vector.load %arg7[%c10_333, %c0_334, %c0_335] : memref<16x2x128xf32, #tpu.memory_space<vmem>>, vector<1x2x128xf32>
    %294 = vector.shape_cast %293 : vector<1x2x128xf32> to vector<2x128xf32>
    %c10_336 = arith.constant 10 : index
    %c6_337 = arith.constant 6 : index
    %c0_338 = arith.constant 0 : index
    %295 = vector.load %arg8[%c10_336, %c6_337, %c0_338] : memref<16x8x128xf32, #tpu.memory_space<vmem>>, vector<1x2x128xf32>
    %296 = vector.shape_cast %295 : vector<1x2x128xf32> to vector<2x128xf32>
    %297 = vector.shape_cast %294 : vector<2x128xf32> to vector<1x2x128xf32>
    tpu.vector_store %arg8[%c10_336, %c6_337, %c0_338], %297 {strides = array<i32>} : memref<16x8x128xf32, #tpu.memory_space<vmem>>, vector<1x2x128xf32>,
    %c11_339 = arith.constant 11 : index
    %c0_340 = arith.constant 0 : index
    %c0_341 = arith.constant 0 : index
    %298 = vector.load %arg7[%c11_339, %c0_340, %c0_341] : memref<16x2x128xf32, #tpu.memory_space<vmem>>, vector<1x2x128xf32>
    %299 = vector.shape_cast %298 : vector<1x2x128xf32> to vector<2x128xf32>
    %c11_342 = arith.constant 11 : index
    %c6_343 = arith.constant 6 : index
    %c0_344 = arith.constant 0 : index
    %300 = vector.load %arg8[%c11_342, %c6_343, %c0_344] : memref<16x8x128xf32, #tpu.memory_space<vmem>>, vector<1x2x128xf32>
    %301 = vector.shape_cast %300 : vector<1x2x128xf32> to vector<2x128xf32>
    %302 = vector.shape_cast %299 : vector<2x128xf32> to vector<1x2x128xf32>
    tpu.vector_store %arg8[%c11_342, %c6_343, %c0_344], %302 {strides = array<i32>} : memref<16x8x128xf32, #tpu.memory_space<vmem>>, vector<1x2x128xf32>,
    %c12_345 = arith.constant 12 : index
    %c0_346 = arith.constant 0 : index
    %c0_347 = arith.constant 0 : index
    %303 = vector.load %arg7[%c12_345, %c0_346, %c0_347] : memref<16x2x128xf32, #tpu.memory_space<vmem>>, vector<1x2x128xf32>
    %304 = vector.shape_cast %303 : vector<1x2x128xf32> to vector<2x128xf32>
    %c12_348 = arith.constant 12 : index
    %c6_349 = arith.constant 6 : index
    %c0_350 = arith.constant 0 : index
    %305 = vector.load %arg8[%c12_348, %c6_349, %c0_350] : memref<16x8x128xf32, #tpu.memory_space<vmem>>, vector<1x2x128xf32>
    %306 = vector.shape_cast %305 : vector<1x2x128xf32> to vector<2x128xf32>
    %307 = vector.shape_cast %304 : vector<2x128xf32> to vector<1x2x128xf32>
    tpu.vector_store %arg8[%c12_348, %c6_349, %c0_350], %307 {strides = array<i32>} : memref<16x8x128xf32, #tpu.memory_space<vmem>>, vector<1x2x128xf32>,
    %c13_351 = arith.constant 13 : index
    %c0_352 = arith.constant 0 : index
    %c0_353 = arith.constant 0 : index
    %308 = vector.load %arg7[%c13_351, %c0_352, %c0_353] : memref<16x2x128xf32, #tpu.memory_space<vmem>>, vector<1x2x128xf32>
    %309 = vector.shape_cast %308 : vector<1x2x128xf32> to vector<2x128xf32>
    %c13_354 = arith.constant 13 : index
    %c6_355 = arith.constant 6 : index
    %c0_356 = arith.constant 0 : index
    %310 = vector.load %arg8[%c13_354, %c6_355, %c0_356] : memref<16x8x128xf32, #tpu.memory_space<vmem>>, vector<1x2x128xf32>
    %311 = vector.shape_cast %310 : vector<1x2x128xf32> to vector<2x128xf32>
    %312 = vector.shape_cast %309 : vector<2x128xf32> to vector<1x2x128xf32>
    tpu.vector_store %arg8[%c13_354, %c6_355, %c0_356], %312 {strides = array<i32>} : memref<16x8x128xf32, #tpu.memory_space<vmem>>, vector<1x2x128xf32>,
    %c14_357 = arith.constant 14 : index
    %c0_358 = arith.constant 0 : index
    %c0_359 = arith.constant 0 : index
    %313 = vector.load %arg7[%c14_357, %c0_358, %c0_359] : memref<16x2x128xf32, #tpu.memory_space<vmem>>, vector<1x2x128xf32>
    %314 = vector.shape_cast %313 : vector<1x2x128xf32> to vector<2x128xf32>
    %c14_360 = arith.constant 14 : index
    %c6_361 = arith.constant 6 : index
    %c0_362 = arith.constant 0 : index
    %315 = vector.load %arg8[%c14_360, %c6_361, %c0_362] : memref<16x8x128xf32, #tpu.memory_space<vmem>>, vector<1x2x128xf32>
    %316 = vector.shape_cast %315 : vector<1x2x128xf32> to vector<2x128xf32>
    %317 = vector.shape_cast %314 : vector<2x128xf32> to vector<1x2x128xf32>
    tpu.vector_store %arg8[%c14_360, %c6_361, %c0_362], %317 {strides = array<i32>} : memref<16x8x128xf32, #tpu.memory_space<vmem>>, vector<1x2x128xf32>,
    %c15_363 = arith.constant 15 : index
    %c0_364 = arith.constant 0 : index
    %c0_365 = arith.constant 0 : index
    %318 = vector.load %arg7[%c15_363, %c0_364, %c0_365] : memref<16x2x128xf32, #tpu.memory_space<vmem>>, vector<1x2x128xf32>
    %319 = vector.shape_cast %318 : vector<1x2x128xf32> to vector<2x128xf32>
    %c15_366 = arith.constant 15 : index
    %c6_367 = arith.constant 6 : index
    %c0_368 = arith.constant 0 : index
    %320 = vector.load %arg8[%c15_366, %c6_367, %c0_368] : memref<16x8x128xf32, #tpu.memory_space<vmem>>, vector<1x2x128xf32>
    %321 = vector.shape_cast %320 : vector<1x2x128xf32> to vector<2x128xf32>
    %322 = vector.shape_cast %319 : vector<2x128xf32> to vector<1x2x128xf32>
    tpu.vector_store %arg8[%c15_366, %c6_367, %c0_368], %322 {strides = array<i32>} : memref<16x8x128xf32, #tpu.memory_space<vmem>>, vector<1x2x128xf32>,
    %c0_369 = arith.constant 0 : index
    %c0_370 = arith.constant 0 : index
    %c0_371 = arith.constant 0 : index
    %323 = vector.load %arg8[%c0_369, %c0_370, %c0_371] : memref<16x8x128xf32, #tpu.memory_space<vmem>>, vector<16x8x128xf32>
    %324 = vector.shape_cast %323 : vector<16x8x128xf32> to vector<128x128xf32>
    %325 = arith.truncf %324 : vector<128x128xf32> to vector<128x128xbf16>
    %c0_372 = arith.constant 0 : index
    %c0_373 = arith.constant 0 : index
    %326 = vector.load %arg3[%c0_372, %c0_373] : memref<128x128xbf16, #tpu.memory_space<vmem>>, vector<128x128xbf16>
    %cst_374 = arith.constant dense<0.000000e+00> : vector<128x128xf32>
    %327 = tpu.matmul %325, %326, %cst_374 {dimension_numbers = #tpu.dot_dimension_numbers<[1], [0], [0], [1], [0, 0, 1, 1], [], []>} : vector<128x128xbf16>, vector<128x128xbf16>, vector<128x128xf32> -> vector<128x128xf32>
    %c0_375 = arith.constant 0 : index
    %c0_376 = arith.constant 0 : index
    %328 = vector.load %arg5[%c0_375, %c0_376] : memref<1x128xf32, #tpu.memory_space<vmem>>, vector<1x128xf32>
    %329 = vector.broadcast %328 : vector<1x128xf32> to vector<128x128xf32>
    %330 = arith.addf %327, %329 : vector<128x128xf32>
    %331 = vector.shape_cast %330 : vector<128x128xf32> to vector<16x8x128xf32>
    %c0_377 = arith.constant 0 : index
    %c0_378 = arith.constant 0 : index
    %c0_379 = arith.constant 0 : index
    %332 = vector.load %arg9[%c0_377, %c0_378, %c0_379] : memref<16x8x128xf32, #tpu.memory_space<vmem>>, vector<16x8x128xf32>
    tpu.vector_store %arg9[%c0_377, %c0_378, %c0_379], %331 {strides = array<i32>} : memref<16x8x128xf32, #tpu.memory_space<vmem>>, vector<16x8x128xf32>,
    %cst_380 = arith.constant 0.000000e+00 : f32
    %333 = vector.broadcast %cst_380 : f32 to vector<8x32xf32>
    %cst_381 = arith.constant 0.000000e+00 : f32
    %334 = vector.broadcast %cst_381 : f32 to vector<8x32xf32>
    %c0_382 = arith.constant 0 : index
    %c0_383 = arith.constant 0 : index
    %c0_384 = arith.constant 0 : index
    %335 = vector.load %arg9[%c0_382, %c0_383, %c0_384] : memref<16x8x128xf32, #tpu.memory_space<vmem>>, vector<1x8x128xf32>
    %336 = vector.shape_cast %335 : vector<1x8x128xf32> to vector<8x128xf32>
    %337 = arith.truncf %333 : vector<8x32xf32> to vector<8x32xbf16>
    %c0_385 = arith.constant 0 : index
    %c0_386 = arith.constant 0 : index
    %338 = vector.load %arg4[%c0_385, %c0_386] : memref<32x128xbf16, #tpu.memory_space<vmem>>, vector<32x128xbf16>
    %cst_387 = arith.constant dense<0.000000e+00> : vector<8x128xf32>
    %339 = tpu.matmul %337, %338, %cst_387 {dimension_numbers = #tpu.dot_dimension_numbers<[1], [0], [0], [1], [0, 0, 1, 1], [], []>} : vector<8x32xbf16>, vector<32x128xbf16>, vector<8x128xf32> -> vector<8x128xf32>
    %340 = arith.addf %336, %339 : vector<8x128xf32>
    %341 = vector.extract_strided_slice %340 {offsets = [0, 0], sizes = [8, 32], strides = [1, 1]} : vector<8x128xf32> to vector<8x32xf32>
    %342 = arith.negf %341 : vector<8x32xf32>
    %343 = math.exp %342 : vector<8x32xf32>
    %cst_388 = arith.constant 1.000000e+00 : f32
    %344 = vector.broadcast %cst_388 : f32 to vector<8x32xf32>
    %345 = arith.addf %344, %343 : vector<8x32xf32>
    %346 = arith.divf %344, %345 : vector<8x32xf32>
    %347 = vector.extract_strided_slice %340 {offsets = [0, 32], sizes = [8, 32], strides = [1, 1]} : vector<8x128xf32> to vector<8x32xf32>
    %348 = arith.negf %347 : vector<8x32xf32>
    %349 = math.exp %348 : vector<8x32xf32>
    %cst_389 = arith.constant 1.000000e+00 : f32
    %350 = vector.broadcast %cst_389 : f32 to vector<8x32xf32>
    %351 = arith.addf %350, %349 : vector<8x32xf32>
    %352 = arith.divf %350, %351 : vector<8x32xf32>
    %353 = vector.extract_strided_slice %340 {offsets = [0, 64], sizes = [8, 32], strides = [1, 1]} : vector<8x128xf32> to vector<8x32xf32>
    %354 = math.tanh %353 : vector<8x32xf32>
    %355 = vector.extract_strided_slice %340 {offsets = [0, 96], sizes = [8, 32], strides = [1, 1]} : vector<8x128xf32> to vector<8x32xf32>
    %356 = arith.negf %355 : vector<8x32xf32>
    %357 = math.exp %356 : vector<8x32xf32>
    %cst_390 = arith.constant 1.000000e+00 : f32
    %358 = vector.broadcast %cst_390 : f32 to vector<8x32xf32>
    %359 = arith.addf %358, %357 : vector<8x32xf32>
    %360 = arith.divf %358, %359 : vector<8x32xf32>
    %361 = arith.mulf %352, %334 : vector<8x32xf32>
    %362 = arith.mulf %346, %354 : vector<8x32xf32>
    %363 = arith.addf %361, %362 : vector<8x32xf32>
    %364 = math.tanh %363 : vector<8x32xf32>
    %365 = arith.mulf %360, %364 : vector<8x32xf32>
    %c0_391 = arith.constant 0 : index
    %c0_392 = arith.constant 0 : index
    %c0_393 = arith.constant 0 : index
    %366 = vector.load %arg6[%c0_391, %c0_392, %c0_393] : memref<16x8x32xf32, #tpu.memory_space<vmem>>, vector<1x8x32xf32>
    %367 = vector.shape_cast %366 : vector<1x8x32xf32> to vector<8x32xf32>
    %368 = vector.shape_cast %365 : vector<8x32xf32> to vector<1x8x32xf32>
    tpu.vector_store %arg6[%c0_391, %c0_392, %c0_393], %368 {strides = array<i32>} : memref<16x8x32xf32, #tpu.memory_space<vmem>>, vector<1x8x32xf32>,
    %c1_394 = arith.constant 1 : index
    %c0_395 = arith.constant 0 : index
    %c0_396 = arith.constant 0 : index
    %369 = vector.load %arg9[%c1_394, %c0_395, %c0_396] : memref<16x8x128xf32, #tpu.memory_space<vmem>>, vector<1x8x128xf32>
    %370 = vector.shape_cast %369 : vector<1x8x128xf32> to vector<8x128xf32>
    %371 = arith.truncf %365 : vector<8x32xf32> to vector<8x32xbf16>
    %c0_397 = arith.constant 0 : index
    %c0_398 = arith.constant 0 : index
    %372 = vector.load %arg4[%c0_397, %c0_398] : memref<32x128xbf16, #tpu.memory_space<vmem>>, vector<32x128xbf16>
    %cst_399 = arith.constant dense<0.000000e+00> : vector<8x128xf32>
    %373 = tpu.matmul %371, %372, %cst_399 {dimension_numbers = #tpu.dot_dimension_numbers<[1], [0], [0], [1], [0, 0, 1, 1], [], []>} : vector<8x32xbf16>, vector<32x128xbf16>, vector<8x128xf32> -> vector<8x128xf32>
    %374 = arith.addf %370, %373 : vector<8x128xf32>
    %375 = vector.extract_strided_slice %374 {offsets = [0, 0], sizes = [8, 32], strides = [1, 1]} : vector<8x128xf32> to vector<8x32xf32>
    %376 = arith.negf %375 : vector<8x32xf32>
    %377 = math.exp %376 : vector<8x32xf32>
    %cst_400 = arith.constant 1.000000e+00 : f32
    %378 = vector.broadcast %cst_400 : f32 to vector<8x32xf32>
    %379 = arith.addf %378, %377 : vector<8x32xf32>
    %380 = arith.divf %378, %379 : vector<8x32xf32>
    %381 = vector.extract_strided_slice %374 {offsets = [0, 32], sizes = [8, 32], strides = [1, 1]} : vector<8x128xf32> to vector<8x32xf32>
    %382 = arith.negf %381 : vector<8x32xf32>
    %383 = math.exp %382 : vector<8x32xf32>
    %cst_401 = arith.constant 1.000000e+00 : f32
    %384 = vector.broadcast %cst_401 : f32 to vector<8x32xf32>
    %385 = arith.addf %384, %383 : vector<8x32xf32>
    %386 = arith.divf %384, %385 : vector<8x32xf32>
    %387 = vector.extract_strided_slice %374 {offsets = [0, 64], sizes = [8, 32], strides = [1, 1]} : vector<8x128xf32> to vector<8x32xf32>
    %388 = math.tanh %387 : vector<8x32xf32>
    %389 = vector.extract_strided_slice %374 {offsets = [0, 96], sizes = [8, 32], strides = [1, 1]} : vector<8x128xf32> to vector<8x32xf32>
    %390 = arith.negf %389 : vector<8x32xf32>
    %391 = math.exp %390 : vector<8x32xf32>
    %cst_402 = arith.constant 1.000000e+00 : f32
    %392 = vector.broadcast %cst_402 : f32 to vector<8x32xf32>
    %393 = arith.addf %392, %391 : vector<8x32xf32>
    %394 = arith.divf %392, %393 : vector<8x32xf32>
    %395 = arith.mulf %386, %363 : vector<8x32xf32>
    %396 = arith.mulf %380, %388 : vector<8x32xf32>
    %397 = arith.addf %395, %396 : vector<8x32xf32>
    %398 = math.tanh %397 : vector<8x32xf32>
    %399 = arith.mulf %394, %398 : vector<8x32xf32>
    %c1_403 = arith.constant 1 : index
    %c0_404 = arith.constant 0 : index
    %c0_405 = arith.constant 0 : index
    %400 = vector.load %arg6[%c1_403, %c0_404, %c0_405] : memref<16x8x32xf32, #tpu.memory_space<vmem>>, vector<1x8x32xf32>
    %401 = vector.shape_cast %400 : vector<1x8x32xf32> to vector<8x32xf32>
    %402 = vector.shape_cast %399 : vector<8x32xf32> to vector<1x8x32xf32>
    tpu.vector_store %arg6[%c1_403, %c0_404, %c0_405], %402 {strides = array<i32>} : memref<16x8x32xf32, #tpu.memory_space<vmem>>, vector<1x8x32xf32>,
    %c2_406 = arith.constant 2 : index
    %c0_407 = arith.constant 0 : index
    %c0_408 = arith.constant 0 : index
    %403 = vector.load %arg9[%c2_406, %c0_407, %c0_408] : memref<16x8x128xf32, #tpu.memory_space<vmem>>, vector<1x8x128xf32>
    %404 = vector.shape_cast %403 : vector<1x8x128xf32> to vector<8x128xf32>
    %405 = arith.truncf %399 : vector<8x32xf32> to vector<8x32xbf16>
    %c0_409 = arith.constant 0 : index
    %c0_410 = arith.constant 0 : index
    %406 = vector.load %arg4[%c0_409, %c0_410] : memref<32x128xbf16, #tpu.memory_space<vmem>>, vector<32x128xbf16>
    %cst_411 = arith.constant dense<0.000000e+00> : vector<8x128xf32>
    %407 = tpu.matmul %405, %406, %cst_411 {dimension_numbers = #tpu.dot_dimension_numbers<[1], [0], [0], [1], [0, 0, 1, 1], [], []>} : vector<8x32xbf16>, vector<32x128xbf16>, vector<8x128xf32> -> vector<8x128xf32>
    %408 = arith.addf %404, %407 : vector<8x128xf32>
    %409 = vector.extract_strided_slice %408 {offsets = [0, 0], sizes = [8, 32], strides = [1, 1]} : vector<8x128xf32> to vector<8x32xf32>
    %410 = arith.negf %409 : vector<8x32xf32>
    %411 = math.exp %410 : vector<8x32xf32>
    %cst_412 = arith.constant 1.000000e+00 : f32
    %412 = vector.broadcast %cst_412 : f32 to vector<8x32xf32>
    %413 = arith.addf %412, %411 : vector<8x32xf32>
    %414 = arith.divf %412, %413 : vector<8x32xf32>
    %415 = vector.extract_strided_slice %408 {offsets = [0, 32], sizes = [8, 32], strides = [1, 1]} : vector<8x128xf32> to vector<8x32xf32>
    %416 = arith.negf %415 : vector<8x32xf32>
    %417 = math.exp %416 : vector<8x32xf32>
    %cst_413 = arith.constant 1.000000e+00 : f32
    %418 = vector.broadcast %cst_413 : f32 to vector<8x32xf32>
    %419 = arith.addf %418, %417 : vector<8x32xf32>
    %420 = arith.divf %418, %419 : vector<8x32xf32>
    %421 = vector.extract_strided_slice %408 {offsets = [0, 64], sizes = [8, 32], strides = [1, 1]} : vector<8x128xf32> to vector<8x32xf32>
    %422 = math.tanh %421 : vector<8x32xf32>
    %423 = vector.extract_strided_slice %408 {offsets = [0, 96], sizes = [8, 32], strides = [1, 1]} : vector<8x128xf32> to vector<8x32xf32>
    %424 = arith.negf %423 : vector<8x32xf32>
    %425 = math.exp %424 : vector<8x32xf32>
    %cst_414 = arith.constant 1.000000e+00 : f32
    %426 = vector.broadcast %cst_414 : f32 to vector<8x32xf32>
    %427 = arith.addf %426, %425 : vector<8x32xf32>
    %428 = arith.divf %426, %427 : vector<8x32xf32>
    %429 = arith.mulf %420, %397 : vector<8x32xf32>
    %430 = arith.mulf %414, %422 : vector<8x32xf32>
    %431 = arith.addf %429, %430 : vector<8x32xf32>
    %432 = math.tanh %431 : vector<8x32xf32>
    %433 = arith.mulf %428, %432 : vector<8x32xf32>
    %c2_415 = arith.constant 2 : index
    %c0_416 = arith.constant 0 : index
    %c0_417 = arith.constant 0 : index
    %434 = vector.load %arg6[%c2_415, %c0_416, %c0_417] : memref<16x8x32xf32, #tpu.memory_space<vmem>>, vector<1x8x32xf32>
    %435 = vector.shape_cast %434 : vector<1x8x32xf32> to vector<8x32xf32>
    %436 = vector.shape_cast %433 : vector<8x32xf32> to vector<1x8x32xf32>
    tpu.vector_store %arg6[%c2_415, %c0_416, %c0_417], %436 {strides = array<i32>} : memref<16x8x32xf32, #tpu.memory_space<vmem>>, vector<1x8x32xf32>,
    %c3_418 = arith.constant 3 : index
    %c0_419 = arith.constant 0 : index
    %c0_420 = arith.constant 0 : index
    %437 = vector.load %arg9[%c3_418, %c0_419, %c0_420] : memref<16x8x128xf32, #tpu.memory_space<vmem>>, vector<1x8x128xf32>
    %438 = vector.shape_cast %437 : vector<1x8x128xf32> to vector<8x128xf32>
    %439 = arith.truncf %433 : vector<8x32xf32> to vector<8x32xbf16>
    %c0_421 = arith.constant 0 : index
    %c0_422 = arith.constant 0 : index
    %440 = vector.load %arg4[%c0_421, %c0_422] : memref<32x128xbf16, #tpu.memory_space<vmem>>, vector<32x128xbf16>
    %cst_423 = arith.constant dense<0.000000e+00> : vector<8x128xf32>
    %441 = tpu.matmul %439, %440, %cst_423 {dimension_numbers = #tpu.dot_dimension_numbers<[1], [0], [0], [1], [0, 0, 1, 1], [], []>} : vector<8x32xbf16>, vector<32x128xbf16>, vector<8x128xf32> -> vector<8x128xf32>
    %442 = arith.addf %438, %441 : vector<8x128xf32>
    %443 = vector.extract_strided_slice %442 {offsets = [0, 0], sizes = [8, 32], strides = [1, 1]} : vector<8x128xf32> to vector<8x32xf32>
    %444 = arith.negf %443 : vector<8x32xf32>
    %445 = math.exp %444 : vector<8x32xf32>
    %cst_424 = arith.constant 1.000000e+00 : f32
    %446 = vector.broadcast %cst_424 : f32 to vector<8x32xf32>
    %447 = arith.addf %446, %445 : vector<8x32xf32>
    %448 = arith.divf %446, %447 : vector<8x32xf32>
    %449 = vector.extract_strided_slice %442 {offsets = [0, 32], sizes = [8, 32], strides = [1, 1]} : vector<8x128xf32> to vector<8x32xf32>
    %450 = arith.negf %449 : vector<8x32xf32>
    %451 = math.exp %450 : vector<8x32xf32>
    %cst_425 = arith.constant 1.000000e+00 : f32
    %452 = vector.broadcast %cst_425 : f32 to vector<8x32xf32>
    %453 = arith.addf %452, %451 : vector<8x32xf32>
    %454 = arith.divf %452, %453 : vector<8x32xf32>
    %455 = vector.extract_strided_slice %442 {offsets = [0, 64], sizes = [8, 32], strides = [1, 1]} : vector<8x128xf32> to vector<8x32xf32>
    %456 = math.tanh %455 : vector<8x32xf32>
    %457 = vector.extract_strided_slice %442 {offsets = [0, 96], sizes = [8, 32], strides = [1, 1]} : vector<8x128xf32> to vector<8x32xf32>
    %458 = arith.negf %457 : vector<8x32xf32>
    %459 = math.exp %458 : vector<8x32xf32>
    %cst_426 = arith.constant 1.000000e+00 : f32
    %460 = vector.broadcast %cst_426 : f32 to vector<8x32xf32>
    %461 = arith.addf %460, %459 : vector<8x32xf32>
    %462 = arith.divf %460, %461 : vector<8x32xf32>
    %463 = arith.mulf %454, %431 : vector<8x32xf32>
    %464 = arith.mulf %448, %456 : vector<8x32xf32>
    %465 = arith.addf %463, %464 : vector<8x32xf32>
    %466 = math.tanh %465 : vector<8x32xf32>
    %467 = arith.mulf %462, %466 : vector<8x32xf32>
    %c3_427 = arith.constant 3 : index
    %c0_428 = arith.constant 0 : index
    %c0_429 = arith.constant 0 : index
    %468 = vector.load %arg6[%c3_427, %c0_428, %c0_429] : memref<16x8x32xf32, #tpu.memory_space<vmem>>, vector<1x8x32xf32>
    %469 = vector.shape_cast %468 : vector<1x8x32xf32> to vector<8x32xf32>
    %470 = vector.shape_cast %467 : vector<8x32xf32> to vector<1x8x32xf32>
    tpu.vector_store %arg6[%c3_427, %c0_428, %c0_429], %470 {strides = array<i32>} : memref<16x8x32xf32, #tpu.memory_space<vmem>>, vector<1x8x32xf32>,
    %c4_430 = arith.constant 4 : index
    %c0_431 = arith.constant 0 : index
    %c0_432 = arith.constant 0 : index
    %471 = vector.load %arg9[%c4_430, %c0_431, %c0_432] : memref<16x8x128xf32, #tpu.memory_space<vmem>>, vector<1x8x128xf32>
    %472 = vector.shape_cast %471 : vector<1x8x128xf32> to vector<8x128xf32>
    %473 = arith.truncf %467 : vector<8x32xf32> to vector<8x32xbf16>
    %c0_433 = arith.constant 0 : index
    %c0_434 = arith.constant 0 : index
    %474 = vector.load %arg4[%c0_433, %c0_434] : memref<32x128xbf16, #tpu.memory_space<vmem>>, vector<32x128xbf16>
    %cst_435 = arith.constant dense<0.000000e+00> : vector<8x128xf32>
    %475 = tpu.matmul %473, %474, %cst_435 {dimension_numbers = #tpu.dot_dimension_numbers<[1], [0], [0], [1], [0, 0, 1, 1], [], []>} : vector<8x32xbf16>, vector<32x128xbf16>, vector<8x128xf32> -> vector<8x128xf32>
    %476 = arith.addf %472, %475 : vector<8x128xf32>
    %477 = vector.extract_strided_slice %476 {offsets = [0, 0], sizes = [8, 32], strides = [1, 1]} : vector<8x128xf32> to vector<8x32xf32>
    %478 = arith.negf %477 : vector<8x32xf32>
    %479 = math.exp %478 : vector<8x32xf32>
    %cst_436 = arith.constant 1.000000e+00 : f32
    %480 = vector.broadcast %cst_436 : f32 to vector<8x32xf32>
    %481 = arith.addf %480, %479 : vector<8x32xf32>
    %482 = arith.divf %480, %481 : vector<8x32xf32>
    %483 = vector.extract_strided_slice %476 {offsets = [0, 32], sizes = [8, 32], strides = [1, 1]} : vector<8x128xf32> to vector<8x32xf32>
    %484 = arith.negf %483 : vector<8x32xf32>
    %485 = math.exp %484 : vector<8x32xf32>
    %cst_437 = arith.constant 1.000000e+00 : f32
    %486 = vector.broadcast %cst_437 : f32 to vector<8x32xf32>
    %487 = arith.addf %486, %485 : vector<8x32xf32>
    %488 = arith.divf %486, %487 : vector<8x32xf32>
    %489 = vector.extract_strided_slice %476 {offsets = [0, 64], sizes = [8, 32], strides = [1, 1]} : vector<8x128xf32> to vector<8x32xf32>
    %490 = math.tanh %489 : vector<8x32xf32>
    %491 = vector.extract_strided_slice %476 {offsets = [0, 96], sizes = [8, 32], strides = [1, 1]} : vector<8x128xf32> to vector<8x32xf32>
    %492 = arith.negf %491 : vector<8x32xf32>
    %493 = math.exp %492 : vector<8x32xf32>
    %cst_438 = arith.constant 1.000000e+00 : f32
    %494 = vector.broadcast %cst_438 : f32 to vector<8x32xf32>
    %495 = arith.addf %494, %493 : vector<8x32xf32>
    %496 = arith.divf %494, %495 : vector<8x32xf32>
    %497 = arith.mulf %488, %465 : vector<8x32xf32>
    %498 = arith.mulf %482, %490 : vector<8x32xf32>
    %499 = arith.addf %497, %498 : vector<8x32xf32>
    %500 = math.tanh %499 : vector<8x32xf32>
    %501 = arith.mulf %496, %500 : vector<8x32xf32>
    %c4_439 = arith.constant 4 : index
    %c0_440 = arith.constant 0 : index
    %c0_441 = arith.constant 0 : index
    %502 = vector.load %arg6[%c4_439, %c0_440, %c0_441] : memref<16x8x32xf32, #tpu.memory_space<vmem>>, vector<1x8x32xf32>
    %503 = vector.shape_cast %502 : vector<1x8x32xf32> to vector<8x32xf32>
    %504 = vector.shape_cast %501 : vector<8x32xf32> to vector<1x8x32xf32>
    tpu.vector_store %arg6[%c4_439, %c0_440, %c0_441], %504 {strides = array<i32>} : memref<16x8x32xf32, #tpu.memory_space<vmem>>, vector<1x8x32xf32>,
    %c5_442 = arith.constant 5 : index
    %c0_443 = arith.constant 0 : index
    %c0_444 = arith.constant 0 : index
    %505 = vector.load %arg9[%c5_442, %c0_443, %c0_444] : memref<16x8x128xf32, #tpu.memory_space<vmem>>, vector<1x8x128xf32>
    %506 = vector.shape_cast %505 : vector<1x8x128xf32> to vector<8x128xf32>
    %507 = arith.truncf %501 : vector<8x32xf32> to vector<8x32xbf16>
    %c0_445 = arith.constant 0 : index
    %c0_446 = arith.constant 0 : index
    %508 = vector.load %arg4[%c0_445, %c0_446] : memref<32x128xbf16, #tpu.memory_space<vmem>>, vector<32x128xbf16>
    %cst_447 = arith.constant dense<0.000000e+00> : vector<8x128xf32>
    %509 = tpu.matmul %507, %508, %cst_447 {dimension_numbers = #tpu.dot_dimension_numbers<[1], [0], [0], [1], [0, 0, 1, 1], [], []>} : vector<8x32xbf16>, vector<32x128xbf16>, vector<8x128xf32> -> vector<8x128xf32>
    %510 = arith.addf %506, %509 : vector<8x128xf32>
    %511 = vector.extract_strided_slice %510 {offsets = [0, 0], sizes = [8, 32], strides = [1, 1]} : vector<8x128xf32> to vector<8x32xf32>
    %512 = arith.negf %511 : vector<8x32xf32>
    %513 = math.exp %512 : vector<8x32xf32>
    %cst_448 = arith.constant 1.000000e+00 : f32
    %514 = vector.broadcast %cst_448 : f32 to vector<8x32xf32>
    %515 = arith.addf %514, %513 : vector<8x32xf32>
    %516 = arith.divf %514, %515 : vector<8x32xf32>
    %517 = vector.extract_strided_slice %510 {offsets = [0, 32], sizes = [8, 32], strides = [1, 1]} : vector<8x128xf32> to vector<8x32xf32>
    %518 = arith.negf %517 : vector<8x32xf32>
    %519 = math.exp %518 : vector<8x32xf32>
    %cst_449 = arith.constant 1.000000e+00 : f32
    %520 = vector.broadcast %cst_449 : f32 to vector<8x32xf32>
    %521 = arith.addf %520, %519 : vector<8x32xf32>
    %522 = arith.divf %520, %521 : vector<8x32xf32>
    %523 = vector.extract_strided_slice %510 {offsets = [0, 64], sizes = [8, 32], strides = [1, 1]} : vector<8x128xf32> to vector<8x32xf32>
    %524 = math.tanh %523 : vector<8x32xf32>
    %525 = vector.extract_strided_slice %510 {offsets = [0, 96], sizes = [8, 32], strides = [1, 1]} : vector<8x128xf32> to vector<8x32xf32>
    %526 = arith.negf %525 : vector<8x32xf32>
    %527 = math.exp %526 : vector<8x32xf32>
    %cst_450 = arith.constant 1.000000e+00 : f32
    %528 = vector.broadcast %cst_450 : f32 to vector<8x32xf32>
    %529 = arith.addf %528, %527 : vector<8x32xf32>
    %530 = arith.divf %528, %529 : vector<8x32xf32>
    %531 = arith.mulf %522, %499 : vector<8x32xf32>
    %532 = arith.mulf %516, %524 : vector<8x32xf32>
    %533 = arith.addf %531, %532 : vector<8x32xf32>
    %534 = math.tanh %533 : vector<8x32xf32>
    %535 = arith.mulf %530, %534 : vector<8x32xf32>
    %c5_451 = arith.constant 5 : index
    %c0_452 = arith.constant 0 : index
    %c0_453 = arith.constant 0 : index
    %536 = vector.load %arg6[%c5_451, %c0_452, %c0_453] : memref<16x8x32xf32, #tpu.memory_space<vmem>>, vector<1x8x32xf32>
    %537 = vector.shape_cast %536 : vector<1x8x32xf32> to vector<8x32xf32>
    %538 = vector.shape_cast %535 : vector<8x32xf32> to vector<1x8x32xf32>
    tpu.vector_store %arg6[%c5_451, %c0_452, %c0_453], %538 {strides = array<i32>} : memref<16x8x32xf32, #tpu.memory_space<vmem>>, vector<1x8x32xf32>,
    %c6_454 = arith.constant 6 : index
    %c0_455 = arith.constant 0 : index
    %c0_456 = arith.constant 0 : index
    %539 = vector.load %arg9[%c6_454, %c0_455, %c0_456] : memref<16x8x128xf32, #tpu.memory_space<vmem>>, vector<1x8x128xf32>
    %540 = vector.shape_cast %539 : vector<1x8x128xf32> to vector<8x128xf32>
    %541 = arith.truncf %535 : vector<8x32xf32> to vector<8x32xbf16>
    %c0_457 = arith.constant 0 : index
    %c0_458 = arith.constant 0 : index
    %542 = vector.load %arg4[%c0_457, %c0_458] : memref<32x128xbf16, #tpu.memory_space<vmem>>, vector<32x128xbf16>
    %cst_459 = arith.constant dense<0.000000e+00> : vector<8x128xf32>
    %543 = tpu.matmul %541, %542, %cst_459 {dimension_numbers = #tpu.dot_dimension_numbers<[1], [0], [0], [1], [0, 0, 1, 1], [], []>} : vector<8x32xbf16>, vector<32x128xbf16>, vector<8x128xf32> -> vector<8x128xf32>
    %544 = arith.addf %540, %543 : vector<8x128xf32>
    %545 = vector.extract_strided_slice %544 {offsets = [0, 0], sizes = [8, 32], strides = [1, 1]} : vector<8x128xf32> to vector<8x32xf32>
    %546 = arith.negf %545 : vector<8x32xf32>
    %547 = math.exp %546 : vector<8x32xf32>
    %cst_460 = arith.constant 1.000000e+00 : f32
    %548 = vector.broadcast %cst_460 : f32 to vector<8x32xf32>
    %549 = arith.addf %548, %547 : vector<8x32xf32>
    %550 = arith.divf %548, %549 : vector<8x32xf32>
    %551 = vector.extract_strided_slice %544 {offsets = [0, 32], sizes = [8, 32], strides = [1, 1]} : vector<8x128xf32> to vector<8x32xf32>
    %552 = arith.negf %551 : vector<8x32xf32>
    %553 = math.exp %552 : vector<8x32xf32>
    %cst_461 = arith.constant 1.000000e+00 : f32
    %554 = vector.broadcast %cst_461 : f32 to vector<8x32xf32>
    %555 = arith.addf %554, %553 : vector<8x32xf32>
    %556 = arith.divf %554, %555 : vector<8x32xf32>
    %557 = vector.extract_strided_slice %544 {offsets = [0, 64], sizes = [8, 32], strides = [1, 1]} : vector<8x128xf32> to vector<8x32xf32>
    %558 = math.tanh %557 : vector<8x32xf32>
    %559 = vector.extract_strided_slice %544 {offsets = [0, 96], sizes = [8, 32], strides = [1, 1]} : vector<8x128xf32> to vector<8x32xf32>
    %560 = arith.negf %559 : vector<8x32xf32>
    %561 = math.exp %560 : vector<8x32xf32>
    %cst_462 = arith.constant 1.000000e+00 : f32
    %562 = vector.broadcast %cst_462 : f32 to vector<8x32xf32>
    %563 = arith.addf %562, %561 : vector<8x32xf32>
    %564 = arith.divf %562, %563 : vector<8x32xf32>
    %565 = arith.mulf %556, %533 : vector<8x32xf32>
    %566 = arith.mulf %550, %558 : vector<8x32xf32>
    %567 = arith.addf %565, %566 : vector<8x32xf32>
    %568 = math.tanh %567 : vector<8x32xf32>
    %569 = arith.mulf %564, %568 : vector<8x32xf32>
    %c6_463 = arith.constant 6 : index
    %c0_464 = arith.constant 0 : index
    %c0_465 = arith.constant 0 : index
    %570 = vector.load %arg6[%c6_463, %c0_464, %c0_465] : memref<16x8x32xf32, #tpu.memory_space<vmem>>, vector<1x8x32xf32>
    %571 = vector.shape_cast %570 : vector<1x8x32xf32> to vector<8x32xf32>
    %572 = vector.shape_cast %569 : vector<8x32xf32> to vector<1x8x32xf32>
    tpu.vector_store %arg6[%c6_463, %c0_464, %c0_465], %572 {strides = array<i32>} : memref<16x8x32xf32, #tpu.memory_space<vmem>>, vector<1x8x32xf32>,
    %c7_466 = arith.constant 7 : index
    %c0_467 = arith.constant 0 : index
    %c0_468 = arith.constant 0 : index
    %573 = vector.load %arg9[%c7_466, %c0_467, %c0_468] : memref<16x8x128xf32, #tpu.memory_space<vmem>>, vector<1x8x128xf32>
    %574 = vector.shape_cast %573 : vector<1x8x128xf32> to vector<8x128xf32>
    %575 = arith.truncf %569 : vector<8x32xf32> to vector<8x32xbf16>
    %c0_469 = arith.constant 0 : index
    %c0_470 = arith.constant 0 : index
    %576 = vector.load %arg4[%c0_469, %c0_470] : memref<32x128xbf16, #tpu.memory_space<vmem>>, vector<32x128xbf16>
    %cst_471 = arith.constant dense<0.000000e+00> : vector<8x128xf32>
    %577 = tpu.matmul %575, %576, %cst_471 {dimension_numbers = #tpu.dot_dimension_numbers<[1], [0], [0], [1], [0, 0, 1, 1], [], []>} : vector<8x32xbf16>, vector<32x128xbf16>, vector<8x128xf32> -> vector<8x128xf32>
    %578 = arith.addf %574, %577 : vector<8x128xf32>
    %579 = vector.extract_strided_slice %578 {offsets = [0, 0], sizes = [8, 32], strides = [1, 1]} : vector<8x128xf32> to vector<8x32xf32>
    %580 = arith.negf %579 : vector<8x32xf32>
    %581 = math.exp %580 : vector<8x32xf32>
    %cst_472 = arith.constant 1.000000e+00 : f32
    %582 = vector.broadcast %cst_472 : f32 to vector<8x32xf32>
    %583 = arith.addf %582, %581 : vector<8x32xf32>
    %584 = arith.divf %582, %583 : vector<8x32xf32>
    %585 = vector.extract_strided_slice %578 {offsets = [0, 32], sizes = [8, 32], strides = [1, 1]} : vector<8x128xf32> to vector<8x32xf32>
    %586 = arith.negf %585 : vector<8x32xf32>
    %587 = math.exp %586 : vector<8x32xf32>
    %cst_473 = arith.constant 1.000000e+00 : f32
    %588 = vector.broadcast %cst_473 : f32 to vector<8x32xf32>
    %589 = arith.addf %588, %587 : vector<8x32xf32>
    %590 = arith.divf %588, %589 : vector<8x32xf32>
    %591 = vector.extract_strided_slice %578 {offsets = [0, 64], sizes = [8, 32], strides = [1, 1]} : vector<8x128xf32> to vector<8x32xf32>
    %592 = math.tanh %591 : vector<8x32xf32>
    %593 = vector.extract_strided_slice %578 {offsets = [0, 96], sizes = [8, 32], strides = [1, 1]} : vector<8x128xf32> to vector<8x32xf32>
    %594 = arith.negf %593 : vector<8x32xf32>
    %595 = math.exp %594 : vector<8x32xf32>
    %cst_474 = arith.constant 1.000000e+00 : f32
    %596 = vector.broadcast %cst_474 : f32 to vector<8x32xf32>
    %597 = arith.addf %596, %595 : vector<8x32xf32>
    %598 = arith.divf %596, %597 : vector<8x32xf32>
    %599 = arith.mulf %590, %567 : vector<8x32xf32>
    %600 = arith.mulf %584, %592 : vector<8x32xf32>
    %601 = arith.addf %599, %600 : vector<8x32xf32>
    %602 = math.tanh %601 : vector<8x32xf32>
    %603 = arith.mulf %598, %602 : vector<8x32xf32>
    %c7_475 = arith.constant 7 : index
    %c0_476 = arith.constant 0 : index
    %c0_477 = arith.constant 0 : index
    %604 = vector.load %arg6[%c7_475, %c0_476, %c0_477] : memref<16x8x32xf32, #tpu.memory_space<vmem>>, vector<1x8x32xf32>
    %605 = vector.shape_cast %604 : vector<1x8x32xf32> to vector<8x32xf32>
    %606 = vector.shape_cast %603 : vector<8x32xf32> to vector<1x8x32xf32>
    tpu.vector_store %arg6[%c7_475, %c0_476, %c0_477], %606 {strides = array<i32>} : memref<16x8x32xf32, #tpu.memory_space<vmem>>, vector<1x8x32xf32>,
    %c8_478 = arith.constant 8 : index
    %c0_479 = arith.constant 0 : index
    %c0_480 = arith.constant 0 : index
    %607 = vector.load %arg9[%c8_478, %c0_479, %c0_480] : memref<16x8x128xf32, #tpu.memory_space<vmem>>, vector<1x8x128xf32>
    %608 = vector.shape_cast %607 : vector<1x8x128xf32> to vector<8x128xf32>
    %609 = arith.truncf %603 : vector<8x32xf32> to vector<8x32xbf16>
    %c0_481 = arith.constant 0 : index
    %c0_482 = arith.constant 0 : index
    %610 = vector.load %arg4[%c0_481, %c0_482] : memref<32x128xbf16, #tpu.memory_space<vmem>>, vector<32x128xbf16>
    %cst_483 = arith.constant dense<0.000000e+00> : vector<8x128xf32>
    %611 = tpu.matmul %609, %610, %cst_483 {dimension_numbers = #tpu.dot_dimension_numbers<[1], [0], [0], [1], [0, 0, 1, 1], [], []>} : vector<8x32xbf16>, vector<32x128xbf16>, vector<8x128xf32> -> vector<8x128xf32>
    %612 = arith.addf %608, %611 : vector<8x128xf32>
    %613 = vector.extract_strided_slice %612 {offsets = [0, 0], sizes = [8, 32], strides = [1, 1]} : vector<8x128xf32> to vector<8x32xf32>
    %614 = arith.negf %613 : vector<8x32xf32>
    %615 = math.exp %614 : vector<8x32xf32>
    %cst_484 = arith.constant 1.000000e+00 : f32
    %616 = vector.broadcast %cst_484 : f32 to vector<8x32xf32>
    %617 = arith.addf %616, %615 : vector<8x32xf32>
    %618 = arith.divf %616, %617 : vector<8x32xf32>
    %619 = vector.extract_strided_slice %612 {offsets = [0, 32], sizes = [8, 32], strides = [1, 1]} : vector<8x128xf32> to vector<8x32xf32>
    %620 = arith.negf %619 : vector<8x32xf32>
    %621 = math.exp %620 : vector<8x32xf32>
    %cst_485 = arith.constant 1.000000e+00 : f32
    %622 = vector.broadcast %cst_485 : f32 to vector<8x32xf32>
    %623 = arith.addf %622, %621 : vector<8x32xf32>
    %624 = arith.divf %622, %623 : vector<8x32xf32>
    %625 = vector.extract_strided_slice %612 {offsets = [0, 64], sizes = [8, 32], strides = [1, 1]} : vector<8x128xf32> to vector<8x32xf32>
    %626 = math.tanh %625 : vector<8x32xf32>
    %627 = vector.extract_strided_slice %612 {offsets = [0, 96], sizes = [8, 32], strides = [1, 1]} : vector<8x128xf32> to vector<8x32xf32>
    %628 = arith.negf %627 : vector<8x32xf32>
    %629 = math.exp %628 : vector<8x32xf32>
    %cst_486 = arith.constant 1.000000e+00 : f32
    %630 = vector.broadcast %cst_486 : f32 to vector<8x32xf32>
    %631 = arith.addf %630, %629 : vector<8x32xf32>
    %632 = arith.divf %630, %631 : vector<8x32xf32>
    %633 = arith.mulf %624, %601 : vector<8x32xf32>
    %634 = arith.mulf %618, %626 : vector<8x32xf32>
    %635 = arith.addf %633, %634 : vector<8x32xf32>
    %636 = math.tanh %635 : vector<8x32xf32>
    %637 = arith.mulf %632, %636 : vector<8x32xf32>
    %c8_487 = arith.constant 8 : index
    %c0_488 = arith.constant 0 : index
    %c0_489 = arith.constant 0 : index
    %638 = vector.load %arg6[%c8_487, %c0_488, %c0_489] : memref<16x8x32xf32, #tpu.memory_space<vmem>>, vector<1x8x32xf32>
    %639 = vector.shape_cast %638 : vector<1x8x32xf32> to vector<8x32xf32>
    %640 = vector.shape_cast %637 : vector<8x32xf32> to vector<1x8x32xf32>
    tpu.vector_store %arg6[%c8_487, %c0_488, %c0_489], %640 {strides = array<i32>} : memref<16x8x32xf32, #tpu.memory_space<vmem>>, vector<1x8x32xf32>,
    %c9_490 = arith.constant 9 : index
    %c0_491 = arith.constant 0 : index
    %c0_492 = arith.constant 0 : index
    %641 = vector.load %arg9[%c9_490, %c0_491, %c0_492] : memref<16x8x128xf32, #tpu.memory_space<vmem>>, vector<1x8x128xf32>
    %642 = vector.shape_cast %641 : vector<1x8x128xf32> to vector<8x128xf32>
    %643 = arith.truncf %637 : vector<8x32xf32> to vector<8x32xbf16>
    %c0_493 = arith.constant 0 : index
    %c0_494 = arith.constant 0 : index
    %644 = vector.load %arg4[%c0_493, %c0_494] : memref<32x128xbf16, #tpu.memory_space<vmem>>, vector<32x128xbf16>
    %cst_495 = arith.constant dense<0.000000e+00> : vector<8x128xf32>
    %645 = tpu.matmul %643, %644, %cst_495 {dimension_numbers = #tpu.dot_dimension_numbers<[1], [0], [0], [1], [0, 0, 1, 1], [], []>} : vector<8x32xbf16>, vector<32x128xbf16>, vector<8x128xf32> -> vector<8x128xf32>
    %646 = arith.addf %642, %645 : vector<8x128xf32>
    %647 = vector.extract_strided_slice %646 {offsets = [0, 0], sizes = [8, 32], strides = [1, 1]} : vector<8x128xf32> to vector<8x32xf32>
    %648 = arith.negf %647 : vector<8x32xf32>
    %649 = math.exp %648 : vector<8x32xf32>
    %cst_496 = arith.constant 1.000000e+00 : f32
    %650 = vector.broadcast %cst_496 : f32 to vector<8x32xf32>
    %651 = arith.addf %650, %649 : vector<8x32xf32>
    %652 = arith.divf %650, %651 : vector<8x32xf32>
    %653 = vector.extract_strided_slice %646 {offsets = [0, 32], sizes = [8, 32], strides = [1, 1]} : vector<8x128xf32> to vector<8x32xf32>
    %654 = arith.negf %653 : vector<8x32xf32>
    %655 = math.exp %654 : vector<8x32xf32>
    %cst_497 = arith.constant 1.000000e+00 : f32
    %656 = vector.broadcast %cst_497 : f32 to vector<8x32xf32>
    %657 = arith.addf %656, %655 : vector<8x32xf32>
    %658 = arith.divf %656, %657 : vector<8x32xf32>
    %659 = vector.extract_strided_slice %646 {offsets = [0, 64], sizes = [8, 32], strides = [1, 1]} : vector<8x128xf32> to vector<8x32xf32>
    %660 = math.tanh %659 : vector<8x32xf32>
    %661 = vector.extract_strided_slice %646 {offsets = [0, 96], sizes = [8, 32], strides = [1, 1]} : vector<8x128xf32> to vector<8x32xf32>
    %662 = arith.negf %661 : vector<8x32xf32>
    %663 = math.exp %662 : vector<8x32xf32>
    %cst_498 = arith.constant 1.000000e+00 : f32
    %664 = vector.broadcast %cst_498 : f32 to vector<8x32xf32>
    %665 = arith.addf %664, %663 : vector<8x32xf32>
    %666 = arith.divf %664, %665 : vector<8x32xf32>
    %667 = arith.mulf %658, %635 : vector<8x32xf32>
    %668 = arith.mulf %652, %660 : vector<8x32xf32>
    %669 = arith.addf %667, %668 : vector<8x32xf32>
    %670 = math.tanh %669 : vector<8x32xf32>
    %671 = arith.mulf %666, %670 : vector<8x32xf32>
    %c9_499 = arith.constant 9 : index
    %c0_500 = arith.constant 0 : index
    %c0_501 = arith.constant 0 : index
    %672 = vector.load %arg6[%c9_499, %c0_500, %c0_501] : memref<16x8x32xf32, #tpu.memory_space<vmem>>, vector<1x8x32xf32>
    %673 = vector.shape_cast %672 : vector<1x8x32xf32> to vector<8x32xf32>
    %674 = vector.shape_cast %671 : vector<8x32xf32> to vector<1x8x32xf32>
    tpu.vector_store %arg6[%c9_499, %c0_500, %c0_501], %674 {strides = array<i32>} : memref<16x8x32xf32, #tpu.memory_space<vmem>>, vector<1x8x32xf32>,
    %c10_502 = arith.constant 10 : index
    %c0_503 = arith.constant 0 : index
    %c0_504 = arith.constant 0 : index
    %675 = vector.load %arg9[%c10_502, %c0_503, %c0_504] : memref<16x8x128xf32, #tpu.memory_space<vmem>>, vector<1x8x128xf32>
    %676 = vector.shape_cast %675 : vector<1x8x128xf32> to vector<8x128xf32>
    %677 = arith.truncf %671 : vector<8x32xf32> to vector<8x32xbf16>
    %c0_505 = arith.constant 0 : index
    %c0_506 = arith.constant 0 : index
    %678 = vector.load %arg4[%c0_505, %c0_506] : memref<32x128xbf16, #tpu.memory_space<vmem>>, vector<32x128xbf16>
    %cst_507 = arith.constant dense<0.000000e+00> : vector<8x128xf32>
    %679 = tpu.matmul %677, %678, %cst_507 {dimension_numbers = #tpu.dot_dimension_numbers<[1], [0], [0], [1], [0, 0, 1, 1], [], []>} : vector<8x32xbf16>, vector<32x128xbf16>, vector<8x128xf32> -> vector<8x128xf32>
    %680 = arith.addf %676, %679 : vector<8x128xf32>
    %681 = vector.extract_strided_slice %680 {offsets = [0, 0], sizes = [8, 32], strides = [1, 1]} : vector<8x128xf32> to vector<8x32xf32>
    %682 = arith.negf %681 : vector<8x32xf32>
    %683 = math.exp %682 : vector<8x32xf32>
    %cst_508 = arith.constant 1.000000e+00 : f32
    %684 = vector.broadcast %cst_508 : f32 to vector<8x32xf32>
    %685 = arith.addf %684, %683 : vector<8x32xf32>
    %686 = arith.divf %684, %685 : vector<8x32xf32>
    %687 = vector.extract_strided_slice %680 {offsets = [0, 32], sizes = [8, 32], strides = [1, 1]} : vector<8x128xf32> to vector<8x32xf32>
    %688 = arith.negf %687 : vector<8x32xf32>
    %689 = math.exp %688 : vector<8x32xf32>
    %cst_509 = arith.constant 1.000000e+00 : f32
    %690 = vector.broadcast %cst_509 : f32 to vector<8x32xf32>
    %691 = arith.addf %690, %689 : vector<8x32xf32>
    %692 = arith.divf %690, %691 : vector<8x32xf32>
    %693 = vector.extract_strided_slice %680 {offsets = [0, 64], sizes = [8, 32], strides = [1, 1]} : vector<8x128xf32> to vector<8x32xf32>
    %694 = math.tanh %693 : vector<8x32xf32>
    %695 = vector.extract_strided_slice %680 {offsets = [0, 96], sizes = [8, 32], strides = [1, 1]} : vector<8x128xf32> to vector<8x32xf32>
    %696 = arith.negf %695 : vector<8x32xf32>
    %697 = math.exp %696 : vector<8x32xf32>
    %cst_510 = arith.constant 1.000000e+00 : f32
    %698 = vector.broadcast %cst_510 : f32 to vector<8x32xf32>
    %699 = arith.addf %698, %697 : vector<8x32xf32>
    %700 = arith.divf %698, %699 : vector<8x32xf32>
    %701 = arith.mulf %692, %669 : vector<8x32xf32>
    %702 = arith.mulf %686, %694 : vector<8x32xf32>
    %703 = arith.addf %701, %702 : vector<8x32xf32>
    %704 = math.tanh %703 : vector<8x32xf32>
    %705 = arith.mulf %700, %704 : vector<8x32xf32>
    %c10_511 = arith.constant 10 : index
    %c0_512 = arith.constant 0 : index
    %c0_513 = arith.constant 0 : index
    %706 = vector.load %arg6[%c10_511, %c0_512, %c0_513] : memref<16x8x32xf32, #tpu.memory_space<vmem>>, vector<1x8x32xf32>
    %707 = vector.shape_cast %706 : vector<1x8x32xf32> to vector<8x32xf32>
    %708 = vector.shape_cast %705 : vector<8x32xf32> to vector<1x8x32xf32>
    tpu.vector_store %arg6[%c10_511, %c0_512, %c0_513], %708 {strides = array<i32>} : memref<16x8x32xf32, #tpu.memory_space<vmem>>, vector<1x8x32xf32>,
    %c11_514 = arith.constant 11 : index
    %c0_515 = arith.constant 0 : index
    %c0_516 = arith.constant 0 : index
    %709 = vector.load %arg9[%c11_514, %c0_515, %c0_516] : memref<16x8x128xf32, #tpu.memory_space<vmem>>, vector<1x8x128xf32>
    %710 = vector.shape_cast %709 : vector<1x8x128xf32> to vector<8x128xf32>
    %711 = arith.truncf %705 : vector<8x32xf32> to vector<8x32xbf16>
    %c0_517 = arith.constant 0 : index
    %c0_518 = arith.constant 0 : index
    %712 = vector.load %arg4[%c0_517, %c0_518] : memref<32x128xbf16, #tpu.memory_space<vmem>>, vector<32x128xbf16>
    %cst_519 = arith.constant dense<0.000000e+00> : vector<8x128xf32>
    %713 = tpu.matmul %711, %712, %cst_519 {dimension_numbers = #tpu.dot_dimension_numbers<[1], [0], [0], [1], [0, 0, 1, 1], [], []>} : vector<8x32xbf16>, vector<32x128xbf16>, vector<8x128xf32> -> vector<8x128xf32>
    %714 = arith.addf %710, %713 : vector<8x128xf32>
    %715 = vector.extract_strided_slice %714 {offsets = [0, 0], sizes = [8, 32], strides = [1, 1]} : vector<8x128xf32> to vector<8x32xf32>
    %716 = arith.negf %715 : vector<8x32xf32>
    %717 = math.exp %716 : vector<8x32xf32>
    %cst_520 = arith.constant 1.000000e+00 : f32
    %718 = vector.broadcast %cst_520 : f32 to vector<8x32xf32>
    %719 = arith.addf %718, %717 : vector<8x32xf32>
    %720 = arith.divf %718, %719 : vector<8x32xf32>
    %721 = vector.extract_strided_slice %714 {offsets = [0, 32], sizes = [8, 32], strides = [1, 1]} : vector<8x128xf32> to vector<8x32xf32>
    %722 = arith.negf %721 : vector<8x32xf32>
    %723 = math.exp %722 : vector<8x32xf32>
    %cst_521 = arith.constant 1.000000e+00 : f32
    %724 = vector.broadcast %cst_521 : f32 to vector<8x32xf32>
    %725 = arith.addf %724, %723 : vector<8x32xf32>
    %726 = arith.divf %724, %725 : vector<8x32xf32>
    %727 = vector.extract_strided_slice %714 {offsets = [0, 64], sizes = [8, 32], strides = [1, 1]} : vector<8x128xf32> to vector<8x32xf32>
    %728 = math.tanh %727 : vector<8x32xf32>
    %729 = vector.extract_strided_slice %714 {offsets = [0, 96], sizes = [8, 32], strides = [1, 1]} : vector<8x128xf32> to vector<8x32xf32>
    %730 = arith.negf %729 : vector<8x32xf32>
    %731 = math.exp %730 : vector<8x32xf32>
    %cst_522 = arith.constant 1.000000e+00 : f32
    %732 = vector.broadcast %cst_522 : f32 to vector<8x32xf32>
    %733 = arith.addf %732, %731 : vector<8x32xf32>
    %734 = arith.divf %732, %733 : vector<8x32xf32>
    %735 = arith.mulf %726, %703 : vector<8x32xf32>
    %736 = arith.mulf %720, %728 : vector<8x32xf32>
    %737 = arith.addf %735, %736 : vector<8x32xf32>
    %738 = math.tanh %737 : vector<8x32xf32>
    %739 = arith.mulf %734, %738 : vector<8x32xf32>
    %c11_523 = arith.constant 11 : index
    %c0_524 = arith.constant 0 : index
    %c0_525 = arith.constant 0 : index
    %740 = vector.load %arg6[%c11_523, %c0_524, %c0_525] : memref<16x8x32xf32, #tpu.memory_space<vmem>>, vector<1x8x32xf32>
    %741 = vector.shape_cast %740 : vector<1x8x32xf32> to vector<8x32xf32>
    %742 = vector.shape_cast %739 : vector<8x32xf32> to vector<1x8x32xf32>
    tpu.vector_store %arg6[%c11_523, %c0_524, %c0_525], %742 {strides = array<i32>} : memref<16x8x32xf32, #tpu.memory_space<vmem>>, vector<1x8x32xf32>,
    %c12_526 = arith.constant 12 : index
    %c0_527 = arith.constant 0 : index
    %c0_528 = arith.constant 0 : index
    %743 = vector.load %arg9[%c12_526, %c0_527, %c0_528] : memref<16x8x128xf32, #tpu.memory_space<vmem>>, vector<1x8x128xf32>
    %744 = vector.shape_cast %743 : vector<1x8x128xf32> to vector<8x128xf32>
    %745 = arith.truncf %739 : vector<8x32xf32> to vector<8x32xbf16>
    %c0_529 = arith.constant 0 : index
    %c0_530 = arith.constant 0 : index
    %746 = vector.load %arg4[%c0_529, %c0_530] : memref<32x128xbf16, #tpu.memory_space<vmem>>, vector<32x128xbf16>
    %cst_531 = arith.constant dense<0.000000e+00> : vector<8x128xf32>
    %747 = tpu.matmul %745, %746, %cst_531 {dimension_numbers = #tpu.dot_dimension_numbers<[1], [0], [0], [1], [0, 0, 1, 1], [], []>} : vector<8x32xbf16>, vector<32x128xbf16>, vector<8x128xf32> -> vector<8x128xf32>
    %748 = arith.addf %744, %747 : vector<8x128xf32>
    %749 = vector.extract_strided_slice %748 {offsets = [0, 0], sizes = [8, 32], strides = [1, 1]} : vector<8x128xf32> to vector<8x32xf32>
    %750 = arith.negf %749 : vector<8x32xf32>
    %751 = math.exp %750 : vector<8x32xf32>
    %cst_532 = arith.constant 1.000000e+00 : f32
    %752 = vector.broadcast %cst_532 : f32 to vector<8x32xf32>
    %753 = arith.addf %752, %751 : vector<8x32xf32>
    %754 = arith.divf %752, %753 : vector<8x32xf32>
    %755 = vector.extract_strided_slice %748 {offsets = [0, 32], sizes = [8, 32], strides = [1, 1]} : vector<8x128xf32> to vector<8x32xf32>
    %756 = arith.negf %755 : vector<8x32xf32>
    %757 = math.exp %756 : vector<8x32xf32>
    %cst_533 = arith.constant 1.000000e+00 : f32
    %758 = vector.broadcast %cst_533 : f32 to vector<8x32xf32>
    %759 = arith.addf %758, %757 : vector<8x32xf32>
    %760 = arith.divf %758, %759 : vector<8x32xf32>
    %761 = vector.extract_strided_slice %748 {offsets = [0, 64], sizes = [8, 32], strides = [1, 1]} : vector<8x128xf32> to vector<8x32xf32>
    %762 = math.tanh %761 : vector<8x32xf32>
    %763 = vector.extract_strided_slice %748 {offsets = [0, 96], sizes = [8, 32], strides = [1, 1]} : vector<8x128xf32> to vector<8x32xf32>
    %764 = arith.negf %763 : vector<8x32xf32>
    %765 = math.exp %764 : vector<8x32xf32>
    %cst_534 = arith.constant 1.000000e+00 : f32
    %766 = vector.broadcast %cst_534 : f32 to vector<8x32xf32>
    %767 = arith.addf %766, %765 : vector<8x32xf32>
    %768 = arith.divf %766, %767 : vector<8x32xf32>
    %769 = arith.mulf %760, %737 : vector<8x32xf32>
    %770 = arith.mulf %754, %762 : vector<8x32xf32>
    %771 = arith.addf %769, %770 : vector<8x32xf32>
    %772 = math.tanh %771 : vector<8x32xf32>
    %773 = arith.mulf %768, %772 : vector<8x32xf32>
    %c12_535 = arith.constant 12 : index
    %c0_536 = arith.constant 0 : index
    %c0_537 = arith.constant 0 : index
    %774 = vector.load %arg6[%c12_535, %c0_536, %c0_537] : memref<16x8x32xf32, #tpu.memory_space<vmem>>, vector<1x8x32xf32>
    %775 = vector.shape_cast %774 : vector<1x8x32xf32> to vector<8x32xf32>
    %776 = vector.shape_cast %773 : vector<8x32xf32> to vector<1x8x32xf32>
    tpu.vector_store %arg6[%c12_535, %c0_536, %c0_537], %776 {strides = array<i32>} : memref<16x8x32xf32, #tpu.memory_space<vmem>>, vector<1x8x32xf32>,
    %c13_538 = arith.constant 13 : index
    %c0_539 = arith.constant 0 : index
    %c0_540 = arith.constant 0 : index
    %777 = vector.load %arg9[%c13_538, %c0_539, %c0_540] : memref<16x8x128xf32, #tpu.memory_space<vmem>>, vector<1x8x128xf32>
    %778 = vector.shape_cast %777 : vector<1x8x128xf32> to vector<8x128xf32>
    %779 = arith.truncf %773 : vector<8x32xf32> to vector<8x32xbf16>
    %c0_541 = arith.constant 0 : index
    %c0_542 = arith.constant 0 : index
    %780 = vector.load %arg4[%c0_541, %c0_542] : memref<32x128xbf16, #tpu.memory_space<vmem>>, vector<32x128xbf16>
    %cst_543 = arith.constant dense<0.000000e+00> : vector<8x128xf32>
    %781 = tpu.matmul %779, %780, %cst_543 {dimension_numbers = #tpu.dot_dimension_numbers<[1], [0], [0], [1], [0, 0, 1, 1], [], []>} : vector<8x32xbf16>, vector<32x128xbf16>, vector<8x128xf32> -> vector<8x128xf32>
    %782 = arith.addf %778, %781 : vector<8x128xf32>
    %783 = vector.extract_strided_slice %782 {offsets = [0, 0], sizes = [8, 32], strides = [1, 1]} : vector<8x128xf32> to vector<8x32xf32>
    %784 = arith.negf %783 : vector<8x32xf32>
    %785 = math.exp %784 : vector<8x32xf32>
    %cst_544 = arith.constant 1.000000e+00 : f32
    %786 = vector.broadcast %cst_544 : f32 to vector<8x32xf32>
    %787 = arith.addf %786, %785 : vector<8x32xf32>
    %788 = arith.divf %786, %787 : vector<8x32xf32>
    %789 = vector.extract_strided_slice %782 {offsets = [0, 32], sizes = [8, 32], strides = [1, 1]} : vector<8x128xf32> to vector<8x32xf32>
    %790 = arith.negf %789 : vector<8x32xf32>
    %791 = math.exp %790 : vector<8x32xf32>
    %cst_545 = arith.constant 1.000000e+00 : f32
    %792 = vector.broadcast %cst_545 : f32 to vector<8x32xf32>
    %793 = arith.addf %792, %791 : vector<8x32xf32>
    %794 = arith.divf %792, %793 : vector<8x32xf32>
    %795 = vector.extract_strided_slice %782 {offsets = [0, 64], sizes = [8, 32], strides = [1, 1]} : vector<8x128xf32> to vector<8x32xf32>
    %796 = math.tanh %795 : vector<8x32xf32>
    %797 = vector.extract_strided_slice %782 {offsets = [0, 96], sizes = [8, 32], strides = [1, 1]} : vector<8x128xf32> to vector<8x32xf32>
    %798 = arith.negf %797 : vector<8x32xf32>
    %799 = math.exp %798 : vector<8x32xf32>
    %cst_546 = arith.constant 1.000000e+00 : f32
    %800 = vector.broadcast %cst_546 : f32 to vector<8x32xf32>
    %801 = arith.addf %800, %799 : vector<8x32xf32>
    %802 = arith.divf %800, %801 : vector<8x32xf32>
    %803 = arith.mulf %794, %771 : vector<8x32xf32>
    %804 = arith.mulf %788, %796 : vector<8x32xf32>
    %805 = arith.addf %803, %804 : vector<8x32xf32>
    %806 = math.tanh %805 : vector<8x32xf32>
    %807 = arith.mulf %802, %806 : vector<8x32xf32>
    %c13_547 = arith.constant 13 : index
    %c0_548 = arith.constant 0 : index
    %c0_549 = arith.constant 0 : index
    %808 = vector.load %arg6[%c13_547, %c0_548, %c0_549] : memref<16x8x32xf32, #tpu.memory_space<vmem>>, vector<1x8x32xf32>
    %809 = vector.shape_cast %808 : vector<1x8x32xf32> to vector<8x32xf32>
    %810 = vector.shape_cast %807 : vector<8x32xf32> to vector<1x8x32xf32>
    tpu.vector_store %arg6[%c13_547, %c0_548, %c0_549], %810 {strides = array<i32>} : memref<16x8x32xf32, #tpu.memory_space<vmem>>, vector<1x8x32xf32>,
    %c14_550 = arith.constant 14 : index
    %c0_551 = arith.constant 0 : index
    %c0_552 = arith.constant 0 : index
    %811 = vector.load %arg9[%c14_550, %c0_551, %c0_552] : memref<16x8x128xf32, #tpu.memory_space<vmem>>, vector<1x8x128xf32>
    %812 = vector.shape_cast %811 : vector<1x8x128xf32> to vector<8x128xf32>
    %813 = arith.truncf %807 : vector<8x32xf32> to vector<8x32xbf16>
    %c0_553 = arith.constant 0 : index
    %c0_554 = arith.constant 0 : index
    %814 = vector.load %arg4[%c0_553, %c0_554] : memref<32x128xbf16, #tpu.memory_space<vmem>>, vector<32x128xbf16>
    %cst_555 = arith.constant dense<0.000000e+00> : vector<8x128xf32>
    %815 = tpu.matmul %813, %814, %cst_555 {dimension_numbers = #tpu.dot_dimension_numbers<[1], [0], [0], [1], [0, 0, 1, 1], [], []>} : vector<8x32xbf16>, vector<32x128xbf16>, vector<8x128xf32> -> vector<8x128xf32>
    %816 = arith.addf %812, %815 : vector<8x128xf32>
    %817 = vector.extract_strided_slice %816 {offsets = [0, 0], sizes = [8, 32], strides = [1, 1]} : vector<8x128xf32> to vector<8x32xf32>
    %818 = arith.negf %817 : vector<8x32xf32>
    %819 = math.exp %818 : vector<8x32xf32>
    %cst_556 = arith.constant 1.000000e+00 : f32
    %820 = vector.broadcast %cst_556 : f32 to vector<8x32xf32>
    %821 = arith.addf %820, %819 : vector<8x32xf32>
    %822 = arith.divf %820, %821 : vector<8x32xf32>
    %823 = vector.extract_strided_slice %816 {offsets = [0, 32], sizes = [8, 32], strides = [1, 1]} : vector<8x128xf32> to vector<8x32xf32>
    %824 = arith.negf %823 : vector<8x32xf32>
    %825 = math.exp %824 : vector<8x32xf32>
    %cst_557 = arith.constant 1.000000e+00 : f32
    %826 = vector.broadcast %cst_557 : f32 to vector<8x32xf32>
    %827 = arith.addf %826, %825 : vector<8x32xf32>
    %828 = arith.divf %826, %827 : vector<8x32xf32>
    %829 = vector.extract_strided_slice %816 {offsets = [0, 64], sizes = [8, 32], strides = [1, 1]} : vector<8x128xf32> to vector<8x32xf32>
    %830 = math.tanh %829 : vector<8x32xf32>
    %831 = vector.extract_strided_slice %816 {offsets = [0, 96], sizes = [8, 32], strides = [1, 1]} : vector<8x128xf32> to vector<8x32xf32>
    %832 = arith.negf %831 : vector<8x32xf32>
    %833 = math.exp %832 : vector<8x32xf32>
    %cst_558 = arith.constant 1.000000e+00 : f32
    %834 = vector.broadcast %cst_558 : f32 to vector<8x32xf32>
    %835 = arith.addf %834, %833 : vector<8x32xf32>
    %836 = arith.divf %834, %835 : vector<8x32xf32>
    %837 = arith.mulf %828, %805 : vector<8x32xf32>
    %838 = arith.mulf %822, %830 : vector<8x32xf32>
    %839 = arith.addf %837, %838 : vector<8x32xf32>
    %840 = math.tanh %839 : vector<8x32xf32>
    %841 = arith.mulf %836, %840 : vector<8x32xf32>
    %c14_559 = arith.constant 14 : index
    %c0_560 = arith.constant 0 : index
    %c0_561 = arith.constant 0 : index
    %842 = vector.load %arg6[%c14_559, %c0_560, %c0_561] : memref<16x8x32xf32, #tpu.memory_space<vmem>>, vector<1x8x32xf32>
    %843 = vector.shape_cast %842 : vector<1x8x32xf32> to vector<8x32xf32>
    %844 = vector.shape_cast %841 : vector<8x32xf32> to vector<1x8x32xf32>
    tpu.vector_store %arg6[%c14_559, %c0_560, %c0_561], %844 {strides = array<i32>} : memref<16x8x32xf32, #tpu.memory_space<vmem>>, vector<1x8x32xf32>,
    %c15_562 = arith.constant 15 : index
    %c0_563 = arith.constant 0 : index
    %c0_564 = arith.constant 0 : index
    %845 = vector.load %arg9[%c15_562, %c0_563, %c0_564] : memref<16x8x128xf32, #tpu.memory_space<vmem>>, vector<1x8x128xf32>
    %846 = vector.shape_cast %845 : vector<1x8x128xf32> to vector<8x128xf32>
    %847 = arith.truncf %841 : vector<8x32xf32> to vector<8x32xbf16>
    %c0_565 = arith.constant 0 : index
    %c0_566 = arith.constant 0 : index
    %848 = vector.load %arg4[%c0_565, %c0_566] : memref<32x128xbf16, #tpu.memory_space<vmem>>, vector<32x128xbf16>
    %cst_567 = arith.constant dense<0.000000e+00> : vector<8x128xf32>
    %849 = tpu.matmul %847, %848, %cst_567 {dimension_numbers = #tpu.dot_dimension_numbers<[1], [0], [0], [1], [0, 0, 1, 1], [], []>} : vector<8x32xbf16>, vector<32x128xbf16>, vector<8x128xf32> -> vector<8x128xf32>
    %850 = arith.addf %846, %849 : vector<8x128xf32>
    %851 = vector.extract_strided_slice %850 {offsets = [0, 0], sizes = [8, 32], strides = [1, 1]} : vector<8x128xf32> to vector<8x32xf32>
    %852 = arith.negf %851 : vector<8x32xf32>
    %853 = math.exp %852 : vector<8x32xf32>
    %cst_568 = arith.constant 1.000000e+00 : f32
    %854 = vector.broadcast %cst_568 : f32 to vector<8x32xf32>
    %855 = arith.addf %854, %853 : vector<8x32xf32>
    %856 = arith.divf %854, %855 : vector<8x32xf32>
    %857 = vector.extract_strided_slice %850 {offsets = [0, 32], sizes = [8, 32], strides = [1, 1]} : vector<8x128xf32> to vector<8x32xf32>
    %858 = arith.negf %857 : vector<8x32xf32>
    %859 = math.exp %858 : vector<8x32xf32>
    %cst_569 = arith.constant 1.000000e+00 : f32
    %860 = vector.broadcast %cst_569 : f32 to vector<8x32xf32>
    %861 = arith.addf %860, %859 : vector<8x32xf32>
    %862 = arith.divf %860, %861 : vector<8x32xf32>
    %863 = vector.extract_strided_slice %850 {offsets = [0, 64], sizes = [8, 32], strides = [1, 1]} : vector<8x128xf32> to vector<8x32xf32>
    %864 = math.tanh %863 : vector<8x32xf32>
    %865 = vector.extract_strided_slice %850 {offsets = [0, 96], sizes = [8, 32], strides = [1, 1]} : vector<8x128xf32> to vector<8x32xf32>
    %866 = arith.negf %865 : vector<8x32xf32>
    %867 = math.exp %866 : vector<8x32xf32>
    %cst_570 = arith.constant 1.000000e+00 : f32
    %868 = vector.broadcast %cst_570 : f32 to vector<8x32xf32>
    %869 = arith.addf %868, %867 : vector<8x32xf32>
    %870 = arith.divf %868, %869 : vector<8x32xf32>
    %871 = arith.mulf %862, %839 : vector<8x32xf32>
    %872 = arith.mulf %856, %864 : vector<8x32xf32>
    %873 = arith.addf %871, %872 : vector<8x32xf32>
    %874 = math.tanh %873 : vector<8x32xf32>
    %875 = arith.mulf %870, %874 : vector<8x32xf32>
    %c15_571 = arith.constant 15 : index
    %c0_572 = arith.constant 0 : index
    %c0_573 = arith.constant 0 : index
    %876 = vector.load %arg6[%c15_571, %c0_572, %c0_573] : memref<16x8x32xf32, #tpu.memory_space<vmem>>, vector<1x8x32xf32>
    %877 = vector.shape_cast %876 : vector<1x8x32xf32> to vector<8x32xf32>
    %878 = vector.shape_cast %875 : vector<8x32xf32> to vector<1x8x32xf32>
    tpu.vector_store %arg6[%c15_571, %c0_572, %c0_573], %878 {strides = array<i32>} : memref<16x8x32xf32, #tpu.memory_space<vmem>>, vector<1x8x32xf32>,
    return
  }
  func.func @transform_0(%arg0: i32) -> (i32, i32, i32) {
    %c0_i32 = arith.constant 0 : i32
    %c0_i32_0 = arith.constant 0 : i32
    %c0_i32_1 = arith.constant 0 : i32
    %c0_i32_2 = arith.constant 0 : i32
    return %c0_i32, %c0_i32_0, %c0_i32_1 : i32, i32, i32
  }
  func.func @transform_1(%arg0: i32) -> (i32, i32) {
    %c0_i32 = arith.constant 0 : i32
    %c0_i32_0 = arith.constant 0 : i32
    %c0_i32_1 = arith.constant 0 : i32
    return %c0_i32, %c0_i32_0 : i32, i32
  }
  func.func @transform_2(%arg0: i32) -> (i32, i32) {
    %c0_i32 = arith.constant 0 : i32
    %c0_i32_0 = arith.constant 0 : i32
    %c0_i32_1 = arith.constant 0 : i32
    return %c0_i32, %c0_i32_0 : i32, i32
  }
  func.func @transform_3(%arg0: i32) -> (i32, i32) {
    %c0_i32 = arith.constant 0 : i32
    %c0_i32_0 = arith.constant 0 : i32
    %c0_i32_1 = arith.constant 0 : i32
    return %c0_i32, %c0_i32_0 : i32, i32
  }
  func.func @transform_4(%arg0: i32) -> (i32, i32) {
    %c0_i32 = arith.constant 0 : i32
    %c0_i32_0 = arith.constant 0 : i32
    %c0_i32_1 = arith.constant 0 : i32
    return %c0_i32, %c0_i32_0 : i32, i32
  }
  func.func @transform_5(%arg0: i32) -> (i32, i32, i32) {
    %c0_i32 = arith.constant 0 : i32
    %c0_i32_0 = arith.constant 0 : i32
    %c0_i32_1 = arith.constant 0 : i32
    %c0_i32_2 = arith.constant 0 : i32
    return %c0_i32, %c0_i32_0, %c0_i32_1 : i32, i32, i32
  }
}

</mosaic_0001>

<llo_original>
// kernel: custom_rnn_forward.1
$region0: #{custom_rnn_forward.1}
  #allocation0 [shape = 'u32[]', space=smem, size = 0x4, offset = 0x4, fixed_abs, tag = 'smem constant byte address 0x4 - core index']
  #allocation1 [shape = 'u32[144,128]{1,0:T(1,128)}', space=vmem, size = 0x12000, scoped, tag = 'internal scratch']
  #allocation2 [shape = 'f32[16,2,128]{2,1,0:T(2,128)}', space=vmem, size = 0x4000, scoped, tag = 'scratch operand']
  #allocation3 [shape = 'f32[16,8,128]{2,1,0:T(8,128)}', space=vmem, size = 0x10000, scoped, tag = 'scratch operand']
  #allocation4 [shape = 'f32[16,8,128]{2,1,0:T(8,128)}', space=vmem, size = 0x10000, scoped, tag = 'scratch operand']
  %s0 = inlined_call_operand.vmem [shape: f32[64,2,512], index: 0, kind: input, shape index: {}]
  %s1 = inlined_call_operand.vmem [shape: bf16[128,512], index: 1, kind: input, shape index: {}]
  %s2 = inlined_call_operand.vmem [shape: bf16[128,128], index: 2, kind: input, shape index: {}]
  %s3 = inlined_call_operand.vmem [shape: bf16[32,128], index: 3, kind: input, shape index: {}]
  %s4 = inlined_call_operand.vmem [shape: f32[1,128], index: 4, kind: input, shape index: {}]
  %s5 = inlined_call_operand.vmem [shape: f32[16,8,32], index: 5, kind: output, shape index: {}]
  %s6 = sld [smem:[#allocation0]]
  $region37: #{custom_rnn_forward.1} parent=0
    _
  %s8 = ssub.s32 1, %s6
  %s9 = scalar_select 0, %s8, %s6
  // Predicated region
  $region2: #{custom_rnn_forward.1} parent=0 // pred_check
    _
  $region3: #{custom_rnn_forward.1} parent=0 // pred_check_branch
    %11 = sbr.rel (0) target = $region5
  $region4: #{custom_rnn_forward.1} parent=0 // pred_region
    _
  $region5: #{custom_rnn_forward.1} parent=0 // pred_fallthru
    _
  // Predicated region
  $region6: #{custom_rnn_forward.1} parent=0 // pred_check
    _
  $region7: #{custom_rnn_forward.1} parent=0 // pred_check_branch
    %13 = sbr.rel (0) target = $region9
  $region8: #{custom_rnn_forward.1} parent=0 // pred_region
    _
  $region9: #{custom_rnn_forward.1} parent=0 // pred_fallthru
    _
  // Predicated region
  $region10: #{custom_rnn_forward.1} parent=0 // pred_check
    _
  $region11: #{custom_rnn_forward.1} parent=0 // pred_check_branch
    %15 = sbr.rel (0) target = $region13
  $region12: #{custom_rnn_forward.1} parent=0 // pred_region
    _
  $region13: #{custom_rnn_forward.1} parent=0 // pred_fallthru
    _
  // Predicated region
  $region14: #{custom_rnn_forward.1} parent=0 // pred_check
    _
  $region15: #{custom_rnn_forward.1} parent=0 // pred_check_branch
    %17 = sbr.rel (0) target = $region17
  $region16: #{custom_rnn_forward.1} parent=0 // pred_region
    _
  $region17: #{custom_rnn_forward.1} parent=0 // pred_fallthru
    _
  // Predicated region
  $region18: #{custom_rnn_forward.1} parent=0 // pred_check
    _
  $region19: #{custom_rnn_forward.1} parent=0 // pred_check_branch
    %19 = sbr.rel (0) target = $region21
  $region20: #{custom_rnn_forward.1} parent=0 // pred_region
    _
  $region21: #{custom_rnn_forward.1} parent=0 // pred_fallthru
    _
  loop: start=0, step=1, limit=16
  $region22: #{custom_rnn_forward.1} parent=0 // loop_pre_header
    _
  $region23: #{custom_rnn_forward.1} parent=0 // loop_header
    %s22 = sphi 0, %s26
    %p23 = scmp.ge.s32.totalorder %s22, 16
    %v27 = vphi 0.0, %v788
    %v28 = vphi 0.0, %v786
  $region24: #{custom_rnn_forward.1} parent=0 // loop_header_branch
    %25 = sbr.rel (%p23) target = $region28
  $region25: #{custom_rnn_forward.1} parent=0 // loop_body
    %s29 = smul.u32 %s22, 4
    %s30 = smul.u32 %s29, 4
    %s31 = smul.addr %s30, 2
    %s32 = scalar_lea.vmem %s0, %s31
    %v33 = vld [vmem:[%s32] sm:$0xff]
    %v34 = vpack.c.bf16 %v27, %v27
    %v35 = vld [vmem:[%s1] sm:$0xff]
    %v36 = vld [vmem:[%s1 + $0x8] sm:$0xff]
    %v37 = vld [vmem:[%s1 + $0x10] sm:$0xff]
    %v38 = vld [vmem:[%s1 + $0x18] sm:$0xff]
    %v39 = vld [vmem:[%s1 + $0x20] sm:$0xff]
    %v40 = vld [vmem:[%s1 + $0x28] sm:$0xff]
    %v41 = vld [vmem:[%s1 + $0x30] sm:$0xff]
    %v42 = vld [vmem:[%s1 + $0x38] sm:$0xff]
    %v43 = vld [vmem:[%s1 + $0x40] sm:$0xff]
    %v44 = vld [vmem:[%s1 + $0x48] sm:$0xff]
    %v45 = vld [vmem:[%s1 + $0x50] sm:$0xff]
    %v46 = vld [vmem:[%s1 + $0x58] sm:$0xff]
    %v47 = vld [vmem:[%s1 + $0x60] sm:$0xff]
    %v48 = vld [vmem:[%s1 + $0x68] sm:$0xff]
    %v49 = vld [vmem:[%s1 + $0x70] sm:$0xff]
    %v50 = vld [vmem:[%s1 + $0x78] sm:$0xff]
    %v51 = vld [vmem:[%s1 + $0x80] sm:$0xff]
    %v52 = vld [vmem:[%s1 + $0x88] sm:$0xff]
    %v53 = vld [vmem:[%s1 + $0x90] sm:$0xff]
    %v54 = vld [vmem:[%s1 + $0x98] sm:$0xff]
    %v55 = vld [vmem:[%s1 + $0xa0] sm:$0xff]
    %v56 = vld [vmem:[%s1 + $0xa8] sm:$0xff]
    %v57 = vld [vmem:[%s1 + $0xb0] sm:$0xff]
    %v58 = vld [vmem:[%s1 + $0xb8] sm:$0xff]
    %v59 = vld [vmem:[%s1 + $0xc0] sm:$0xff]
    %v60 = vld [vmem:[%s1 + $0xc8] sm:$0xff]
    %v61 = vld [vmem:[%s1 + $0xd0] sm:$0xff]
    %v62 = vld [vmem:[%s1 + $0xd8] sm:$0xff]
    %v63 = vld [vmem:[%s1 + $0xe0] sm:$0xff]
    %v64 = vld [vmem:[%s1 + $0xe8] sm:$0xff]
    %v65 = vld [vmem:[%s1 + $0xf0] sm:$0xff]
    %v66 = vld [vmem:[%s1 + $0xf8] sm:$0xff]
    %v99 = vunpack.c.l.b16 %v35
    %v100 = vunpack.c.h.b16 %v35
    %v101 = vunpack.c.l.b16 %v36
    %v102 = vunpack.c.h.b16 %v36
    %v103 = vunpack.c.l.b16 %v37
    %v104 = vunpack.c.h.b16 %v37
    %v105 = vunpack.c.l.b16 %v38
    %v106 = vunpack.c.h.b16 %v38
    %v107 = vunpack.c.l.b16 %v39
    %v108 = vunpack.c.h.b16 %v39
    %v109 = vunpack.c.l.b16 %v40
    %v110 = vunpack.c.h.b16 %v40
    %v111 = vunpack.c.l.b16 %v41
    %v112 = vunpack.c.h.b16 %v41
    %v113 = vunpack.c.l.b16 %v42
    %v114 = vunpack.c.h.b16 %v42
    %v115 = vunpack.c.l.b16 %v43
    %v116 = vunpack.c.h.b16 %v43
    %v117 = vunpack.c.l.b16 %v44
    %v118 = vunpack.c.h.b16 %v44
    %v119 = vunpack.c.l.b16 %v45
    %v120 = vunpack.c.h.b16 %v45
    %v121 = vunpack.c.l.b16 %v46
    %v122 = vunpack.c.h.b16 %v46
    %v123 = vunpack.c.l.b16 %v47
    %v124 = vunpack.c.h.b16 %v47
    %v125 = vunpack.c.l.b16 %v48
    %v126 = vunpack.c.h.b16 %v48
    %v127 = vunpack.c.l.b16 %v49
    %v128 = vunpack.c.h.b16 %v49
    %v129 = vunpack.c.l.b16 %v50
    %v130 = vunpack.c.h.b16 %v50
    %v131 = vunpack.c.l.b16 %v51
    %v132 = vunpack.c.h.b16 %v51
    %v133 = vunpack.c.l.b16 %v52
    %v134 = vunpack.c.h.b16 %v52
    %v135 = vunpack.c.l.b16 %v53
    %v136 = vunpack.c.h.b16 %v53
    %v137 = vunpack.c.l.b16 %v54
    %v138 = vunpack.c.h.b16 %v54
    %v139 = vunpack.c.l.b16 %v55
    %v140 = vunpack.c.h.b16 %v55
    %v141 = vunpack.c.l.b16 %v56
    %v142 = vunpack.c.h.b16 %v56
    %v143 = vunpack.c.l.b16 %v57
    %v144 = vunpack.c.h.b16 %v57
    %v145 = vunpack.c.l.b16 %v58
    %v146 = vunpack.c.h.b16 %v58
    %v147 = vunpack.c.l.b16 %v59
    %v148 = vunpack.c.h.b16 %v59
    %v149 = vunpack.c.l.b16 %v60
    %v150 = vunpack.c.h.b16 %v60
    %v151 = vunpack.c.l.b16 %v61
    %v152 = vunpack.c.h.b16 %v61
    %v153 = vunpack.c.l.b16 %v62
    %v154 = vunpack.c.h.b16 %v62
    %v155 = vunpack.c.l.b16 %v63
    %v156 = vunpack.c.h.b16 %v63
    %v157 = vunpack.c.l.b16 %v64
    %v158 = vunpack.c.h.b16 %v64
    %v159 = vunpack.c.l.b16 %v65
    %v160 = vunpack.c.h.b16 %v65
    %v161 = vunpack.c.l.b16 %v66
    %v162 = vunpack.c.h.b16 %v66
    %v163 = vpack.c.b16 %v103, %v99
    %v164 = vpack.c.b16 %v104, %v100
    %v165 = vpack.c.b16 %v105, %v101
    %v166 = vpack.c.b16 %v106, %v102
    %v167 = vpack.c.b16 %v111, %v107
    %v168 = vpack.c.b16 %v112, %v108
    %v169 = vpack.c.b16 %v113, %v109
    %v170 = vpack.c.b16 %v114, %v110
    %v171 = vpack.c.b16 %v119, %v115
    %v172 = vpack.c.b16 %v120, %v116
    %v173 = vpack.c.b16 %v121, %v117
    %v174 = vpack.c.b16 %v122, %v118
    %v175 = vpack.c.b16 %v127, %v123
    %v176 = vpack.c.b16 %v128, %v124
    %v177 = vpack.c.b16 %v129, %v125
    %v178 = vpack.c.b16 %v130, %v126
    %v179 = vpack.c.b16 %v135, %v131
    %v180 = vpack.c.b16 %v136, %v132
    %v181 = vpack.c.b16 %v137, %v133
    %v182 = vpack.c.b16 %v138, %v134
    %v183 = vpack.c.b16 %v143, %v139
    %v184 = vpack.c.b16 %v144, %v140
    %v185 = vpack.c.b16 %v145, %v141
    %v186 = vpack.c.b16 %v146, %v142
    %v187 = vpack.c.b16 %v151, %v147
    %v188 = vpack.c.b16 %v152, %v148
    %v189 = vpack.c.b16 %v153, %v149
    %v190 = vpack.c.b16 %v154, %v150
    %v191 = vpack.c.b16 %v159, %v155
    %v192 = vpack.c.b16 %v160, %v156
    %v193 = vpack.c.b16 %v161, %v157
    %v194 = vpack.c.b16 %v162, %v158
    %227 = vmatprep.subr.bf16.mxu0 %v164
    %228 = vmatpush1.bf16.msra.mxu0 %v163
    %229 = vmatprep.subr.bf16.mxu0 %v168
    %230 = vmatpush1.bf16.msra.mxu0 %v167
    %231 = vmatprep.subr.bf16.mxu0 %v172
    %232 = vmatpush1.bf16.msra.mxu0 %v171
    %233 = vmatprep.subr.bf16.mxu0 %v176
    %234 = vmatpush1.bf16.msra.mxu0 %v175
    %235 = vmatprep.subr.bf16.mxu0 %v180
    %236 = vmatpush1.bf16.msra.mxu0 %v179
    %237 = vmatprep.subr.bf16.mxu0 %v184
    %238 = vmatpush1.bf16.msra.mxu0 %v183
    %239 = vmatprep.subr.bf16.mxu0 %v188
    %240 = vmatpush1.bf16.msra.mxu0 %v187
    %241 = vmatprep.subr.bf16.mxu0 %v192
    %242 = vmatpush1.bf16.msra.mxu0 %v191
    %243 = vmatprep.subr.bf16.mxu0 0
    %244 = vmatpush1.bf16.msra.mxu0 0
    %245 = vmatprep.subr.bf16.mxu0 0
    %246 = vmatpush1.bf16.msra.mxu0 0
    %247 = vmatprep.subr.bf16.mxu0 0
    %248 = vmatpush1.bf16.msra.mxu0 0
    %249 = vmatprep.subr.bf16.mxu0 0
    %250 = vmatpush1.bf16.msra.mxu0 0
    %251 = vmatprep.subr.bf16.mxu0 0
    %252 = vmatpush1.bf16.msra.mxu0 0
    %253 = vmatprep.subr.bf16.mxu0 0
    %254 = vmatpush1.bf16.msra.mxu0 0
    %255 = vmatprep.subr.bf16.mxu0 0
    %256 = vmatpush1.bf16.msra.mxu0 0
    %257 = vmatprep.subr.bf16.mxu0 0
    %258 = vmatpush1.bf16.msra.mxu0 0
    %259 = vmatprep.mubr.bf16.mxu0 0
    %260 = vmatmul.mubr.bf16.gmra.mrb[0].mxu0 %v34
    %v261 = vpop.f32.mrb[0].mxu0
    %v262 = vadd.f32 0.0, %v261
    %v263 = vpop.f32.mrb[0].mxu0
    %v264 = vadd.f32 0.0, %v263
    %v265 = vpop.f32.mrb[0].mxu0
    %v266 = vpop.f32.mrb[0].mxu0
    %267 = vdwg.mxu0
    %268 = vmatprep.subr.bf16.mxu0 %v166
    %269 = vmatpush1.bf16.msra.mxu0 %v165
    %270 = vmatprep.subr.bf16.mxu0 %v170
    %271 = vmatpush1.bf16.msra.mxu0 %v169
    %272 = vmatprep.subr.bf16.mxu0 %v174
    %273 = vmatpush1.bf16.msra.mxu0 %v173
    %274 = vmatprep.subr.bf16.mxu0 %v178
    %275 = vmatpush1.bf16.msra.mxu0 %v177
    %276 = vmatprep.subr.bf16.mxu0 %v182
    %277 = vmatpush1.bf16.msra.mxu0 %v181
    %278 = vmatprep.subr.bf16.mxu0 %v186
    %279 = vmatpush1.bf16.msra.mxu0 %v185
    %280 = vmatprep.subr.bf16.mxu0 %v190
    %281 = vmatpush1.bf16.msra.mxu0 %v189
    %282 = vmatprep.subr.bf16.mxu0 %v194
    %283 = vmatpush1.bf16.msra.mxu0 %v193
    %284 = vmatprep.subr.bf16.mxu0 0
    %285 = vmatpush1.bf16.msra.mxu0 0
    %286 = vmatprep.subr.bf16.mxu0 0
    %287 = vmatpush1.bf16.msra.mxu0 0
    %288 = vmatprep.subr.bf16.mxu0 0
    %289 = vmatpush1.bf16.msra.mxu0 0
    %290 = vmatprep.subr.bf16.mxu0 0
    %291 = vmatpush1.bf16.msra.mxu0 0
    %292 = vmatprep.subr.bf16.mxu0 0
    %293 = vmatpush1.bf16.msra.mxu0 0
    %294 = vmatprep.subr.bf16.mxu0 0
    %295 = vmatpush1.bf16.msra.mxu0 0
    %296 = vmatprep.subr.bf16.mxu0 0
    %297 = vmatpush1.bf16.msra.mxu0 0
    %298 = vmatprep.subr.bf16.mxu0 0
    %299 = vmatpush1.bf16.msra.mxu0 0
    %300 = vmatprep.mubr.bf16.mxu0 0
    %301 = vmatmul.mubr.bf16.gmra.mrb[0].mxu0 %v34
    %v302 = vpop.f32.mrb[0].mxu0
    %v303 = vadd.f32 0.0, %v302
    %v304 = vpop.f32.mrb[0].mxu0
    %v305 = vadd.f32 0.0, %v304
    %v306 = vpop.f32.mrb[0].mxu0
    %v307 = vpop.f32.mrb[0].mxu0
    %308 = vdwg.mxu0
    %v313 = vcombine.low %v262, %v264
    %v314 = vcombine.low %v303, %v305
    %v316 = vunpack.c.l.s4 1983009808
    %v317 = vunpack.c.0.s8 %v316
    %v318 = vlaneseq
    %v319 = vshrl.u32 %v318, 7
    %v320 = vsub.s32 %v317, %v319
    %v321 = vrot.slane %v313, %v320
    %v323 = vunpack.c.l.s4 1983009808
    %v324 = vunpack.c.0.s8 %v323
    %v325 = vlaneseq
    %v326 = vshrl.u32 %v325, 7
    %v327 = vsub.s32 %v324, %v326
    %v328 = vrot.slane %v314, %v327
    %v329 = vcombine.low %v321, %v328
    %v331 = vadd.f32 %v33, %v329
    %v332 = vxor.u32 %v331, 2147483648
    %v333 = vmul.f32 %v332, 1.442695
    %v334 = vpow.pop %v333
    %v335 = vadd.f32 %v334, 1.0
    %v336 = vrcp.pop %v335
    %v337 = vmul.f32 1.0, %v336
    %v339 = vrot.slane %v331, 2
    %v341 = vxor.u32 %v339, 2147483648
    %v342 = vmul.f32 %v341, 1.442695
    %v343 = vpow.pop %v342
    %v344 = vadd.f32 %v343, 1.0
    %v345 = vrcp.pop %v344
    %v346 = vmul.f32 1.0, %v345
    %v347 = vrot.slane %v331, 4
    %v349 = vtanh.pop %v347
    %v350 = vrot.slane %v331, 6
    %v352 = vxor.u32 %v350, 2147483648
    %v353 = vmul.f32 %v352, 1.442695
    %v354 = vpow.pop %v353
    %v355 = vadd.f32 %v354, 1.0
    %v356 = vrcp.pop %v355
    %v357 = vmul.f32 1.0, %v356
    %v358 = vmul.f32 %v346, %v28
    %v359 = vmul.f32 %v337, %v349
    %v360 = vadd.f32 %v358, %v359
    %v361 = vtanh.pop %v360
    %v362 = vmul.f32 %v357, %v361
    %s363 = sadd.s32 %s29, 1
    %s364 = smul.u32 %s363, 4
    %s365 = smul.addr %s364, 2
    %s366 = scalar_lea.vmem %s0, %s365
    %v367 = vld [vmem:[%s366] sm:$0xff]
    %v368 = vpack.c.bf16 %v362, %v362
    %369 = vmatprep.subr.bf16.mxu0 %v164
    %370 = vmatpush1.bf16.msra.mxu0 %v163
    %371 = vmatprep.subr.bf16.mxu0 %v168
    %372 = vmatpush1.bf16.msra.mxu0 %v167
    %373 = vmatprep.subr.bf16.mxu0 %v172
    %374 = vmatpush1.bf16.msra.mxu0 %v171
    %375 = vmatprep.subr.bf16.mxu0 %v176
    %376 = vmatpush1.bf16.msra.mxu0 %v175
    %377 = vmatprep.subr.bf16.mxu0 %v180
    %378 = vmatpush1.bf16.msra.mxu0 %v179
    %379 = vmatprep.subr.bf16.mxu0 %v184
    %380 = vmatpush1.bf16.msra.mxu0 %v183
    %381 = vmatprep.subr.bf16.mxu0 %v188
    %382 = vmatpush1.bf16.msra.mxu0 %v187
    %383 = vmatprep.subr.bf16.mxu0 %v192
    %384 = vmatpush1.bf16.msra.mxu0 %v191
    %385 = vmatprep.subr.bf16.mxu0 0
    %386 = vmatpush1.bf16.msra.mxu0 0
    %387 = vmatprep.subr.bf16.mxu0 0
    %388 = vmatpush1.bf16.msra.mxu0 0
    %389 = vmatprep.subr.bf16.mxu0 0
    %390 = vmatpush1.bf16.msra.mxu0 0
    %391 = vmatprep.subr.bf16.mxu0 0
    %392 = vmatpush1.bf16.msra.mxu0 0
    %393 = vmatprep.subr.bf16.mxu0 0
    %394 = vmatpush1.bf16.msra.mxu0 0
    %395 = vmatprep.subr.bf16.mxu0 0
    %396 = vmatpush1.bf16.msra.mxu0 0
    %397 = vmatprep.subr.bf16.mxu0 0
    %398 = vmatpush1.bf16.msra.mxu0 0
    %399 = vmatprep.subr.bf16.mxu0 0
    %400 = vmatpush1.bf16.msra.mxu0 0
    %401 = vmatprep.mubr.bf16.mxu0 0
    %402 = vmatmul.mubr.bf16.gmra.mrb[0].mxu0 %v368
    %v403 = vpop.f32.mrb[0].mxu0
    %v404 = vadd.f32 0.0, %v403
    %v405 = vpop.f32.mrb[0].mxu0
    %v406 = vadd.f32 0.0, %v405
    %v407 = vpop.f32.mrb[0].mxu0
    %v408 = vpop.f32.mrb[0].mxu0
    %409 = vdwg.mxu0
    %410 = vmatprep.subr.bf16.mxu0 %v166
    %411 = vmatpush1.bf16.msra.mxu0 %v165
    %412 = vmatprep.subr.bf16.mxu0 %v170
    %413 = vmatpush1.bf16.msra.mxu0 %v169
    %414 = vmatprep.subr.bf16.mxu0 %v174
    %415 = vmatpush1.bf16.msra.mxu0 %v173
    %416 = vmatprep.subr.bf16.mxu0 %v178
    %417 = vmatpush1.bf16.msra.mxu0 %v177
    %418 = vmatprep.subr.bf16.mxu0 %v182
    %419 = vmatpush1.bf16.msra.mxu0 %v181
    %420 = vmatprep.subr.bf16.mxu0 %v186
    %421 = vmatpush1.bf16.msra.mxu0 %v185
    %422 = vmatprep.subr.bf16.mxu0 %v190
    %423 = vmatpush1.bf16.msra.mxu0 %v189
    %424 = vmatprep.subr.bf16.mxu0 %v194
    %425 = vmatpush1.bf16.msra.mxu0 %v193
    %426 = vmatprep.subr.bf16.mxu0 0
    %427 = vmatpush1.bf16.msra.mxu0 0
    %428 = vmatprep.subr.bf16.mxu0 0
    %429 = vmatpush1.bf16.msra.mxu0 0
    %430 = vmatprep.subr.bf16.mxu0 0
    %431 = vmatpush1.bf16.msra.mxu0 0
    %432 = vmatprep.subr.bf16.mxu0 0
    %433 = vmatpush1.bf16.msra.mxu0 0
    %434 = vmatprep.subr.bf16.mxu0 0
    %435 = vmatpush1.bf16.msra.mxu0 0
    %436 = vmatprep.subr.bf16.mxu0 0
    %437 = vmatpush1.bf16.msra.mxu0 0
    %438 = vmatprep.subr.bf16.mxu0 0
    %439 = vmatpush1.bf16.msra.mxu0 0
    %440 = vmatprep.subr.bf16.mxu0 0
    %441 = vmatpush1.bf16.msra.mxu0 0
    %442 = vmatprep.mubr.bf16.mxu0 0
    %443 = vmatmul.mubr.bf16.gmra.mrb[0].mxu0 %v368
    %v444 = vpop.f32.mrb[0].mxu0
    %v445 = vadd.f32 0.0, %v444
    %v446 = vpop.f32.mrb[0].mxu0
    %v447 = vadd.f32 0.0, %v446
    %v448 = vpop.f32.mrb[0].mxu0
    %v449 = vpop.f32.mrb[0].mxu0
    %450 = vdwg.mxu0
    %v455 = vcombine.low %v404, %v406
    %v456 = vcombine.low %v445, %v447
    %v458 = vunpack.c.l.s4 1983009808
    %v459 = vunpack.c.0.s8 %v458
    %v460 = vlaneseq
    %v461 = vshrl.u32 %v460, 7
    %v462 = vsub.s32 %v459, %v461
    %v463 = vrot.slane %v455, %v462
    %v465 = vunpack.c.l.s4 1983009808
    %v466 = vunpack.c.0.s8 %v465
    %v467 = vlaneseq
    %v468 = vshrl.u32 %v467, 7
    %v469 = vsub.s32 %v466, %v468
    %v470 = vrot.slane %v456, %v469
    %v471 = vcombine.low %v463, %v470
    %v473 = vadd.f32 %v367, %v471
    %v474 = vxor.u32 %v473, 2147483648
    %v475 = vmul.f32 %v474, 1.442695
    %v476 = vpow.pop %v475
    %v477 = vadd.f32 %v476, 1.0
    %v478 = vrcp.pop %v477
    %v479 = vmul.f32 1.0, %v478
    %v481 = vrot.slane %v473, 2
    %v483 = vxor.u32 %v481, 2147483648
    %v484 = vmul.f32 %v483, 1.442695
    %v485 = vpow.pop %v484
    %v486 = vadd.f32 %v485, 1.0
    %v487 = vrcp.pop %v486
    %v488 = vmul.f32 1.0, %v487
    %v489 = vrot.slane %v473, 4
    %v491 = vtanh.pop %v489
    %v492 = vrot.slane %v473, 6
    %v494 = vxor.u32 %v492, 2147483648
    %v495 = vmul.f32 %v494, 1.442695
    %v496 = vpow.pop %v495
    %v497 = vadd.f32 %v496, 1.0
    %v498 = vrcp.pop %v497
    %v499 = vmul.f32 1.0, %v498
    %v500 = vmul.f32 %v488, %v360
    %v501 = vmul.f32 %v479, %v491
    %v502 = vadd.f32 %v500, %v501
    %v503 = vtanh.pop %v502
    %v504 = vmul.f32 %v499, %v503
    %s505 = sadd.s32 %s29, 2
    %s506 = smul.u32 %s505, 4
    %s507 = smul.addr %s506, 2
    %s508 = scalar_lea.vmem %s0, %s507
    %v509 = vld [vmem:[%s508] sm:$0xff]
    %v510 = vpack.c.bf16 %v504, %v504
    %511 = vmatprep.subr.bf16.mxu0 %v164
    %512 = vmatpush1.bf16.msra.mxu0 %v163
    %513 = vmatprep.subr.bf16.mxu0 %v168
    %514 = vmatpush1.bf16.msra.mxu0 %v167
    %515 = vmatprep.subr.bf16.mxu0 %v172
    %516 = vmatpush1.bf16.msra.mxu0 %v171
    %517 = vmatprep.subr.bf16.mxu0 %v176
    %518 = vmatpush1.bf16.msra.mxu0 %v175
    %519 = vmatprep.subr.bf16.mxu0 %v180
    %520 = vmatpush1.bf16.msra.mxu0 %v179
    %521 = vmatprep.subr.bf16.mxu0 %v184
    %522 = vmatpush1.bf16.msra.mxu0 %v183
    %523 = vmatprep.subr.bf16.mxu0 %v188
    %524 = vmatpush1.bf16.msra.mxu0 %v187
    %525 = vmatprep.subr.bf16.mxu0 %v192
    %526 = vmatpush1.bf16.msra.mxu0 %v191
    %527 = vmatprep.subr.bf16.mxu0 0
    %528 = vmatpush1.bf16.msra.mxu0 0
    %529 = vmatprep.subr.bf16.mxu0 0
    %530 = vmatpush1.bf16.msra.mxu0 0
    %531 = vmatprep.subr.bf16.mxu0 0
    %532 = vmatpush1.bf16.msra.mxu0 0
    %533 = vmatprep.subr.bf16.mxu0 0
    %534 = vmatpush1.bf16.msra.mxu0 0
    %535 = vmatprep.subr.bf16.mxu0 0
    %536 = vmatpush1.bf16.msra.mxu0 0
    %537 = vmatprep.subr.bf16.mxu0 0
    %538 = vmatpush1.bf16.msra.mxu0 0
    %539 = vmatprep.subr.bf16.mxu0 0
    %540 = vmatpush1.bf16.msra.mxu0 0
    %541 = vmatprep.subr.bf16.mxu0 0
    %542 = vmatpush1.bf16.msra.mxu0 0
    %543 = vmatprep.mubr.bf16.mxu0 0
    %544 = vmatmul.mubr.bf16.gmra.mrb[0].mxu0 %v510
    %v545 = vpop.f32.mrb[0].mxu0
    %v546 = vadd.f32 0.0, %v545
    %v547 = vpop.f32.mrb[0].mxu0
    %v548 = vadd.f32 0.0, %v547
    %v549 = vpop.f32.mrb[0].mxu0
    %v550 = vpop.f32.mrb[0].mxu0
    %551 = vdwg.mxu0
    %552 = vmatprep.subr.bf16.mxu0 %v166
    %553 = vmatpush1.bf16.msra.mxu0 %v165
    %554 = vmatprep.subr.bf16.mxu0 %v170
    %555 = vmatpush1.bf16.msra.mxu0 %v169
    %556 = vmatprep.subr.bf16.mxu0 %v174
    %557 = vmatpush1.bf16.msra.mxu0 %v173
    %558 = vmatprep.subr.bf16.mxu0 %v178
    %559 = vmatpush1.bf16.msra.mxu0 %v177
    %560 = vmatprep.subr.bf16.mxu0 %v182
    %561 = vmatpush1.bf16.msra.mxu0 %v181
    %562 = vmatprep.subr.bf16.mxu0 %v186
    %563 = vmatpush1.bf16.msra.mxu0 %v185
    %564 = vmatprep.subr.bf16.mxu0 %v190
    %565 = vmatpush1.bf16.msra.mxu0 %v189
    %566 = vmatprep.subr.bf16.mxu0 %v194
    %567 = vmatpush1.bf16.msra.mxu0 %v193
    %568 = vmatprep.subr.bf16.mxu0 0
    %569 = vmatpush1.bf16.msra.mxu0 0
    %570 = vmatprep.subr.bf16.mxu0 0
    %571 = vmatpush1.bf16.msra.mxu0 0
    %572 = vmatprep.subr.bf16.mxu0 0
    %573 = vmatpush1.bf16.msra.mxu0 0
    %574 = vmatprep.subr.bf16.mxu0 0
    %575 = vmatpush1.bf16.msra.mxu0 0
    %576 = vmatprep.subr.bf16.mxu0 0
    %577 = vmatpush1.bf16.msra.mxu0 0
    %578 = vmatprep.subr.bf16.mxu0 0
    %579 = vmatpush1.bf16.msra.mxu0 0
    %580 = vmatprep.subr.bf16.mxu0 0
    %581 = vmatpush1.bf16.msra.mxu0 0
    %582 = vmatprep.subr.bf16.mxu0 0
    %583 = vmatpush1.bf16.msra.mxu0 0
    %584 = vmatprep.mubr.bf16.mxu0 0
    %585 = vmatmul.mubr.bf16.gmra.mrb[0].mxu0 %v510
    %v586 = vpop.f32.mrb[0].mxu0
    %v587 = vadd.f32 0.0, %v586
    %v588 = vpop.f32.mrb[0].mxu0
    %v589 = vadd.f32 0.0, %v588
    %v590 = vpop.f32.mrb[0].mxu0
    %v591 = vpop.f32.mrb[0].mxu0
    %592 = vdwg.mxu0
    %v597 = vcombine.low %v546, %v548
    %v598 = vcombine.low %v587, %v589
    %v600 = vunpack.c.l.s4 1983009808
    %v601 = vunpack.c.0.s8 %v600
    %v602 = vlaneseq
    %v603 = vshrl.u32 %v602, 7
    %v604 = vsub.s32 %v601, %v603
    %v605 = vrot.slane %v597, %v604
    %v607 = vunpack.c.l.s4 1983009808
    %v608 = vunpack.c.0.s8 %v607
    %v609 = vlaneseq
    %v610 = vshrl.u32 %v609, 7
    %v611 = vsub.s32 %v608, %v610
    %v612 = vrot.slane %v598, %v611
    %v613 = vcombine.low %v605, %v612
    %v615 = vadd.f32 %v509, %v613
    %v616 = vxor.u32 %v615, 2147483648
    %v617 = vmul.f32 %v616, 1.442695
    %v618 = vpow.pop %v617
    %v619 = vadd.f32 %v618, 1.0
    %v620 = vrcp.pop %v619
    %v621 = vmul.f32 1.0, %v620
    %v623 = vrot.slane %v615, 2
    %v625 = vxor.u32 %v623, 2147483648
    %v626 = vmul.f32 %v625, 1.442695
    %v627 = vpow.pop %v626
    %v628 = vadd.f32 %v627, 1.0
    %v629 = vrcp.pop %v628
    %v630 = vmul.f32 1.0, %v629
    %v631 = vrot.slane %v615, 4
    %v633 = vtanh.pop %v631
    %v634 = vrot.slane %v615, 6
    %v636 = vxor.u32 %v634, 2147483648
    %v637 = vmul.f32 %v636, 1.442695
    %v638 = vpow.pop %v637
    %v639 = vadd.f32 %v638, 1.0
    %v640 = vrcp.pop %v639
    %v641 = vmul.f32 1.0, %v640
    %v642 = vmul.f32 %v630, %v502
    %v643 = vmul.f32 %v621, %v633
    %v644 = vadd.f32 %v642, %v643
    %v645 = vtanh.pop %v644
    %v646 = vmul.f32 %v641, %v645
    %s647 = sadd.s32 %s29, 3
    %s648 = smul.u32 %s647, 4
    %s649 = smul.addr %s648, 2
    %s650 = scalar_lea.vmem %s0, %s649
    %v651 = vld [vmem:[%s650] sm:$0xff]
    %v652 = vpack.c.bf16 %v646, %v646
    %653 = vmatprep.subr.bf16.mxu0 %v164
    %654 = vmatpush1.bf16.msra.mxu0 %v163
    %655 = vmatprep.subr.bf16.mxu0 %v168
    %656 = vmatpush1.bf16.msra.mxu0 %v167
    %657 = vmatprep.subr.bf16.mxu0 %v172
    %658 = vmatpush1.bf16.msra.mxu0 %v171
    %659 = vmatprep.subr.bf16.mxu0 %v176
    %660 = vmatpush1.bf16.msra.mxu0 %v175
    %661 = vmatprep.subr.bf16.mxu0 %v180
    %662 = vmatpush1.bf16.msra.mxu0 %v179
    %663 = vmatprep.subr.bf16.mxu0 %v184
    %664 = vmatpush1.bf16.msra.mxu0 %v183
    %665 = vmatprep.subr.bf16.mxu0 %v188
    %666 = vmatpush1.bf16.msra.mxu0 %v187
    %667 = vmatprep.subr.bf16.mxu0 %v192
    %668 = vmatpush1.bf16.msra.mxu0 %v191
    %669 = vmatprep.subr.bf16.mxu0 0
    %670 = vmatpush1.bf16.msra.mxu0 0
    %671 = vmatprep.subr.bf16.mxu0 0
    %672 = vmatpush1.bf16.msra.mxu0 0
    %673 = vmatprep.subr.bf16.mxu0 0
    %674 = vmatpush1.bf16.msra.mxu0 0
    %675 = vmatprep.subr.bf16.mxu0 0
    %676 = vmatpush1.bf16.msra.mxu0 0
    %677 = vmatprep.subr.bf16.mxu0 0
    %678 = vmatpush1.bf16.msra.mxu0 0
    %679 = vmatprep.subr.bf16.mxu0 0
    %680 = vmatpush1.bf16.msra.mxu0 0
    %681 = vmatprep.subr.bf16.mxu0 0
    %682 = vmatpush1.bf16.msra.mxu0 0
    %683 = vmatprep.subr.bf16.mxu0 0
    %684 = vmatpush1.bf16.msra.mxu0 0
    %685 = vmatprep.mubr.bf16.mxu0 0
    %686 = vmatmul.mubr.bf16.gmra.mrb[0].mxu0 %v652
    %v687 = vpop.f32.mrb[0].mxu0
    %v688 = vadd.f32 0.0, %v687
    %v689 = vpop.f32.mrb[0].mxu0
    %v690 = vadd.f32 0.0, %v689
    %v691 = vpop.f32.mrb[0].mxu0
    %v692 = vpop.f32.mrb[0].mxu0
    %693 = vdwg.mxu0
    %694 = vmatprep.subr.bf16.mxu0 %v166
    %695 = vmatpush1.bf16.msra.mxu0 %v165
    %696 = vmatprep.subr.bf16.mxu0 %v170
    %697 = vmatpush1.bf16.msra.mxu0 %v169
    %698 = vmatprep.subr.bf16.mxu0 %v174
    %699 = vmatpush1.bf16.msra.mxu0 %v173
    %700 = vmatprep.subr.bf16.mxu0 %v178
    %701 = vmatpush1.bf16.msra.mxu0 %v177
    %702 = vmatprep.subr.bf16.mxu0 %v182
    %703 = vmatpush1.bf16.msra.mxu0 %v181
    %704 = vmatprep.subr.bf16.mxu0 %v186
    %705 = vmatpush1.bf16.msra.mxu0 %v185
    %706 = vmatprep.subr.bf16.mxu0 %v190
    %707 = vmatpush1.bf16.msra.mxu0 %v189
    %708 = vmatprep.subr.bf16.mxu0 %v194
    %709 = vmatpush1.bf16.msra.mxu0 %v193
    %710 = vmatprep.subr.bf16.mxu0 0
    %711 = vmatpush1.bf16.msra.mxu0 0
    %712 = vmatprep.subr.bf16.mxu0 0
    %713 = vmatpush1.bf16.msra.mxu0 0
    %714 = vmatprep.subr.bf16.mxu0 0
    %715 = vmatpush1.bf16.msra.mxu0 0
    %716 = vmatprep.subr.bf16.mxu0 0
    %717 = vmatpush1.bf16.msra.mxu0 0
    %718 = vmatprep.subr.bf16.mxu0 0
    %719 = vmatpush1.bf16.msra.mxu0 0
    %720 = vmatprep.subr.bf16.mxu0 0
    %721 = vmatpush1.bf16.msra.mxu0 0
    %722 = vmatprep.subr.bf16.mxu0 0
    %723 = vmatpush1.bf16.msra.mxu0 0
    %724 = vmatprep.subr.bf16.mxu0 0
    %725 = vmatpush1.bf16.msra.mxu0 0
    %726 = vmatprep.mubr.bf16.mxu0 0
    %727 = vmatmul.mubr.bf16.gmra.mrb[0].mxu0 %v652
    %v728 = vpop.f32.mrb[0].mxu0
    %v729 = vadd.f32 0.0, %v728
    %v730 = vpop.f32.mrb[0].mxu0
    %v731 = vadd.f32 0.0, %v730
    %v732 = vpop.f32.mrb[0].mxu0
    %v733 = vpop.f32.mrb[0].mxu0
    %734 = vdwg.mxu0
    %v739 = vcombine.low %v688, %v690
    %v740 = vcombine.low %v729, %v731
    %v742 = vunpack.c.l.s4 1983009808
    %v743 = vunpack.c.0.s8 %v742
    %v744 = vlaneseq
    %v745 = vshrl.u32 %v744, 7
    %v746 = vsub.s32 %v743, %v745
    %v747 = vrot.slane %v739, %v746
    %v749 = vunpack.c.l.s4 1983009808
    %v750 = vunpack.c.0.s8 %v749
    %v751 = vlaneseq
    %v752 = vshrl.u32 %v751, 7
    %v753 = vsub.s32 %v750, %v752
    %v754 = vrot.slane %v740, %v753
    %v755 = vcombine.low %v747, %v754
    %v757 = vadd.f32 %v651, %v755
    %v758 = vxor.u32 %v757, 2147483648
    %v759 = vmul.f32 %v758, 1.442695
    %v760 = vpow.pop %v759
    %v761 = vadd.f32 %v760, 1.0
    %v762 = vrcp.pop %v761
    %v763 = vmul.f32 1.0, %v762
    %v765 = vrot.slane %v757, 2
    %v767 = vxor.u32 %v765, 2147483648
    %v768 = vmul.f32 %v767, 1.442695
    %v769 = vpow.pop %v768
    %v770 = vadd.f32 %v769, 1.0
    %v771 = vrcp.pop %v770
    %v772 = vmul.f32 1.0, %v771
    %v773 = vrot.slane %v757, 4
    %v775 = vtanh.pop %v773
    %v776 = vrot.slane %v757, 6
    %v778 = vxor.u32 %v776, 2147483648
    %v779 = vmul.f32 %v778, 1.442695
    %v780 = vpow.pop %v779
    %v781 = vadd.f32 %v780, 1.0
    %v782 = vrcp.pop %v781
    %v783 = vmul.f32 1.0, %v782
    %v784 = vmul.f32 %v772, %v644
    %v785 = vmul.f32 %v763, %v775
    %v786 = vadd.f32 %v784, %v785
    %v787 = vtanh.pop %v786
    %v788 = vmul.f32 %v783, %v787
    %s789 = smul.u32 %s22, 2
    %s790 = scalar_lea.vmem [#allocation2], %s789
    %791 = vst [vmem:[%s790] sm:$0x3] %v788
  $region26: #{custom_rnn_forward.1} parent=0 // loop_footer
    %s26 = sadd.s32 1, %s22
  $region27: #{custom_rnn_forward.1} parent=0 // loop_footer_branch
    %21 = sbr.rel target = $region23
  $region28: #{custom_rnn_forward.1} parent=0 // loop_exit
    _
  %v792 = vld [vmem:[#allocation2] sm:$0x3]
  %793 = vst [vmem:[#allocation3] sm:$0x3] %v792
  %s794 = scalar_lea.vmem [#allocation2], 2
  %v795 = vld [vmem:[%s794] sm:$0x3]
  %s796 = scalar_lea.vmem [#allocation3], 8
  %797 = vst [vmem:[%s796] sm:$0x3] %v795
  %s798 = scalar_lea.vmem [#allocation2], 4
  %v799 = vld [vmem:[%s798] sm:$0x3]
  %s800 = scalar_lea.vmem [#allocation3], 16
  %801 = vst [vmem:[%s800] sm:$0x3] %v799
  %s802 = scalar_lea.vmem [#allocation2], 6
  %v803 = vld [vmem:[%s802] sm:$0x3]
  %s804 = scalar_lea.vmem [#allocation3], 24
  %805 = vst [vmem:[%s804] sm:$0x3] %v803
  %s806 = scalar_lea.vmem [#allocation2], 8
  %v807 = vld [vmem:[%s806] sm:$0x3]
  %s808 = scalar_lea.vmem [#allocation3], 32
  %809 = vst [vmem:[%s808] sm:$0x3] %v807
  %s810 = scalar_lea.vmem [#allocation2], 10
  %v811 = vld [vmem:[%s810] sm:$0x3]
  %s812 = scalar_lea.vmem [#allocation3], 40
  %813 = vst [vmem:[%s812] sm:$0x3] %v811
  %s814 = scalar_lea.vmem [#allocation2], 12
  %v815 = vld [vmem:[%s814] sm:$0x3]
  %s816 = scalar_lea.vmem [#allocation3], 48
  %817 = vst [vmem:[%s816] sm:$0x3] %v815
  %s818 = scalar_lea.vmem [#allocation2], 14
  %v819 = vld [vmem:[%s818] sm:$0x3]
  %s820 = scalar_lea.vmem [#allocation3], 56
  %821 = vst [vmem:[%s820] sm:$0x3] %v819
  %s822 = scalar_lea.vmem [#allocation2], 16
  %v823 = vld [vmem:[%s822] sm:$0x3]
  %s824 = scalar_lea.vmem [#allocation3], 64
  %825 = vst [vmem:[%s824] sm:$0x3] %v823
  %s826 = scalar_lea.vmem [#allocation2], 18
  %v827 = vld [vmem:[%s826] sm:$0x3]
  %s828 = scalar_lea.vmem [#allocation3], 72
  %829 = vst [vmem:[%s828] sm:$0x3] %v827
  %s830 = scalar_lea.vmem [#allocation2], 20
  %v831 = vld [vmem:[%s830] sm:$0x3]
  %s832 = scalar_lea.vmem [#allocation3], 80
  %833 = vst [vmem:[%s832] sm:$0x3] %v831
  %s834 = scalar_lea.vmem [#allocation2], 22
  %v835 = vld [vmem:[%s834] sm:$0x3]
  %s836 = scalar_lea.vmem [#allocation3], 88
  %837 = vst [vmem:[%s836] sm:$0x3] %v835
  %s838 = scalar_lea.vmem [#allocation2], 24
  %v839 = vld [vmem:[%s838] sm:$0x3]
  %s840 = scalar_lea.vmem [#allocation3], 96
  %841 = vst [vmem:[%s840] sm:$0x3] %v839
  %s842 = scalar_lea.vmem [#allocation2], 26
  %v843 = vld [vmem:[%s842] sm:$0x3]
  %s844 = scalar_lea.vmem [#allocation3], 104
  %845 = vst [vmem:[%s844] sm:$0x3] %v843
  %s846 = scalar_lea.vmem [#allocation2], 28
  %v847 = vld [vmem:[%s846] sm:$0x3]
  %s848 = scalar_lea.vmem [#allocation3], 112
  %849 = vst [vmem:[%s848] sm:$0x3] %v847
  %s850 = scalar_lea.vmem [#allocation2], 30
  %v851 = vld [vmem:[%s850] sm:$0x3]
  %s852 = scalar_lea.vmem [#allocation3], 120
  %853 = vst [vmem:[%s852] sm:$0x3] %v851
  %v854 = vld [vmem:[#allocation2] sm:$0x3]
  %855 = vst [vmem:[#allocation3 + $0x2] sm:$0x3] %v854
  %v856 = vld [vmem:[%s842] sm:$0x3]
  %857 = vst [vmem:[%s796 + $0x2] sm:$0x3] %v856
  %v858 = vld [vmem:[%s794] sm:$0x3]
  %859 = vst [vmem:[%s800 + $0x2] sm:$0x3] %v858
  %v860 = vld [vmem:[%s846] sm:$0x3]
  %861 = vst [vmem:[%s804 + $0x2] sm:$0x3] %v860
  %v862 = vld [vmem:[%s798] sm:$0x3]
  %863 = vst [vmem:[%s808 + $0x2] sm:$0x3] %v862
  %v864 = vld [vmem:[%s850] sm:$0x3]
  %865 = vst [vmem:[%s812 + $0x2] sm:$0x3] %v864
  %v866 = vld [vmem:[%s802] sm:$0x3]
  %867 = vst [vmem:[%s816 + $0x2] sm:$0x3] %v866
  %v868 = vld [vmem:[%s806] sm:$0x3]
  %869 = vst [vmem:[%s820 + $0x2] sm:$0x3] %v868
  %v870 = vld [vmem:[%s810] sm:$0x3]
  %871 = vst [vmem:[%s824 + $0x2] sm:$0x3] %v870
  %v872 = vld [vmem:[%s814] sm:$0x3]
  %873 = vst [vmem:[%s828 + $0x2] sm:$0x3] %v872
  %v874 = vld [vmem:[%s818] sm:$0x3]
  %875 = vst [vmem:[%s832 + $0x2] sm:$0x3] %v874
  %v876 = vld [vmem:[%s822] sm:$0x3]
  %877 = vst [vmem:[%s836 + $0x2] sm:$0x3] %v876
  %v878 = vld [vmem:[%s826] sm:$0x3]
  %879 = vst [vmem:[%s840 + $0x2] sm:$0x3] %v878
  %v880 = vld [vmem:[%s830] sm:$0x3]
  %881 = vst [vmem:[%s844 + $0x2] sm:$0x3] %v880
  %v882 = vld [vmem:[%s834] sm:$0x3]
  %883 = vst [vmem:[%s848 + $0x2] sm:$0x3] %v882
  %v884 = vld [vmem:[%s838] sm:$0x3]
  %885 = vst [vmem:[%s852 + $0x2] sm:$0x3] %v884
  %v886 = vld [vmem:[#allocation2] sm:$0x3]
  %887 = vst [vmem:[#allocation3 + $0x4] sm:$0x3] %v886
  %v888 = vld [vmem:[%s794] sm:$0x3]
  %889 = vst [vmem:[%s796 + $0x4] sm:$0x3] %v888
  %v890 = vld [vmem:[%s798] sm:$0x3]
  %891 = vst [vmem:[%s800 + $0x4] sm:$0x3] %v890
  %v892 = vld [vmem:[%s802] sm:$0x3]
  %893 = vst [vmem:[%s804 + $0x4] sm:$0x3] %v892
  %v894 = vld [vmem:[%s806] sm:$0x3]
  %895 = vst [vmem:[%s808 + $0x4] sm:$0x3] %v894
  %v896 = vld [vmem:[%s810] sm:$0x3]
  %897 = vst [vmem:[%s812 + $0x4] sm:$0x3] %v896
  %v898 = vld [vmem:[%s814] sm:$0x3]
  %899 = vst [vmem:[%s816 + $0x4] sm:$0x3] %v898
  %v900 = vld [vmem:[%s818] sm:$0x3]
  %901 = vst [vmem:[%s820 + $0x4] sm:$0x3] %v900
  %v902 = vld [vmem:[%s822] sm:$0x3]
  %903 = vst [vmem:[%s824 + $0x4] sm:$0x3] %v902
  %v904 = vld [vmem:[%s826] sm:$0x3]
  %905 = vst [vmem:[%s828 + $0x4] sm:$0x3] %v904
  %v906 = vld [vmem:[%s830] sm:$0x3]
  %907 = vst [vmem:[%s832 + $0x4] sm:$0x3] %v906
  %v908 = vld [vmem:[%s834] sm:$0x3]
  %909 = vst [vmem:[%s836 + $0x4] sm:$0x3] %v908
  %v910 = vld [vmem:[%s838] sm:$0x3]
  %911 = vst [vmem:[%s840 + $0x4] sm:$0x3] %v910
  %v912 = vld [vmem:[%s842] sm:$0x3]
  %913 = vst [vmem:[%s844 + $0x4] sm:$0x3] %v912
  %v914 = vld [vmem:[%s846] sm:$0x3]
  %915 = vst [vmem:[%s848 + $0x4] sm:$0x3] %v914
  %v916 = vld [vmem:[%s850] sm:$0x3]
  %917 = vst [vmem:[%s852 + $0x4] sm:$0x3] %v916
  %v918 = vld [vmem:[#allocation2] sm:$0x3]
  %919 = vst [vmem:[#allocation3 + $0x6] sm:$0x3] %v918
  %v920 = vld [vmem:[%s794] sm:$0x3]
  %921 = vst [vmem:[%s796 + $0x6] sm:$0x3] %v920
  %v922 = vld [vmem:[%s798] sm:$0x3]
  %923 = vst [vmem:[%s800 + $0x6] sm:$0x3] %v922
  %v924 = vld [vmem:[%s802] sm:$0x3]
  %925 = vst [vmem:[%s804 + $0x6] sm:$0x3] %v924
  %v926 = vld [vmem:[%s806] sm:$0x3]
  %927 = vst [vmem:[%s808 + $0x6] sm:$0x3] %v926
  %v928 = vld [vmem:[%s810] sm:$0x3]
  %929 = vst [vmem:[%s812 + $0x6] sm:$0x3] %v928
  %v930 = vld [vmem:[%s814] sm:$0x3]
  %931 = vst [vmem:[%s816 + $0x6] sm:$0x3] %v930
  %v932 = vld [vmem:[%s818] sm:$0x3]
  %933 = vst [vmem:[%s820 + $0x6] sm:$0x3] %v932
  %v934 = vld [vmem:[%s822] sm:$0x3]
  %935 = vst [vmem:[%s824 + $0x6] sm:$0x3] %v934
  %v936 = vld [vmem:[%s826] sm:$0x3]
  %937 = vst [vmem:[%s828 + $0x6] sm:$0x3] %v936
  %v938 = vld [vmem:[%s830] sm:$0x3]
  %939 = vst [vmem:[%s832 + $0x6] sm:$0x3] %v938
  %v940 = vld [vmem:[%s834] sm:$0x3]
  %941 = vst [vmem:[%s836 + $0x6] sm:$0x3] %v940
  %v942 = vld [vmem:[%s838] sm:$0x3]
  %943 = vst [vmem:[%s840 + $0x6] sm:$0x3] %v942
  %v944 = vld [vmem:[%s842] sm:$0x3]
  %945 = vst [vmem:[%s844 + $0x6] sm:$0x3] %v944
  %v946 = vld [vmem:[%s846] sm:$0x3]
  %947 = vst [vmem:[%s848 + $0x6] sm:$0x3] %v946
  %v948 = vld [vmem:[%s850] sm:$0x3]
  %949 = vst [vmem:[%s852 + $0x6] sm:$0x3] %v948
  %v950 = vld [vmem:[#allocation3] sm:$0xff]
  %v951 = vld [vmem:[#allocation3 + $0x8] sm:$0xff]
  %v952 = vld [vmem:[#allocation3 + $0x10] sm:$0xff]
  %v953 = vld [vmem:[#allocation3 + $0x18] sm:$0xff]
  %v954 = vld [vmem:[#allocation3 + $0x20] sm:$0xff]
  %v955 = vld [vmem:[#allocation3 + $0x28] sm:$0xff]
  %v956 = vld [vmem:[#allocation3 + $0x30] sm:$0xff]
  %v957 = vld [vmem:[#allocation3 + $0x38] sm:$0xff]
  %v958 = vld [vmem:[#allocation3 + $0x40] sm:$0xff]
  %v959 = vld [vmem:[#allocation3 + $0x48] sm:$0xff]
  %v960 = vld [vmem:[#allocation3 + $0x50] sm:$0xff]
  %v961 = vld [vmem:[#allocation3 + $0x58] sm:$0xff]
  %v962 = vld [vmem:[#allocation3 + $0x60] sm:$0xff]
  %v963 = vld [vmem:[#allocation3 + $0x68] sm:$0xff]
  %v964 = vld [vmem:[#allocation3 + $0x70] sm:$0xff]
  %v965 = vld [vmem:[#allocation3 + $0x78] sm:$0xff]
  %v966 = vpack.c.bf16 %v951, %v950
  %v967 = vpack.c.bf16 %v953, %v952
  %v968 = vpack.c.bf16 %v955, %v954
  %v969 = vpack.c.bf16 %v957, %v956
  %v970 = vpack.c.bf16 %v959, %v958
  %v971 = vpack.c.bf16 %v961, %v960
  %v972 = vpack.c.bf16 %v963, %v962
  %v973 = vpack.c.bf16 %v965, %v964
  %v974 = vld [vmem:[%s2] sm:$0xf]
  %v975 = vld [vmem:[%s2 + $0x4] sm:$0xf]
  %v976 = vld [vmem:[%s2 + $0x8] sm:$0xf]
  %v977 = vld [vmem:[%s2 + $0xc] sm:$0xf]
  %v978 = vld [vmem:[%s2 + $0x10] sm:$0xf]
  %v979 = vld [vmem:[%s2 + $0x14] sm:$0xf]
  %v980 = vld [vmem:[%s2 + $0x18] sm:$0xf]
  %v981 = vld [vmem:[%s2 + $0x1c] sm:$0xf]
  %v982 = vld [vmem:[%s2 + $0x20] sm:$0xf]
  %v983 = vld [vmem:[%s2 + $0x24] sm:$0xf]
  %v984 = vld [vmem:[%s2 + $0x28] sm:$0xf]
  %v985 = vld [vmem:[%s2 + $0x2c] sm:$0xf]
  %v986 = vld [vmem:[%s2 + $0x30] sm:$0xf]
  %v987 = vld [vmem:[%s2 + $0x34] sm:$0xf]
  %v988 = vld [vmem:[%s2 + $0x38] sm:$0xf]
  %v989 = vld [vmem:[%s2 + $0x3c] sm:$0xf]
  %v990 = vld [vmem:[%s4] sm:$0x1]
  %v992 = vlaneseq
  %v993 = vshrl.u32 %v992, 7
  %v994 = vsub.s32 0, %v993
  %v995 = vrot.slane %v990, %v994
  %v1013 = vunpack.c.l.b16 %v974
  %v1014 = vunpack.c.l.b16 %v975
  %v1015 = vunpack.c.l.b16 %v976
  %v1016 = vunpack.c.l.b16 %v977
  %v1017 = vunpack.c.l.b16 %v978
  %v1018 = vunpack.c.l.b16 %v979
  %v1019 = vunpack.c.l.b16 %v980
  %v1020 = vunpack.c.l.b16 %v981
  %v1021 = vunpack.c.l.b16 %v982
  %v1022 = vunpack.c.l.b16 %v983
  %v1023 = vunpack.c.l.b16 %v984
  %v1024 = vunpack.c.l.b16 %v985
  %v1025 = vunpack.c.l.b16 %v986
  %v1026 = vunpack.c.l.b16 %v987
  %v1027 = vunpack.c.l.b16 %v988
  %v1028 = vunpack.c.l.b16 %v989
  %v1029 = vpack.c.b16 %v1014, %v1013
  %v1030 = vpack.c.b16 %v1016, %v1015
  %v1031 = vpack.c.b16 %v1018, %v1017
  %v1032 = vpack.c.b16 %v1020, %v1019
  %v1033 = vpack.c.b16 %v1022, %v1021
  %v1034 = vpack.c.b16 %v1024, %v1023
  %v1035 = vpack.c.b16 %v1026, %v1025
  %v1036 = vpack.c.b16 %v1028, %v1027
  %1045 = vmatprep.subr.bf16.mxu0 0
  %1046 = vmatpush1.bf16.msra.mxu0 %v1029
  %1047 = vmatprep.subr.bf16.mxu0 0
  %1048 = vmatpush1.bf16.msra.mxu0 %v1030
  %1049 = vmatprep.subr.bf16.mxu0 0
  %1050 = vmatpush1.bf16.msra.mxu0 %v1031
  %1051 = vmatprep.subr.bf16.mxu0 0
  %1052 = vmatpush1.bf16.msra.mxu0 %v1032
  %1053 = vmatprep.subr.bf16.mxu0 0
  %1054 = vmatpush1.bf16.msra.mxu0 %v1033
  %1055 = vmatprep.subr.bf16.mxu0 0
  %1056 = vmatpush1.bf16.msra.mxu0 %v1034
  %1057 = vmatprep.subr.bf16.mxu0 0
  %1058 = vmatpush1.bf16.msra.mxu0 %v1035
  %1059 = vmatprep.subr.bf16.mxu0 0
  %1060 = vmatpush1.bf16.msra.mxu0 %v1036
  %1061 = vmatprep.subr.bf16.mxu0 0
  %1062 = vmatpush1.bf16.msra.mxu0 0
  %1063 = vmatprep.subr.bf16.mxu0 0
  %1064 = vmatpush1.bf16.msra.mxu0 0
  %1065 = vmatprep.subr.bf16.mxu0 0
  %1066 = vmatpush1.bf16.msra.mxu0 0
  %1067 = vmatprep.subr.bf16.mxu0 0
  %1068 = vmatpush1.bf16.msra.mxu0 0
  %1069 = vmatprep.subr.bf16.mxu0 0
  %1070 = vmatpush1.bf16.msra.mxu0 0
  %1071 = vmatprep.subr.bf16.mxu0 0
  %1072 = vmatpush1.bf16.msra.mxu0 0
  %1073 = vmatprep.subr.bf16.mxu0 0
  %1074 = vmatpush1.bf16.msra.mxu0 0
  %1075 = vmatprep.subr.bf16.mxu0 0
  %1076 = vmatpush1.bf16.msra.mxu0 0
  %1077 = vmatprep.mubr.bf16.mxu0 0
  %1078 = vmatmul.mubr.bf16.gmra.mrb[0].mxu0 %v966
  %v1079 = vpop.f32.mrb[0].mxu0
  %v1080 = vadd.f32 %v995, %v1079
  %v1081 = vpop.f32.mrb[0].mxu0
  %v1082 = vpop.f32.mrb[0].mxu0
  %v1083 = vadd.f32 %v995, %v1082
  %v1084 = vpop.f32.mrb[0].mxu0
  %1085 = vmatprep.mubr.bf16.mxu0 0
  %1086 = vmatmul.mubr.bf16.gmra.mrb[0].mxu0 %v967
  %v1087 = vpop.f32.mrb[0].mxu0
  %v1088 = vadd.f32 %v995, %v1087
  %v1089 = vpop.f32.mrb[0].mxu0
  %v1090 = vpop.f32.mrb[0].mxu0
  %v1091 = vadd.f32 %v995, %v1090
  %v1092 = vpop.f32.mrb[0].mxu0
  %1093 = vmatprep.mubr.bf16.mxu0 0
  %1094 = vmatmul.mubr.bf16.gmra.mrb[0].mxu0 %v968
  %v1095 = vpop.f32.mrb[0].mxu0
  %v1096 = vadd.f32 %v995, %v1095
  %v1097 = vpop.f32.mrb[0].mxu0
  %v1098 = vpop.f32.mrb[0].mxu0
  %v1099 = vadd.f32 %v995, %v1098
  %v1100 = vpop.f32.mrb[0].mxu0
  %1101 = vmatprep.mubr.bf16.mxu0 0
  %1102 = vmatmul.mubr.bf16.gmra.mrb[0].mxu0 %v969
  %v1103 = vpop.f32.mrb[0].mxu0
  %v1104 = vadd.f32 %v995, %v1103
  %v1105 = vpop.f32.mrb[0].mxu0
  %v1106 = vpop.f32.mrb[0].mxu0
  %v1107 = vadd.f32 %v995, %v1106
  %v1108 = vpop.f32.mrb[0].mxu0
  %1109 = vmatprep.mubr.bf16.mxu0 0
  %1110 = vmatmul.mubr.bf16.gmra.mrb[0].mxu0 %v970
  %v1111 = vpop.f32.mrb[0].mxu0
  %v1112 = vadd.f32 %v995, %v1111
  %v1113 = vpop.f32.mrb[0].mxu0
  %v1114 = vpop.f32.mrb[0].mxu0
  %v1115 = vadd.f32 %v995, %v1114
  %v1116 = vpop.f32.mrb[0].mxu0
  %1117 = vmatprep.mubr.bf16.mxu0 0
  %1118 = vmatmul.mubr.bf16.gmra.mrb[0].mxu0 %v971
  %v1119 = vpop.f32.mrb[0].mxu0
  %v1120 = vadd.f32 %v995, %v1119
  %v1121 = vpop.f32.mrb[0].mxu0
  %v1122 = vpop.f32.mrb[0].mxu0
  %v1123 = vadd.f32 %v995, %v1122
  %v1124 = vpop.f32.mrb[0].mxu0
  %1125 = vmatprep.mubr.bf16.mxu0 0
  %1126 = vmatmul.mubr.bf16.gmra.mrb[0].mxu0 %v972
  %v1127 = vpop.f32.mrb[0].mxu0
  %v1128 = vadd.f32 %v995, %v1127
  %v1129 = vpop.f32.mrb[0].mxu0
  %v1130 = vpop.f32.mrb[0].mxu0
  %v1131 = vadd.f32 %v995, %v1130
  %v1132 = vpop.f32.mrb[0].mxu0
  %1133 = vmatprep.mubr.bf16.mxu0 0
  %1134 = vmatmul.mubr.bf16.gmra.mrb[0].mxu0 %v973
  %v1135 = vpop.f32.mrb[0].mxu0
  %v1136 = vadd.f32 %v995, %v1135
  %v1137 = vpop.f32.mrb[0].mxu0
  %v1138 = vpop.f32.mrb[0].mxu0
  %v1139 = vadd.f32 %v995, %v1138
  %v1140 = vpop.f32.mrb[0].mxu0
  %1141 = vdwg.mxu0
  %1142 = vst [vmem:[#allocation4] sm:$0xff] %v1080
  %1143 = vst [vmem:[#allocation4 + $0x8] sm:$0xff] %v1083
  %1144 = vst [vmem:[#allocation4 + $0x10] sm:$0xff] %v1088
  %1145 = vst [vmem:[#allocation4 + $0x18] sm:$0xff] %v1091
  %1146 = vst [vmem:[#allocation4 + $0x20] sm:$0xff] %v1096
  %1147 = vst [vmem:[#allocation4 + $0x28] sm:$0xff] %v1099
  %1148 = vst [vmem:[#allocation4 + $0x30] sm:$0xff] %v1104
  %1149 = vst [vmem:[#allocation4 + $0x38] sm:$0xff] %v1107
  %1150 = vst [vmem:[#allocation4 + $0x40] sm:$0xff] %v1112
  %1151 = vst [vmem:[#allocation4 + $0x48] sm:$0xff] %v1115
  %1152 = vst [vmem:[#allocation4 + $0x50] sm:$0xff] %v1120
  %1153 = vst [vmem:[#allocation4 + $0x58] sm:$0xff] %v1123
  %1154 = vst [vmem:[#allocation4 + $0x60] sm:$0xff] %v1128
  %1155 = vst [vmem:[#allocation4 + $0x68] sm:$0xff] %v1131
  %1156 = vst [vmem:[#allocation4 + $0x70] sm:$0xff] %v1136
  %1157 = vst [vmem:[#allocation4 + $0x78] sm:$0xff] %v1139
  %v1158 = vld [vmem:[#allocation4] sm:$0xff]
  %v1159 = vld [vmem:[%s3] sm:$0xf]
  %v1160 = vld [vmem:[%s3 + $0x4] sm:$0xf]
  %v1161 = vld [vmem:[%s3 + $0x8] sm:$0xf]
  %v1162 = vld [vmem:[%s3 + $0xc] sm:$0xf]
  %v1167 = vunpack.c.l.b16 %v1159
  %v1168 = vunpack.c.l.b16 %v1160
  %v1169 = vunpack.c.l.b16 %v1161
  %v1170 = vunpack.c.l.b16 %v1162
  %v1171 = vpack.c.b16 %v1168, %v1167
  %v1172 = vpack.c.b16 %v1170, %v1169
  %vm1175 = vcmask 261120
  %v1177 = vsel %vm1175, 0, 0
  %1179 = vmatprep.subr.bf16.mxu0 0
  %1180 = vmatpush1.bf16.msra.mxu0 %v1171
  %1181 = vmatprep.subr.bf16.mxu0 0
  %1182 = vmatpush1.bf16.msra.mxu0 %v1172
  %1183 = vmatprep.subr.bf16.mxu0 0
  %1184 = vmatpush1.bf16.msra.mxu0 0
  %1185 = vmatprep.subr.bf16.mxu0 0
  %1186 = vmatpush1.bf16.msra.mxu0 0
  %1187 = vmatprep.subr.bf16.mxu0 0
  %1188 = vmatpush1.bf16.msra.mxu0 0
  %1189 = vmatprep.subr.bf16.mxu0 0
  %1190 = vmatpush1.bf16.msra.mxu0 0
  %1191 = vmatprep.subr.bf16.mxu0 0
  %1192 = vmatpush1.bf16.msra.mxu0 0
  %1193 = vmatprep.subr.bf16.mxu0 0
  %1194 = vmatpush1.bf16.msra.mxu0 0
  %1195 = vmatprep.subr.bf16.mxu0 0
  %1196 = vmatpush1.bf16.msra.mxu0 0
  %1197 = vmatprep.subr.bf16.mxu0 0
  %1198 = vmatpush1.bf16.msra.mxu0 0
  %1199 = vmatprep.subr.bf16.mxu0 0
  %1200 = vmatpush1.bf16.msra.mxu0 0
  %1201 = vmatprep.subr.bf16.mxu0 0
  %1202 = vmatpush1.bf16.msra.mxu0 0
  %1203 = vmatprep.subr.bf16.mxu0 0
  %1204 = vmatpush1.bf16.msra.mxu0 0
  %1205 = vmatprep.subr.bf16.mxu0 0
  %1206 = vmatpush1.bf16.msra.mxu0 0
  %1207 = vmatprep.subr.bf16.mxu0 0
  %1208 = vmatpush1.bf16.msra.mxu0 0
  %1209 = vmatprep.subr.bf16.mxu0 0
  %1210 = vmatpush1.bf16.msra.mxu0 0
  %1211 = vmatprep.mubr.bf16.mxu0 0
  %1212 = vmatmul.mubr.bf16.gmra.mrb[0].mxu0 %v1177
  %v1213 = vpop.f32.mrb[0].mxu0
  %v1214 = vadd.f32 0.0, %v1213
  %v1215 = vpop.f32.mrb[0].mxu0
  %v1216 = vpop.f32.mrb[0].mxu0
  %v1217 = vpop.f32.mrb[0].mxu0
  %1218 = vdwg.mxu0
  %v1219 = vadd.f32 %v1158, %v1214
  %v1220 = vxor.u32 %v1219, 2147483648
  %v1221 = vmul.f32 %v1220, 1.442695
  %v1222 = vpow.pop %v1221
  %v1223 = vadd.f32 %v1222, 1.0
  %v1224 = vrcp.pop %v1223
  %v1225 = vmul.f32 1.0, %v1224
  %v1226 = vtanh.pop %v1219
  %v1227 = vmul.f32 %v1225, 0.0
  %1229 = vrot.lane.b32.xlu0 %v1226, 64
  %v1230 = vpop.permute.xlu0 %1229
  %v1232 = vmul.f32 %v1225, %v1230
  %1234 = vrot.lane.b32.xlu0 %v1232, 32
  %v1235 = vpop.permute.xlu0 %1234
  %v1237 = vadd.f32 %v1227, %v1235
  %v1238 = vtanh.pop %v1237
  %1240 = vrot.lane.b32.xlu0 %v1238, 64
  %v1241 = vpop.permute.xlu0 %1240
  %v1243 = vmul.f32 %v1225, %v1241
  %1245 = vrot.lane.b32.xlu0 %v1243, 32
  %v1246 = vpop.permute.xlu0 %1245
  %1248 = vst.msk [vmem:[%s5] sm:$0xff] %vm1175, %v1246
  %s1249 = scalar_lea.vmem [#allocation4], 8
  %v1250 = vld [vmem:[%s1249] sm:$0xff]
  %v1251 = vpack.c.bf16 %v1243, %v1243
  %v1252 = vld [vmem:[%s3] sm:$0xf]
  %v1253 = vld [vmem:[%s3 + $0x4] sm:$0xf]
  %v1254 = vld [vmem:[%s3 + $0x8] sm:$0xf]
  %v1255 = vld [vmem:[%s3 + $0xc] sm:$0xf]
  %1257 = vrot.lane.b32.xlu0 %v1251, 32
  %v1258 = vpop.permute.xlu0 %1257
  %v1263 = vunpack.c.l.b16 %v1252
  %v1264 = vunpack.c.l.b16 %v1253
  %v1265 = vunpack.c.l.b16 %v1254
  %v1266 = vunpack.c.l.b16 %v1255
  %v1267 = vpack.c.b16 %v1264, %v1263
  %v1268 = vpack.c.b16 %v1266, %v1265
  %v1272 = vsel %vm1175, %v1258, 0
  %1274 = vmatprep.subr.bf16.mxu0 0
  %1275 = vmatpush1.bf16.msra.mxu0 %v1267
  %1276 = vmatprep.subr.bf16.mxu0 0
  %1277 = vmatpush1.bf16.msra.mxu0 %v1268
  %1278 = vmatprep.subr.bf16.mxu0 0
  %1279 = vmatpush1.bf16.msra.mxu0 0
  %1280 = vmatprep.subr.bf16.mxu0 0
  %1281 = vmatpush1.bf16.msra.mxu0 0
  %1282 = vmatprep.subr.bf16.mxu0 0
  %1283 = vmatpush1.bf16.msra.mxu0 0
  %1284 = vmatprep.subr.bf16.mxu0 0
  %1285 = vmatpush1.bf16.msra.mxu0 0
  %1286 = vmatprep.subr.bf16.mxu0 0
  %1287 = vmatpush1.bf16.msra.mxu0 0
  %1288 = vmatprep.subr.bf16.mxu0 0
  %1289 = vmatpush1.bf16.msra.mxu0 0
  %1290 = vmatprep.subr.bf16.mxu0 0
  %1291 = vmatpush1.bf16.msra.mxu0 0
  %1292 = vmatprep.subr.bf16.mxu0 0
  %1293 = vmatpush1.bf16.msra.mxu0 0
  %1294 = vmatprep.subr.bf16.mxu0 0
  %1295 = vmatpush1.bf16.msra.mxu0 0
  %1296 = vmatprep.subr.bf16.mxu0 0
  %1297 = vmatpush1.bf16.msra.mxu0 0
  %1298 = vmatprep.subr.bf16.mxu0 0
  %1299 = vmatpush1.bf16.msra.mxu0 0
  %1300 = vmatprep.subr.bf16.mxu0 0
  %1301 = vmatpush1.bf16.msra.mxu0 0
  %1302 = vmatprep.subr.bf16.mxu0 0
  %1303 = vmatpush1.bf16.msra.mxu0 0
  %1304 = vmatprep.subr.bf16.mxu0 0
  %1305 = vmatpush1.bf16.msra.mxu0 0
  %1306 = vmatprep.mubr.bf16.mxu0 0
  %1307 = vmatmul.mubr.bf16.gmra.mrb[0].mxu0 %v1272
  %v1308 = vpop.f32.mrb[0].mxu0
  %v1309 = vadd.f32 0.0, %v1308
  %v1310 = vpop.f32.mrb[0].mxu0
  %v1311 = vpop.f32.mrb[0].mxu0
  %v1312 = vpop.f32.mrb[0].mxu0
  %1313 = vdwg.mxu0
  %v1314 = vadd.f32 %v1250, %v1309
  %v1315 = vxor.u32 %v1314, 2147483648
  %v1316 = vmul.f32 %v1315, 1.442695
  %v1317 = vpow.pop %v1316
  %v1318 = vadd.f32 %v1317, 1.0
  %v1319 = vrcp.pop %v1318
  %v1320 = vmul.f32 1.0, %v1319
  %v1321 = vtanh.pop %v1314
  %v1322 = vmul.f32 %v1320, %v1237
  %1324 = vrot.lane.b32.xlu0 %v1321, 64
  %v1325 = vpop.permute.xlu0 %1324
  %v1327 = vmul.f32 %v1320, %v1325
  %1329 = vrot.lane.b32.xlu0 %v1327, 32
  %v1330 = vpop.permute.xlu0 %1329
  %v1332 = vadd.f32 %v1322, %v1330
  %v1333 = vtanh.pop %v1332
  %1335 = vrot.lane.b32.xlu0 %v1333, 64
  %v1336 = vpop.permute.xlu0 %1335
  %v1338 = vmul.f32 %v1320, %v1336
  %1340 = vrot.lane.b32.xlu0 %v1338, 32
  %v1341 = vpop.permute.xlu0 %1340
  %s1343 = scalar_lea.vmem %s5, 8
  %1344 = vst.msk [vmem:[%s1343] sm:$0xff] %vm1175, %v1341
  %s1345 = scalar_lea.vmem [#allocation4], 16
  %v1346 = vld [vmem:[%s1345] sm:$0xff]
  %v1347 = vpack.c.bf16 %v1338, %v1338
  %v1348 = vld [vmem:[%s3] sm:$0xf]
  %v1349 = vld [vmem:[%s3 + $0x4] sm:$0xf]
  %v1350 = vld [vmem:[%s3 + $0x8] sm:$0xf]
  %v1351 = vld [vmem:[%s3 + $0xc] sm:$0xf]
  %1353 = vrot.lane.b32.xlu0 %v1347, 32
  %v1354 = vpop.permute.xlu0 %1353
  %v1359 = vunpack.c.l.b16 %v1348
  %v1360 = vunpack.c.l.b16 %v1349
  %v1361 = vunpack.c.l.b16 %v1350
  %v1362 = vunpack.c.l.b16 %v1351
  %v1363 = vpack.c.b16 %v1360, %v1359
  %v1364 = vpack.c.b16 %v1362, %v1361
  %v1368 = vsel %vm1175, %v1354, 0
  %1370 = vmatprep.subr.bf16.mxu0 0
  %1371 = vmatpush1.bf16.msra.mxu0 %v1363
  %1372 = vmatprep.subr.bf16.mxu0 0
  %1373 = vmatpush1.bf16.msra.mxu0 %v1364
  %1374 = vmatprep.subr.bf16.mxu0 0
  %1375 = vmatpush1.bf16.msra.mxu0 0
  %1376 = vmatprep.subr.bf16.mxu0 0
  %1377 = vmatpush1.bf16.msra.mxu0 0
  %1378 = vmatprep.subr.bf16.mxu0 0
  %1379 = vmatpush1.bf16.msra.mxu0 0
  %1380 = vmatprep.subr.bf16.mxu0 0
  %1381 = vmatpush1.bf16.msra.mxu0 0
  %1382 = vmatprep.subr.bf16.mxu0 0
  %1383 = vmatpush1.bf16.msra.mxu0 0
  %1384 = vmatprep.subr.bf16.mxu0 0
  %1385 = vmatpush1.bf16.msra.mxu0 0
  %1386 = vmatprep.subr.bf16.mxu0 0
  %1387 = vmatpush1.bf16.msra.mxu0 0
  %1388 = vmatprep.subr.bf16.mxu0 0
  %1389 = vmatpush1.bf16.msra.mxu0 0
  %1390 = vmatprep.subr.bf16.mxu0 0
  %1391 = vmatpush1.bf16.msra.mxu0 0
  %1392 = vmatprep.subr.bf16.mxu0 0
  %1393 = vmatpush1.bf16.msra.mxu0 0
  %1394 = vmatprep.subr.bf16.mxu0 0
  %1395 = vmatpush1.bf16.msra.mxu0 0
  %1396 = vmatprep.subr.bf16.mxu0 0
  %1397 = vmatpush1.bf16.msra.mxu0 0
  %1398 = vmatprep.subr.bf16.mxu0 0
  %1399 = vmatpush1.bf16.msra.mxu0 0
  %1400 = vmatprep.subr.bf16.mxu0 0
  %1401 = vmatpush1.bf16.msra.mxu0 0
  %1402 = vmatprep.mubr.bf16.mxu0 0
  %1403 = vmatmul.mubr.bf16.gmra.mrb[0].mxu0 %v1368
  %v1404 = vpop.f32.mrb[0].mxu0
  %v1405 = vadd.f32 0.0, %v1404
  %v1406 = vpop.f32.mrb[0].mxu0
  %v1407 = vpop.f32.mrb[0].mxu0
  %v1408 = vpop.f32.mrb[0].mxu0
  %1409 = vdwg.mxu0
  %v1410 = vadd.f32 %v1346, %v1405
  %v1411 = vxor.u32 %v1410, 2147483648
  %v1412 = vmul.f32 %v1411, 1.442695
  %v1413 = vpow.pop %v1412
  %v1414 = vadd.f32 %v1413, 1.0
  %v1415 = vrcp.pop %v1414
  %v1416 = vmul.f32 1.0, %v1415
  %v1417 = vtanh.pop %v1410
  %v1418 = vmul.f32 %v1416, %v1332
  %1420 = vrot.lane.b32.xlu0 %v1417, 64
  %v1421 = vpop.permute.xlu0 %1420
  %v1423 = vmul.f32 %v1416, %v1421
  %1425 = vrot.lane.b32.xlu0 %v1423, 32
  %v1426 = vpop.permute.xlu0 %1425
  %v1428 = vadd.f32 %v1418, %v1426
  %v1429 = vtanh.pop %v1428
  %1431 = vrot.lane.b32.xlu0 %v1429, 64
  %v1432 = vpop.permute.xlu0 %1431
  %v1434 = vmul.f32 %v1416, %v1432
  %1436 = vrot.lane.b32.xlu0 %v1434, 32
  %v1437 = vpop.permute.xlu0 %1436
  %s1439 = scalar_lea.vmem %s5, 16
  %1440 = vst.msk [vmem:[%s1439] sm:$0xff] %vm1175, %v1437
  %s1441 = scalar_lea.vmem [#allocation4], 24
  %v1442 = vld [vmem:[%s1441] sm:$0xff]
  %v1443 = vpack.c.bf16 %v1434, %v1434
  %v1444 = vld [vmem:[%s3] sm:$0xf]
  %v1445 = vld [vmem:[%s3 + $0x4] sm:$0xf]
  %v1446 = vld [vmem:[%s3 + $0x8] sm:$0xf]
  %v1447 = vld [vmem:[%s3 + $0xc] sm:$0xf]
  %1449 = vrot.lane.b32.xlu0 %v1443, 32
  %v1450 = vpop.permute.xlu0 %1449
  %v1455 = vunpack.c.l.b16 %v1444
  %v1456 = vunpack.c.l.b16 %v1445
  %v1457 = vunpack.c.l.b16 %v1446
  %v1458 = vunpack.c.l.b16 %v1447
  %v1459 = vpack.c.b16 %v1456, %v1455
  %v1460 = vpack.c.b16 %v1458, %v1457
  %v1464 = vsel %vm1175, %v1450, 0
  %1466 = vmatprep.subr.bf16.mxu0 0
  %1467 = vmatpush1.bf16.msra.mxu0 %v1459
  %1468 = vmatprep.subr.bf16.mxu0 0
  %1469 = vmatpush1.bf16.msra.mxu0 %v1460
  %1470 = vmatprep.subr.bf16.mxu0 0
  %1471 = vmatpush1.bf16.msra.mxu0 0
  %1472 = vmatprep.subr.bf16.mxu0 0
  %1473 = vmatpush1.bf16.msra.mxu0 0
  %1474 = vmatprep.subr.bf16.mxu0 0
  %1475 = vmatpush1.bf16.msra.mxu0 0
  %1476 = vmatprep.subr.bf16.mxu0 0
  %1477 = vmatpush1.bf16.msra.mxu0 0
  %1478 = vmatprep.subr.bf16.mxu0 0
  %1479 = vmatpush1.bf16.msra.mxu0 0
  %1480 = vmatprep.subr.bf16.mxu0 0
  %1481 = vmatpush1.bf16.msra.mxu0 0
  %1482 = vmatprep.subr.bf16.mxu0 0
  %1483 = vmatpush1.bf16.msra.mxu0 0
  %1484 = vmatprep.subr.bf16.mxu0 0
  %1485 = vmatpush1.bf16.msra.mxu0 0
  %1486 = vmatprep.subr.bf16.mxu0 0
  %1487 = vmatpush1.bf16.msra.mxu0 0
  %1488 = vmatprep.subr.bf16.mxu0 0
  %1489 = vmatpush1.bf16.msra.mxu0 0
  %1490 = vmatprep.subr.bf16.mxu0 0
  %1491 = vmatpush1.bf16.msra.mxu0 0
  %1492 = vmatprep.subr.bf16.mxu0 0
  %1493 = vmatpush1.bf16.msra.mxu0 0
  %1494 = vmatprep.subr.bf16.mxu0 0
  %1495 = vmatpush1.bf16.msra.mxu0 0
  %1496 = vmatprep.subr.bf16.mxu0 0
  %1497 = vmatpush1.bf16.msra.mxu0 0
  %1498 = vmatprep.mubr.bf16.mxu0 0
  %1499 = vmatmul.mubr.bf16.gmra.mrb[0].mxu0 %v1464
  %v1500 = vpop.f32.mrb[0].mxu0
  %v1501 = vadd.f32 0.0, %v1500
  %v1502 = vpop.f32.mrb[0].mxu0
  %v1503 = vpop.f32.mrb[0].mxu0
  %v1504 = vpop.f32.mrb[0].mxu0
  %1505 = vdwg.mxu0
  %v1506 = vadd.f32 %v1442, %v1501
  %v1507 = vxor.u32 %v1506, 2147483648
  %v1508 = vmul.f32 %v1507, 1.442695
  %v1509 = vpow.pop %v1508
  %v1510 = vadd.f32 %v1509, 1.0
  %v1511 = vrcp.pop %v1510
  %v1512 = vmul.f32 1.0, %v1511
  %v1513 = vtanh.pop %v1506
  %v1514 = vmul.f32 %v1512, %v1428
  %1516 = vrot.lane.b32.xlu0 %v1513, 64
  %v1517 = vpop.permute.xlu0 %1516
  %v1519 = vmul.f32 %v1512, %v1517
  %1521 = vrot.lane.b32.xlu0 %v1519, 32
  %v1522 = vpop.permute.xlu0 %1521
  %v1524 = vadd.f32 %v1514, %v1522
  %v1525 = vtanh.pop %v1524
  %1527 = vrot.lane.b32.xlu0 %v1525, 64
  %v1528 = vpop.permute.xlu0 %1527
  %v1530 = vmul.f32 %v1512, %v1528
  %1532 = vrot.lane.b32.xlu0 %v1530, 32
  %v1533 = vpop.permute.xlu0 %1532
  %s1535 = scalar_lea.vmem %s5, 24
  %1536 = vst.msk [vmem:[%s1535] sm:$0xff] %vm1175, %v1533
  %s1537 = scalar_lea.vmem [#allocation4], 32
  %v1538 = vld [vmem:[%s1537] sm:$0xff]
  %v1539 = vpack.c.bf16 %v1530, %v1530
  %v1540 = vld [vmem:[%s3] sm:$0xf]
  %v1541 = vld [vmem:[%s3 + $0x4] sm:$0xf]
  %v1542 = vld [vmem:[%s3 + $0x8] sm:$0xf]
  %v1543 = vld [vmem:[%s3 + $0xc] sm:$0xf]
  %1545 = vrot.lane.b32.xlu0 %v1539, 32
  %v1546 = vpop.permute.xlu0 %1545
  %v1551 = vunpack.c.l.b16 %v1540
  %v1552 = vunpack.c.l.b16 %v1541
  %v1553 = vunpack.c.l.b16 %v1542
  %v1554 = vunpack.c.l.b16 %v1543
  %v1555 = vpack.c.b16 %v1552, %v1551
  %v1556 = vpack.c.b16 %v1554, %v1553
  %v1560 = vsel %vm1175, %v1546, 0
  %1562 = vmatprep.subr.bf16.mxu0 0
  %1563 = vmatpush1.bf16.msra.mxu0 %v1555
  %1564 = vmatprep.subr.bf16.mxu0 0
  %1565 = vmatpush1.bf16.msra.mxu0 %v1556
  %1566 = vmatprep.subr.bf16.mxu0 0
  %1567 = vmatpush1.bf16.msra.mxu0 0
  %1568 = vmatprep.subr.bf16.mxu0 0
  %1569 = vmatpush1.bf16.msra.mxu0 0
  %1570 = vmatprep.subr.bf16.mxu0 0
  %1571 = vmatpush1.bf16.msra.mxu0 0
  %1572 = vmatprep.subr.bf16.mxu0 0
  %1573 = vmatpush1.bf16.msra.mxu0 0
  %1574 = vmatprep.subr.bf16.mxu0 0
  %1575 = vmatpush1.bf16.msra.mxu0 0
  %1576 = vmatprep.subr.bf16.mxu0 0
  %1577 = vmatpush1.bf16.msra.mxu0 0
  %1578 = vmatprep.subr.bf16.mxu0 0
  %1579 = vmatpush1.bf16.msra.mxu0 0
  %1580 = vmatprep.subr.bf16.mxu0 0
  %1581 = vmatpush1.bf16.msra.mxu0 0
  %1582 = vmatprep.subr.bf16.mxu0 0
  %1583 = vmatpush1.bf16.msra.mxu0 0
  %1584 = vmatprep.subr.bf16.mxu0 0
  %1585 = vmatpush1.bf16.msra.mxu0 0
  %1586 = vmatprep.subr.bf16.mxu0 0
  %1587 = vmatpush1.bf16.msra.mxu0 0
  %1588 = vmatprep.subr.bf16.mxu0 0
  %1589 = vmatpush1.bf16.msra.mxu0 0
  %1590 = vmatprep.subr.bf16.mxu0 0
  %1591 = vmatpush1.bf16.msra.mxu0 0
  %1592 = vmatprep.subr.bf16.mxu0 0
  %1593 = vmatpush1.bf16.msra.mxu0 0
  %1594 = vmatprep.mubr.bf16.mxu0 0
  %1595 = vmatmul.mubr.bf16.gmra.mrb[0].mxu0 %v1560
  %v1596 = vpop.f32.mrb[0].mxu0
  %v1597 = vadd.f32 0.0, %v1596
  %v1598 = vpop.f32.mrb[0].mxu0
  %v1599 = vpop.f32.mrb[0].mxu0
  %v1600 = vpop.f32.mrb[0].mxu0
  %1601 = vdwg.mxu0
  %v1602 = vadd.f32 %v1538, %v1597
  %v1603 = vxor.u32 %v1602, 2147483648
  %v1604 = vmul.f32 %v1603, 1.442695
  %v1605 = vpow.pop %v1604
  %v1606 = vadd.f32 %v1605, 1.0
  %v1607 = vrcp.pop %v1606
  %v1608 = vmul.f32 1.0, %v1607
  %v1609 = vtanh.pop %v1602
  %v1610 = vmul.f32 %v1608, %v1524
  %1612 = vrot.lane.b32.xlu0 %v1609, 64
  %v1613 = vpop.permute.xlu0 %1612
  %v1615 = vmul.f32 %v1608, %v1613
  %1617 = vrot.lane.b32.xlu0 %v1615, 32
  %v1618 = vpop.permute.xlu0 %1617
  %v1620 = vadd.f32 %v1610, %v1618
  %v1621 = vtanh.pop %v1620
  %1623 = vrot.lane.b32.xlu0 %v1621, 64
  %v1624 = vpop.permute.xlu0 %1623
  %v1626 = vmul.f32 %v1608, %v1624
  %1628 = vrot.lane.b32.xlu0 %v1626, 32
  %v1629 = vpop.permute.xlu0 %1628
  %s1631 = scalar_lea.vmem %s5, 32
  %1632 = vst.msk [vmem:[%s1631] sm:$0xff] %vm1175, %v1629
  %s1633 = scalar_lea.vmem [#allocation4], 40
  %v1634 = vld [vmem:[%s1633] sm:$0xff]
  %v1635 = vpack.c.bf16 %v1626, %v1626
  %v1636 = vld [vmem:[%s3] sm:$0xf]
  %v1637 = vld [vmem:[%s3 + $0x4] sm:$0xf]
  %v1638 = vld [vmem:[%s3 + $0x8] sm:$0xf]
  %v1639 = vld [vmem:[%s3 + $0xc] sm:$0xf]
  %1641 = vrot.lane.b32.xlu0 %v1635, 32
  %v1642 = vpop.permute.xlu0 %1641
  %v1647 = vunpack.c.l.b16 %v1636
  %v1648 = vunpack.c.l.b16 %v1637
  %v1649 = vunpack.c.l.b16 %v1638
  %v1650 = vunpack.c.l.b16 %v1639
  %v1651 = vpack.c.b16 %v1648, %v1647
  %v1652 = vpack.c.b16 %v1650, %v1649
  %v1656 = vsel %vm1175, %v1642, 0
  %1658 = vmatprep.subr.bf16.mxu0 0
  %1659 = vmatpush1.bf16.msra.mxu0 %v1651
  %1660 = vmatprep.subr.bf16.mxu0 0
  %1661 = vmatpush1.bf16.msra.mxu0 %v1652
  %1662 = vmatprep.subr.bf16.mxu0 0
  %1663 = vmatpush1.bf16.msra.mxu0 0
  %1664 = vmatprep.subr.bf16.mxu0 0
  %1665 = vmatpush1.bf16.msra.mxu0 0
  %1666 = vmatprep.subr.bf16.mxu0 0
  %1667 = vmatpush1.bf16.msra.mxu0 0
  %1668 = vmatprep.subr.bf16.mxu0 0
  %1669 = vmatpush1.bf16.msra.mxu0 0
  %1670 = vmatprep.subr.bf16.mxu0 0
  %1671 = vmatpush1.bf16.msra.mxu0 0
  %1672 = vmatprep.subr.bf16.mxu0 0
  %1673 = vmatpush1.bf16.msra.mxu0 0
  %1674 = vmatprep.subr.bf16.mxu0 0
  %1675 = vmatpush1.bf16.msra.mxu0 0
  %1676 = vmatprep.subr.bf16.mxu0 0
  %1677 = vmatpush1.bf16.msra.mxu0 0
  %1678 = vmatprep.subr.bf16.mxu0 0
  %1679 = vmatpush1.bf16.msra.mxu0 0
  %1680 = vmatprep.subr.bf16.mxu0 0
  %1681 = vmatpush1.bf16.msra.mxu0 0
  %1682 = vmatprep.subr.bf16.mxu0 0
  %1683 = vmatpush1.bf16.msra.mxu0 0
  %1684 = vmatprep.subr.bf16.mxu0 0
  %1685 = vmatpush1.bf16.msra.mxu0 0
  %1686 = vmatprep.subr.bf16.mxu0 0
  %1687 = vmatpush1.bf16.msra.mxu0 0
  %1688 = vmatprep.subr.bf16.mxu0 0
  %1689 = vmatpush1.bf16.msra.mxu0 0
  %1690 = vmatprep.mubr.bf16.mxu0 0
  %1691 = vmatmul.mubr.bf16.gmra.mrb[0].mxu0 %v1656
  %v1692 = vpop.f32.mrb[0].mxu0
  %v1693 = vadd.f32 0.0, %v1692
  %v1694 = vpop.f32.mrb[0].mxu0
  %v1695 = vpop.f32.mrb[0].mxu0
  %v1696 = vpop.f32.mrb[0].mxu0
  %1697 = vdwg.mxu0
  %v1698 = vadd.f32 %v1634, %v1693
  %v1699 = vxor.u32 %v1698, 2147483648
  %v1700 = vmul.f32 %v1699, 1.442695
  %v1701 = vpow.pop %v1700
  %v1702 = vadd.f32 %v1701, 1.0
  %v1703 = vrcp.pop %v1702
  %v1704 = vmul.f32 1.0, %v1703
  %v1705 = vtanh.pop %v1698
  %v1706 = vmul.f32 %v1704, %v1620
  %1708 = vrot.lane.b32.xlu0 %v1705, 64
  %v1709 = vpop.permute.xlu0 %1708
  %v1711 = vmul.f32 %v1704, %v1709
  %1713 = vrot.lane.b32.xlu0 %v1711, 32
  %v1714 = vpop.permute.xlu0 %1713
  %v1716 = vadd.f32 %v1706, %v1714
  %v1717 = vtanh.pop %v1716
  %1719 = vrot.lane.b32.xlu0 %v1717, 64
  %v1720 = vpop.permute.xlu0 %1719
  %v1722 = vmul.f32 %v1704, %v1720
  %1724 = vrot.lane.b32.xlu0 %v1722, 32
  %v1725 = vpop.permute.xlu0 %1724
  %s1727 = scalar_lea.vmem %s5, 40
  %1728 = vst.msk [vmem:[%s1727] sm:$0xff] %vm1175, %v1725
  %s1729 = scalar_lea.vmem [#allocation4], 48
  %v1730 = vld [vmem:[%s1729] sm:$0xff]
  %v1731 = vpack.c.bf16 %v1722, %v1722
  %v1732 = vld [vmem:[%s3] sm:$0xf]
  %v1733 = vld [vmem:[%s3 + $0x4] sm:$0xf]
  %v1734 = vld [vmem:[%s3 + $0x8] sm:$0xf]
  %v1735 = vld [vmem:[%s3 + $0xc] sm:$0xf]
  %1737 = vrot.lane.b32.xlu0 %v1731, 32
  %v1738 = vpop.permute.xlu0 %1737
  %v1743 = vunpack.c.l.b16 %v1732
  %v1744 = vunpack.c.l.b16 %v1733
  %v1745 = vunpack.c.l.b16 %v1734
  %v1746 = vunpack.c.l.b16 %v1735
  %v1747 = vpack.c.b16 %v1744, %v1743
  %v1748 = vpack.c.b16 %v1746, %v1745
  %v1752 = vsel %vm1175, %v1738, 0
  %1754 = vmatprep.subr.bf16.mxu0 0
  %1755 = vmatpush1.bf16.msra.mxu0 %v1747
  %1756 = vmatprep.subr.bf16.mxu0 0
  %1757 = vmatpush1.bf16.msra.mxu0 %v1748
  %1758 = vmatprep.subr.bf16.mxu0 0
  %1759 = vmatpush1.bf16.msra.mxu0 0
  %1760 = vmatprep.subr.bf16.mxu0 0
  %1761 = vmatpush1.bf16.msra.mxu0 0
  %1762 = vmatprep.subr.bf16.mxu0 0
  %1763 = vmatpush1.bf16.msra.mxu0 0
  %1764 = vmatprep.subr.bf16.mxu0 0
  %1765 = vmatpush1.bf16.msra.mxu0 0
  %1766 = vmatprep.subr.bf16.mxu0 0
  %1767 = vmatpush1.bf16.msra.mxu0 0
  %1768 = vmatprep.subr.bf16.mxu0 0
  %1769 = vmatpush1.bf16.msra.mxu0 0
  %1770 = vmatprep.subr.bf16.mxu0 0
  %1771 = vmatpush1.bf16.msra.mxu0 0
  %1772 = vmatprep.subr.bf16.mxu0 0
  %1773 = vmatpush1.bf16.msra.mxu0 0
  %1774 = vmatprep.subr.bf16.mxu0 0
  %1775 = vmatpush1.bf16.msra.mxu0 0
  %1776 = vmatprep.subr.bf16.mxu0 0
  %1777 = vmatpush1.bf16.msra.mxu0 0
  %1778 = vmatprep.subr.bf16.mxu0 0
  %1779 = vmatpush1.bf16.msra.mxu0 0
  %1780 = vmatprep.subr.bf16.mxu0 0
  %1781 = vmatpush1.bf16.msra.mxu0 0
  %1782 = vmatprep.subr.bf16.mxu0 0
  %1783 = vmatpush1.bf16.msra.mxu0 0
  %1784 = vmatprep.subr.bf16.mxu0 0
  %1785 = vmatpush1.bf16.msra.mxu0 0
  %1786 = vmatprep.mubr.bf16.mxu0 0
  %1787 = vmatmul.mubr.bf16.gmra.mrb[0].mxu0 %v1752
  %v1788 = vpop.f32.mrb[0].mxu0
  %v1789 = vadd.f32 0.0, %v1788
  %v1790 = vpop.f32.mrb[0].mxu0
  %v1791 = vpop.f32.mrb[0].mxu0
  %v1792 = vpop.f32.mrb[0].mxu0
  %1793 = vdwg.mxu0
  %v1794 = vadd.f32 %v1730, %v1789
  %v1795 = vxor.u32 %v1794, 2147483648
  %v1796 = vmul.f32 %v1795, 1.442695
  %v1797 = vpow.pop %v1796
  %v1798 = vadd.f32 %v1797, 1.0
  %v1799 = vrcp.pop %v1798
  %v1800 = vmul.f32 1.0, %v1799
  %v1801 = vtanh.pop %v1794
  %v1802 = vmul.f32 %v1800, %v1716
  %1804 = vrot.lane.b32.xlu0 %v1801, 64
  %v1805 = vpop.permute.xlu0 %1804
  %v1807 = vmul.f32 %v1800, %v1805
  %1809 = vrot.lane.b32.xlu0 %v1807, 32
  %v1810 = vpop.permute.xlu0 %1809
  %v1812 = vadd.f32 %v1802, %v1810
  %v1813 = vtanh.pop %v1812
  %1815 = vrot.lane.b32.xlu0 %v1813, 64
  %v1816 = vpop.permute.xlu0 %1815
  %v1818 = vmul.f32 %v1800, %v1816
  %1820 = vrot.lane.b32.xlu0 %v1818, 32
  %v1821 = vpop.permute.xlu0 %1820
  %s1823 = scalar_lea.vmem %s5, 48
  %1824 = vst.msk [vmem:[%s1823] sm:$0xff] %vm1175, %v1821
  %s1825 = scalar_lea.vmem [#allocation4], 56
  %v1826 = vld [vmem:[%s1825] sm:$0xff]
  %v1827 = vpack.c.bf16 %v1818, %v1818
  %v1828 = vld [vmem:[%s3] sm:$0xf]
  %v1829 = vld [vmem:[%s3 + $0x4] sm:$0xf]
  %v1830 = vld [vmem:[%s3 + $0x8] sm:$0xf]
  %v1831 = vld [vmem:[%s3 + $0xc] sm:$0xf]
  %1833 = vrot.lane.b32.xlu0 %v1827, 32
  %v1834 = vpop.permute.xlu0 %1833
  %v1839 = vunpack.c.l.b16 %v1828
  %v1840 = vunpack.c.l.b16 %v1829
  %v1841 = vunpack.c.l.b16 %v1830
  %v1842 = vunpack.c.l.b16 %v1831
  %v1843 = vpack.c.b16 %v1840, %v1839
  %v1844 = vpack.c.b16 %v1842, %v1841
  %v1848 = vsel %vm1175, %v1834, 0
  %1850 = vmatprep.subr.bf16.mxu0 0
  %1851 = vmatpush1.bf16.msra.mxu0 %v1843
  %1852 = vmatprep.subr.bf16.mxu0 0
  %1853 = vmatpush1.bf16.msra.mxu0 %v1844
  %1854 = vmatprep.subr.bf16.mxu0 0
  %1855 = vmatpush1.bf16.msra.mxu0 0
  %1856 = vmatprep.subr.bf16.mxu0 0
  %1857 = vmatpush1.bf16.msra.mxu0 0
  %1858 = vmatprep.subr.bf16.mxu0 0
  %1859 = vmatpush1.bf16.msra.mxu0 0
  %1860 = vmatprep.subr.bf16.mxu0 0
  %1861 = vmatpush1.bf16.msra.mxu0 0
  %1862 = vmatprep.subr.bf16.mxu0 0
  %1863 = vmatpush1.bf16.msra.mxu0 0
  %1864 = vmatprep.subr.bf16.mxu0 0
  %1865 = vmatpush1.bf16.msra.mxu0 0
  %1866 = vmatprep.subr.bf16.mxu0 0
  %1867 = vmatpush1.bf16.msra.mxu0 0
  %1868 = vmatprep.subr.bf16.mxu0 0
  %1869 = vmatpush1.bf16.msra.mxu0 0
  %1870 = vmatprep.subr.bf16.mxu0 0
  %1871 = vmatpush1.bf16.msra.mxu0 0
  %1872 = vmatprep.subr.bf16.mxu0 0
  %1873 = vmatpush1.bf16.msra.mxu0 0
  %1874 = vmatprep.subr.bf16.mxu0 0
  %1875 = vmatpush1.bf16.msra.mxu0 0
  %1876 = vmatprep.subr.bf16.mxu0 0
  %1877 = vmatpush1.bf16.msra.mxu0 0
  %1878 = vmatprep.subr.bf16.mxu0 0
  %1879 = vmatpush1.bf16.msra.mxu0 0
  %1880 = vmatprep.subr.bf16.mxu0 0
  %1881 = vmatpush1.bf16.msra.mxu0 0
  %1882 = vmatprep.mubr.bf16.mxu0 0
  %1883 = vmatmul.mubr.bf16.gmra.mrb[0].mxu0 %v1848
  %v1884 = vpop.f32.mrb[0].mxu0
  %v1885 = vadd.f32 0.0, %v1884
  %v1886 = vpop.f32.mrb[0].mxu0
  %v1887 = vpop.f32.mrb[0].mxu0
  %v1888 = vpop.f32.mrb[0].mxu0
  %1889 = vdwg.mxu0
  %v1890 = vadd.f32 %v1826, %v1885
  %v1891 = vxor.u32 %v1890, 2147483648
  %v1892 = vmul.f32 %v1891, 1.442695
  %v1893 = vpow.pop %v1892
  %v1894 = vadd.f32 %v1893, 1.0
  %v1895 = vrcp.pop %v1894
  %v1896 = vmul.f32 1.0, %v1895
  %v1897 = vtanh.pop %v1890
  %v1898 = vmul.f32 %v1896, %v1812
  %1900 = vrot.lane.b32.xlu0 %v1897, 64
  %v1901 = vpop.permute.xlu0 %1900
  %v1903 = vmul.f32 %v1896, %v1901
  %1905 = vrot.lane.b32.xlu0 %v1903, 32
  %v1906 = vpop.permute.xlu0 %1905
  %v1908 = vadd.f32 %v1898, %v1906
  %v1909 = vtanh.pop %v1908
  %1911 = vrot.lane.b32.xlu0 %v1909, 64
  %v1912 = vpop.permute.xlu0 %1911
  %v1914 = vmul.f32 %v1896, %v1912
  %1916 = vrot.lane.b32.xlu0 %v1914, 32
  %v1917 = vpop.permute.xlu0 %1916
  %s1919 = scalar_lea.vmem %s5, 56
  %1920 = vst.msk [vmem:[%s1919] sm:$0xff] %vm1175, %v1917
  %s1921 = scalar_lea.vmem [#allocation4], 64
  %v1922 = vld [vmem:[%s1921] sm:$0xff]
  %v1923 = vpack.c.bf16 %v1914, %v1914
  %v1924 = vld [vmem:[%s3] sm:$0xf]
  %v1925 = vld [vmem:[%s3 + $0x4] sm:$0xf]
  %v1926 = vld [vmem:[%s3 + $0x8] sm:$0xf]
  %v1927 = vld [vmem:[%s3 + $0xc] sm:$0xf]
  %1929 = vrot.lane.b32.xlu0 %v1923, 32
  %v1930 = vpop.permute.xlu0 %1929
  %v1935 = vunpack.c.l.b16 %v1924
  %v1936 = vunpack.c.l.b16 %v1925
  %v1937 = vunpack.c.l.b16 %v1926
  %v1938 = vunpack.c.l.b16 %v1927
  %v1939 = vpack.c.b16 %v1936, %v1935
  %v1940 = vpack.c.b16 %v1938, %v1937
  %v1944 = vsel %vm1175, %v1930, 0
  %1946 = vmatprep.subr.bf16.mxu0 0
  %1947 = vmatpush1.bf16.msra.mxu0 %v1939
  %1948 = vmatprep.subr.bf16.mxu0 0
  %1949 = vmatpush1.bf16.msra.mxu0 %v1940
  %1950 = vmatprep.subr.bf16.mxu0 0
  %1951 = vmatpush1.bf16.msra.mxu0 0
  %1952 = vmatprep.subr.bf16.mxu0 0
  %1953 = vmatpush1.bf16.msra.mxu0 0
  %1954 = vmatprep.subr.bf16.mxu0 0
  %1955 = vmatpush1.bf16.msra.mxu0 0
  %1956 = vmatprep.subr.bf16.mxu0 0
  %1957 = vmatpush1.bf16.msra.mxu0 0
  %1958 = vmatprep.subr.bf16.mxu0 0
  %1959 = vmatpush1.bf16.msra.mxu0 0
  %1960 = vmatprep.subr.bf16.mxu0 0
  %1961 = vmatpush1.bf16.msra.mxu0 0
  %1962 = vmatprep.subr.bf16.mxu0 0
  %1963 = vmatpush1.bf16.msra.mxu0 0
  %1964 = vmatprep.subr.bf16.mxu0 0
  %1965 = vmatpush1.bf16.msra.mxu0 0
  %1966 = vmatprep.subr.bf16.mxu0 0
  %1967 = vmatpush1.bf16.msra.mxu0 0
  %1968 = vmatprep.subr.bf16.mxu0 0
  %1969 = vmatpush1.bf16.msra.mxu0 0
  %1970 = vmatprep.subr.bf16.mxu0 0
  %1971 = vmatpush1.bf16.msra.mxu0 0
  %1972 = vmatprep.subr.bf16.mxu0 0
  %1973 = vmatpush1.bf16.msra.mxu0 0
  %1974 = vmatprep.subr.bf16.mxu0 0
  %1975 = vmatpush1.bf16.msra.mxu0 0
  %1976 = vmatprep.subr.bf16.mxu0 0
  %1977 = vmatpush1.bf16.msra.mxu0 0
  %1978 = vmatprep.mubr.bf16.mxu0 0
  %1979 = vmatmul.mubr.bf16.gmra.mrb[0].mxu0 %v1944
  %v1980 = vpop.f32.mrb[0].mxu0
  %v1981 = vadd.f32 0.0, %v1980
  %v1982 = vpop.f32.mrb[0].mxu0
  %v1983 = vpop.f32.mrb[0].mxu0
  %v1984 = vpop.f32.mrb[0].mxu0
  %1985 = vdwg.mxu0
  %v1986 = vadd.f32 %v1922, %v1981
  %v1987 = vxor.u32 %v1986, 2147483648
  %v1988 = vmul.f32 %v1987, 1.442695
  %v1989 = vpow.pop %v1988
  %v1990 = vadd.f32 %v1989, 1.0
  %v1991 = vrcp.pop %v1990
  %v1992 = vmul.f32 1.0, %v1991
  %v1993 = vtanh.pop %v1986
  %v1994 = vmul.f32 %v1992, %v1908
  %1996 = vrot.lane.b32.xlu0 %v1993, 64
  %v1997 = vpop.permute.xlu0 %1996
  %v1999 = vmul.f32 %v1992, %v1997
  %2001 = vrot.lane.b32.xlu0 %v1999, 32
  %v2002 = vpop.permute.xlu0 %2001
  %v2004 = vadd.f32 %v1994, %v2002
  %v2005 = vtanh.pop %v2004
  %2007 = vrot.lane.b32.xlu0 %v2005, 64
  %v2008 = vpop.permute.xlu0 %2007
  %v2010 = vmul.f32 %v1992, %v2008
  %2012 = vrot.lane.b32.xlu0 %v2010, 32
  %v2013 = vpop.permute.xlu0 %2012
  %s2015 = scalar_lea.vmem %s5, 64
  %2016 = vst.msk [vmem:[%s2015] sm:$0xff] %vm1175, %v2013
  %s2017 = scalar_lea.vmem [#allocation4], 72
  %v2018 = vld [vmem:[%s2017] sm:$0xff]
  %v2019 = vpack.c.bf16 %v2010, %v2010
  %v2020 = vld [vmem:[%s3] sm:$0xf]
  %v2021 = vld [vmem:[%s3 + $0x4] sm:$0xf]
  %v2022 = vld [vmem:[%s3 + $0x8] sm:$0xf]
  %v2023 = vld [vmem:[%s3 + $0xc] sm:$0xf]
  %2025 = vrot.lane.b32.xlu0 %v2019, 32
  %v2026 = vpop.permute.xlu0 %2025
  %v2031 = vunpack.c.l.b16 %v2020
  %v2032 = vunpack.c.l.b16 %v2021
  %v2033 = vunpack.c.l.b16 %v2022
  %v2034 = vunpack.c.l.b16 %v2023
  %v2035 = vpack.c.b16 %v2032, %v2031
  %v2036 = vpack.c.b16 %v2034, %v2033
  %v2040 = vsel %vm1175, %v2026, 0
  %2042 = vmatprep.subr.bf16.mxu0 0
  %2043 = vmatpush1.bf16.msra.mxu0 %v2035
  %2044 = vmatprep.subr.bf16.mxu0 0
  %2045 = vmatpush1.bf16.msra.mxu0 %v2036
  %2046 = vmatprep.subr.bf16.mxu0 0
  %2047 = vmatpush1.bf16.msra.mxu0 0
  %2048 = vmatprep.subr.bf16.mxu0 0
  %2049 = vmatpush1.bf16.msra.mxu0 0
  %2050 = vmatprep.subr.bf16.mxu0 0
  %2051 = vmatpush1.bf16.msra.mxu0 0
  %2052 = vmatprep.subr.bf16.mxu0 0
  %2053 = vmatpush1.bf16.msra.mxu0 0
  %2054 = vmatprep.subr.bf16.mxu0 0
  %2055 = vmatpush1.bf16.msra.mxu0 0
  %2056 = vmatprep.subr.bf16.mxu0 0
  %2057 = vmatpush1.bf16.msra.mxu0 0
  %2058 = vmatprep.subr.bf16.mxu0 0
  %2059 = vmatpush1.bf16.msra.mxu0 0
  %2060 = vmatprep.subr.bf16.mxu0 0
  %2061 = vmatpush1.bf16.msra.mxu0 0
  %2062 = vmatprep.subr.bf16.mxu0 0
  %2063 = vmatpush1.bf16.msra.mxu0 0
  %2064 = vmatprep.subr.bf16.mxu0 0
  %2065 = vmatpush1.bf16.msra.mxu0 0
  %2066 = vmatprep.subr.bf16.mxu0 0
  %2067 = vmatpush1.bf16.msra.mxu0 0
  %2068 = vmatprep.subr.bf16.mxu0 0
  %2069 = vmatpush1.bf16.msra.mxu0 0
  %2070 = vmatprep.subr.bf16.mxu0 0
  %2071 = vmatpush1.bf16.msra.mxu0 0
  %2072 = vmatprep.subr.bf16.mxu0 0
  %2073 = vmatpush1.bf16.msra.mxu0 0
  %2074 = vmatprep.mubr.bf16.mxu0 0
  %2075 = vmatmul.mubr.bf16.gmra.mrb[0].mxu0 %v2040
  %v2076 = vpop.f32.mrb[0].mxu0
  %v2077 = vadd.f32 0.0, %v2076
  %v2078 = vpop.f32.mrb[0].mxu0
  %v2079 = vpop.f32.mrb[0].mxu0
  %v2080 = vpop.f32.mrb[0].mxu0
  %2081 = vdwg.mxu0
  %v2082 = vadd.f32 %v2018, %v2077
  %v2083 = vxor.u32 %v2082, 2147483648
  %v2084 = vmul.f32 %v2083, 1.442695
  %v2085 = vpow.pop %v2084
  %v2086 = vadd.f32 %v2085, 1.0
  %v2087 = vrcp.pop %v2086
  %v2088 = vmul.f32 1.0, %v2087
  %v2089 = vtanh.pop %v2082
  %v2090 = vmul.f32 %v2088, %v2004
  %2092 = vrot.lane.b32.xlu0 %v2089, 64
  %v2093 = vpop.permute.xlu0 %2092
  %v2095 = vmul.f32 %v2088, %v2093
  %2097 = vrot.lane.b32.xlu0 %v2095, 32
  %v2098 = vpop.permute.xlu0 %2097
  %v2100 = vadd.f32 %v2090, %v2098
  %v2101 = vtanh.pop %v2100
  %2103 = vrot.lane.b32.xlu0 %v2101, 64
  %v2104 = vpop.permute.xlu0 %2103
  %v2106 = vmul.f32 %v2088, %v2104
  %2108 = vrot.lane.b32.xlu0 %v2106, 32
  %v2109 = vpop.permute.xlu0 %2108
  %s2111 = scalar_lea.vmem %s5, 72
  %2112 = vst.msk [vmem:[%s2111] sm:$0xff] %vm1175, %v2109
  %s2113 = scalar_lea.vmem [#allocation4], 80
  %v2114 = vld [vmem:[%s2113] sm:$0xff]
  %v2115 = vpack.c.bf16 %v2106, %v2106
  %v2116 = vld [vmem:[%s3] sm:$0xf]
  %v2117 = vld [vmem:[%s3 + $0x4] sm:$0xf]
  %v2118 = vld [vmem:[%s3 + $0x8] sm:$0xf]
  %v2119 = vld [vmem:[%s3 + $0xc] sm:$0xf]
  %2121 = vrot.lane.b32.xlu0 %v2115, 32
  %v2122 = vpop.permute.xlu0 %2121
  %v2127 = vunpack.c.l.b16 %v2116
  %v2128 = vunpack.c.l.b16 %v2117
  %v2129 = vunpack.c.l.b16 %v2118
  %v2130 = vunpack.c.l.b16 %v2119
  %v2131 = vpack.c.b16 %v2128, %v2127
  %v2132 = vpack.c.b16 %v2130, %v2129
  %v2136 = vsel %vm1175, %v2122, 0
  %2138 = vmatprep.subr.bf16.mxu0 0
  %2139 = vmatpush1.bf16.msra.mxu0 %v2131
  %2140 = vmatprep.subr.bf16.mxu0 0
  %2141 = vmatpush1.bf16.msra.mxu0 %v2132
  %2142 = vmatprep.subr.bf16.mxu0 0
  %2143 = vmatpush1.bf16.msra.mxu0 0
  %2144 = vmatprep.subr.bf16.mxu0 0
  %2145 = vmatpush1.bf16.msra.mxu0 0
  %2146 = vmatprep.subr.bf16.mxu0 0
  %2147 = vmatpush1.bf16.msra.mxu0 0
  %2148 = vmatprep.subr.bf16.mxu0 0
  %2149 = vmatpush1.bf16.msra.mxu0 0
  %2150 = vmatprep.subr.bf16.mxu0 0
  %2151 = vmatpush1.bf16.msra.mxu0 0
  %2152 = vmatprep.subr.bf16.mxu0 0
  %2153 = vmatpush1.bf16.msra.mxu0 0
  %2154 = vmatprep.subr.bf16.mxu0 0
  %2155 = vmatpush1.bf16.msra.mxu0 0
  %2156 = vmatprep.subr.bf16.mxu0 0
  %2157 = vmatpush1.bf16.msra.mxu0 0
  %2158 = vmatprep.subr.bf16.mxu0 0
  %2159 = vmatpush1.bf16.msra.mxu0 0
  %2160 = vmatprep.subr.bf16.mxu0 0
  %2161 = vmatpush1.bf16.msra.mxu0 0
  %2162 = vmatprep.subr.bf16.mxu0 0
  %2163 = vmatpush1.bf16.msra.mxu0 0
  %2164 = vmatprep.subr.bf16.mxu0 0
  %2165 = vmatpush1.bf16.msra.mxu0 0
  %2166 = vmatprep.subr.bf16.mxu0 0
  %2167 = vmatpush1.bf16.msra.mxu0 0
  %2168 = vmatprep.subr.bf16.mxu0 0
  %2169 = vmatpush1.bf16.msra.mxu0 0
  %2170 = vmatprep.mubr.bf16.mxu0 0
  %2171 = vmatmul.mubr.bf16.gmra.mrb[0].mxu0 %v2136
  %v2172 = vpop.f32.mrb[0].mxu0
  %v2173 = vadd.f32 0.0, %v2172
  %v2174 = vpop.f32.mrb[0].mxu0
  %v2175 = vpop.f32.mrb[0].mxu0
  %v2176 = vpop.f32.mrb[0].mxu0
  %2177 = vdwg.mxu0
  %v2178 = vadd.f32 %v2114, %v2173
  %v2179 = vxor.u32 %v2178, 2147483648
  %v2180 = vmul.f32 %v2179, 1.442695
  %v2181 = vpow.pop %v2180
  %v2182 = vadd.f32 %v2181, 1.0
  %v2183 = vrcp.pop %v2182
  %v2184 = vmul.f32 1.0, %v2183
  %v2185 = vtanh.pop %v2178
  %v2186 = vmul.f32 %v2184, %v2100
  %2188 = vrot.lane.b32.xlu0 %v2185, 64
  %v2189 = vpop.permute.xlu0 %2188
  %v2191 = vmul.f32 %v2184, %v2189
  %2193 = vrot.lane.b32.xlu0 %v2191, 32
  %v2194 = vpop.permute.xlu0 %2193
  %v2196 = vadd.f32 %v2186, %v2194
  %v2197 = vtanh.pop %v2196
  %2199 = vrot.lane.b32.xlu0 %v2197, 64
  %v2200 = vpop.permute.xlu0 %2199
  %v2202 = vmul.f32 %v2184, %v2200
  %2204 = vrot.lane.b32.xlu0 %v2202, 32
  %v2205 = vpop.permute.xlu0 %2204
  %s2207 = scalar_lea.vmem %s5, 80
  %2208 = vst.msk [vmem:[%s2207] sm:$0xff] %vm1175, %v2205
  %s2209 = scalar_lea.vmem [#allocation4], 88
  %v2210 = vld [vmem:[%s2209] sm:$0xff]
  %v2211 = vpack.c.bf16 %v2202, %v2202
  %v2212 = vld [vmem:[%s3] sm:$0xf]
  %v2213 = vld [vmem:[%s3 + $0x4] sm:$0xf]
  %v2214 = vld [vmem:[%s3 + $0x8] sm:$0xf]
  %v2215 = vld [vmem:[%s3 + $0xc] sm:$0xf]
  %2217 = vrot.lane.b32.xlu0 %v2211, 32
  %v2218 = vpop.permute.xlu0 %2217
  %v2223 = vunpack.c.l.b16 %v2212
  %v2224 = vunpack.c.l.b16 %v2213
  %v2225 = vunpack.c.l.b16 %v2214
  %v2226 = vunpack.c.l.b16 %v2215
  %v2227 = vpack.c.b16 %v2224, %v2223
  %v2228 = vpack.c.b16 %v2226, %v2225
  %v2232 = vsel %vm1175, %v2218, 0
  %2234 = vmatprep.subr.bf16.mxu0 0
  %2235 = vmatpush1.bf16.msra.mxu0 %v2227
  %2236 = vmatprep.subr.bf16.mxu0 0
  %2237 = vmatpush1.bf16.msra.mxu0 %v2228
  %2238 = vmatprep.subr.bf16.mxu0 0
  %2239 = vmatpush1.bf16.msra.mxu0 0
  %2240 = vmatprep.subr.bf16.mxu0 0
  %2241 = vmatpush1.bf16.msra.mxu0 0
  %2242 = vmatprep.subr.bf16.mxu0 0
  %2243 = vmatpush1.bf16.msra.mxu0 0
  %2244 = vmatprep.subr.bf16.mxu0 0
  %2245 = vmatpush1.bf16.msra.mxu0 0
  %2246 = vmatprep.subr.bf16.mxu0 0
  %2247 = vmatpush1.bf16.msra.mxu0 0
  %2248 = vmatprep.subr.bf16.mxu0 0
  %2249 = vmatpush1.bf16.msra.mxu0 0
  %2250 = vmatprep.subr.bf16.mxu0 0
  %2251 = vmatpush1.bf16.msra.mxu0 0
  %2252 = vmatprep.subr.bf16.mxu0 0
  %2253 = vmatpush1.bf16.msra.mxu0 0
  %2254 = vmatprep.subr.bf16.mxu0 0
  %2255 = vmatpush1.bf16.msra.mxu0 0
  %2256 = vmatprep.subr.bf16.mxu0 0
  %2257 = vmatpush1.bf16.msra.mxu0 0
  %2258 = vmatprep.subr.bf16.mxu0 0
  %2259 = vmatpush1.bf16.msra.mxu0 0
  %2260 = vmatprep.subr.bf16.mxu0 0
  %2261 = vmatpush1.bf16.msra.mxu0 0
  %2262 = vmatprep.subr.bf16.mxu0 0
  %2263 = vmatpush1.bf16.msra.mxu0 0
  %2264 = vmatprep.subr.bf16.mxu0 0
  %2265 = vmatpush1.bf16.msra.mxu0 0
  %2266 = vmatprep.mubr.bf16.mxu0 0
  %2267 = vmatmul.mubr.bf16.gmra.mrb[0].mxu0 %v2232
  %v2268 = vpop.f32.mrb[0].mxu0
  %v2269 = vadd.f32 0.0, %v2268
  %v2270 = vpop.f32.mrb[0].mxu0
  %v2271 = vpop.f32.mrb[0].mxu0
  %v2272 = vpop.f32.mrb[0].mxu0
  %2273 = vdwg.mxu0
  %v2274 = vadd.f32 %v2210, %v2269
  %v2275 = vxor.u32 %v2274, 2147483648
  %v2276 = vmul.f32 %v2275, 1.442695
  %v2277 = vpow.pop %v2276
  %v2278 = vadd.f32 %v2277, 1.0
  %v2279 = vrcp.pop %v2278
  %v2280 = vmul.f32 1.0, %v2279
  %v2281 = vtanh.pop %v2274
  %v2282 = vmul.f32 %v2280, %v2196
  %2284 = vrot.lane.b32.xlu0 %v2281, 64
  %v2285 = vpop.permute.xlu0 %2284
  %v2287 = vmul.f32 %v2280, %v2285
  %2289 = vrot.lane.b32.xlu0 %v2287, 32
  %v2290 = vpop.permute.xlu0 %2289
  %v2292 = vadd.f32 %v2282, %v2290
  %v2293 = vtanh.pop %v2292
  %2295 = vrot.lane.b32.xlu0 %v2293, 64
  %v2296 = vpop.permute.xlu0 %2295
  %v2298 = vmul.f32 %v2280, %v2296
  %2300 = vrot.lane.b32.xlu0 %v2298, 32
  %v2301 = vpop.permute.xlu0 %2300
  %s2303 = scalar_lea.vmem %s5, 88
  %2304 = vst.msk [vmem:[%s2303] sm:$0xff] %vm1175, %v2301
  %s2305 = scalar_lea.vmem [#allocation4], 96
  %v2306 = vld [vmem:[%s2305] sm:$0xff]
  %v2307 = vpack.c.bf16 %v2298, %v2298
  %v2308 = vld [vmem:[%s3] sm:$0xf]
  %v2309 = vld [vmem:[%s3 + $0x4] sm:$0xf]
  %v2310 = vld [vmem:[%s3 + $0x8] sm:$0xf]
  %v2311 = vld [vmem:[%s3 + $0xc] sm:$0xf]
  %2313 = vrot.lane.b32.xlu0 %v2307, 32
  %v2314 = vpop.permute.xlu0 %2313
  %v2319 = vunpack.c.l.b16 %v2308
  %v2320 = vunpack.c.l.b16 %v2309
  %v2321 = vunpack.c.l.b16 %v2310
  %v2322 = vunpack.c.l.b16 %v2311
  %v2323 = vpack.c.b16 %v2320, %v2319
  %v2324 = vpack.c.b16 %v2322, %v2321
  %v2328 = vsel %vm1175, %v2314, 0
  %2330 = vmatprep.subr.bf16.mxu0 0
  %2331 = vmatpush1.bf16.msra.mxu0 %v2323
  %2332 = vmatprep.subr.bf16.mxu0 0
  %2333 = vmatpush1.bf16.msra.mxu0 %v2324
  %2334 = vmatprep.subr.bf16.mxu0 0
  %2335 = vmatpush1.bf16.msra.mxu0 0
  %2336 = vmatprep.subr.bf16.mxu0 0
  %2337 = vmatpush1.bf16.msra.mxu0 0
  %2338 = vmatprep.subr.bf16.mxu0 0
  %2339 = vmatpush1.bf16.msra.mxu0 0
  %2340 = vmatprep.subr.bf16.mxu0 0
  %2341 = vmatpush1.bf16.msra.mxu0 0
  %2342 = vmatprep.subr.bf16.mxu0 0
  %2343 = vmatpush1.bf16.msra.mxu0 0
  %2344 = vmatprep.subr.bf16.mxu0 0
  %2345 = vmatpush1.bf16.msra.mxu0 0
  %2346 = vmatprep.subr.bf16.mxu0 0
  %2347 = vmatpush1.bf16.msra.mxu0 0
  %2348 = vmatprep.subr.bf16.mxu0 0
  %2349 = vmatpush1.bf16.msra.mxu0 0
  %2350 = vmatprep.subr.bf16.mxu0 0
  %2351 = vmatpush1.bf16.msra.mxu0 0
  %2352 = vmatprep.subr.bf16.mxu0 0
  %2353 = vmatpush1.bf16.msra.mxu0 0
  %2354 = vmatprep.subr.bf16.mxu0 0
  %2355 = vmatpush1.bf16.msra.mxu0 0
  %2356 = vmatprep.subr.bf16.mxu0 0
  %2357 = vmatpush1.bf16.msra.mxu0 0
  %2358 = vmatprep.subr.bf16.mxu0 0
  %2359 = vmatpush1.bf16.msra.mxu0 0
  %2360 = vmatprep.subr.bf16.mxu0 0
  %2361 = vmatpush1.bf16.msra.mxu0 0
  %2362 = vmatprep.mubr.bf16.mxu0 0
  %2363 = vmatmul.mubr.bf16.gmra.mrb[0].mxu0 %v2328
  %v2364 = vpop.f32.mrb[0].mxu0
  %v2365 = vadd.f32 0.0, %v2364
  %v2366 = vpop.f32.mrb[0].mxu0
  %v2367 = vpop.f32.mrb[0].mxu0
  %v2368 = vpop.f32.mrb[0].mxu0
  %2369 = vdwg.mxu0
  %v2370 = vadd.f32 %v2306, %v2365
  %v2371 = vxor.u32 %v2370, 2147483648
  %v2372 = vmul.f32 %v2371, 1.442695
  %v2373 = vpow.pop %v2372
  %v2374 = vadd.f32 %v2373, 1.0
  %v2375 = vrcp.pop %v2374
  %v2376 = vmul.f32 1.0, %v2375
  %v2377 = vtanh.pop %v2370
  %v2378 = vmul.f32 %v2376, %v2292
  %2380 = vrot.lane.b32.xlu0 %v2377, 64
  %v2381 = vpop.permute.xlu0 %2380
  %v2383 = vmul.f32 %v2376, %v2381
  %2385 = vrot.lane.b32.xlu0 %v2383, 32
  %v2386 = vpop.permute.xlu0 %2385
  %v2388 = vadd.f32 %v2378, %v2386
  %v2389 = vtanh.pop %v2388
  %2391 = vrot.lane.b32.xlu0 %v2389, 64
  %v2392 = vpop.permute.xlu0 %2391
  %v2394 = vmul.f32 %v2376, %v2392
  %2396 = vrot.lane.b32.xlu0 %v2394, 32
  %v2397 = vpop.permute.xlu0 %2396
  %s2399 = scalar_lea.vmem %s5, 96
  %2400 = vst.msk [vmem:[%s2399] sm:$0xff] %vm1175, %v2397
  %s2401 = scalar_lea.vmem [#allocation4], 104
  %v2402 = vld [vmem:[%s2401] sm:$0xff]
  %v2403 = vpack.c.bf16 %v2394, %v2394
  %v2404 = vld [vmem:[%s3] sm:$0xf]
  %v2405 = vld [vmem:[%s3 + $0x4] sm:$0xf]
  %v2406 = vld [vmem:[%s3 + $0x8] sm:$0xf]
  %v2407 = vld [vmem:[%s3 + $0xc] sm:$0xf]
  %2409 = vrot.lane.b32.xlu0 %v2403, 32
  %v2410 = vpop.permute.xlu0 %2409
  %v2415 = vunpack.c.l.b16 %v2404
  %v2416 = vunpack.c.l.b16 %v2405
  %v2417 = vunpack.c.l.b16 %v2406
  %v2418 = vunpack.c.l.b16 %v2407
  %v2419 = vpack.c.b16 %v2416, %v2415
  %v2420 = vpack.c.b16 %v2418, %v2417
  %v2424 = vsel %vm1175, %v2410, 0
  %2426 = vmatprep.subr.bf16.mxu0 0
  %2427 = vmatpush1.bf16.msra.mxu0 %v2419
  %2428 = vmatprep.subr.bf16.mxu0 0
  %2429 = vmatpush1.bf16.msra.mxu0 %v2420
  %2430 = vmatprep.subr.bf16.mxu0 0
  %2431 = vmatpush1.bf16.msra.mxu0 0
  %2432 = vmatprep.subr.bf16.mxu0 0
  %2433 = vmatpush1.bf16.msra.mxu0 0
  %2434 = vmatprep.subr.bf16.mxu0 0
  %2435 = vmatpush1.bf16.msra.mxu0 0
  %2436 = vmatprep.subr.bf16.mxu0 0
  %2437 = vmatpush1.bf16.msra.mxu0 0
  %2438 = vmatprep.subr.bf16.mxu0 0
  %2439 = vmatpush1.bf16.msra.mxu0 0
  %2440 = vmatprep.subr.bf16.mxu0 0
  %2441 = vmatpush1.bf16.msra.mxu0 0
  %2442 = vmatprep.subr.bf16.mxu0 0
  %2443 = vmatpush1.bf16.msra.mxu0 0
  %2444 = vmatprep.subr.bf16.mxu0 0
  %2445 = vmatpush1.bf16.msra.mxu0 0
  %2446 = vmatprep.subr.bf16.mxu0 0
  %2447 = vmatpush1.bf16.msra.mxu0 0
  %2448 = vmatprep.subr.bf16.mxu0 0
  %2449 = vmatpush1.bf16.msra.mxu0 0
  %2450 = vmatprep.subr.bf16.mxu0 0
  %2451 = vmatpush1.bf16.msra.mxu0 0
  %2452 = vmatprep.subr.bf16.mxu0 0
  %2453 = vmatpush1.bf16.msra.mxu0 0
  %2454 = vmatprep.subr.bf16.mxu0 0
  %2455 = vmatpush1.bf16.msra.mxu0 0
  %2456 = vmatprep.subr.bf16.mxu0 0
  %2457 = vmatpush1.bf16.msra.mxu0 0
  %2458 = vmatprep.mubr.bf16.mxu0 0
  %2459 = vmatmul.mubr.bf16.gmra.mrb[0].mxu0 %v2424
  %v2460 = vpop.f32.mrb[0].mxu0
  %v2461 = vadd.f32 0.0, %v2460
  %v2462 = vpop.f32.mrb[0].mxu0
  %v2463 = vpop.f32.mrb[0].mxu0
  %v2464 = vpop.f32.mrb[0].mxu0
  %2465 = vdwg.mxu0
  %v2466 = vadd.f32 %v2402, %v2461
  %v2467 = vxor.u32 %v2466, 2147483648
  %v2468 = vmul.f32 %v2467, 1.442695
  %v2469 = vpow.pop %v2468
  %v2470 = vadd.f32 %v2469, 1.0
  %v2471 = vrcp.pop %v2470
  %v2472 = vmul.f32 1.0, %v2471
  %v2473 = vtanh.pop %v2466
  %v2474 = vmul.f32 %v2472, %v2388
  %2476 = vrot.lane.b32.xlu0 %v2473, 64
  %v2477 = vpop.permute.xlu0 %2476
  %v2479 = vmul.f32 %v2472, %v2477
  %2481 = vrot.lane.b32.xlu0 %v2479, 32
  %v2482 = vpop.permute.xlu0 %2481
  %v2484 = vadd.f32 %v2474, %v2482
  %v2485 = vtanh.pop %v2484
  %2487 = vrot.lane.b32.xlu0 %v2485, 64
  %v2488 = vpop.permute.xlu0 %2487
  %v2490 = vmul.f32 %v2472, %v2488
  %2492 = vrot.lane.b32.xlu0 %v2490, 32
  %v2493 = vpop.permute.xlu0 %2492
  %s2495 = scalar_lea.vmem %s5, 104
  %2496 = vst.msk [vmem:[%s2495] sm:$0xff] %vm1175, %v2493
  %s2497 = scalar_lea.vmem [#allocation4], 112
  %v2498 = vld [vmem:[%s2497] sm:$0xff]
  %v2499 = vpack.c.bf16 %v2490, %v2490
  %v2500 = vld [vmem:[%s3] sm:$0xf]
  %v2501 = vld [vmem:[%s3 + $0x4] sm:$0xf]
  %v2502 = vld [vmem:[%s3 + $0x8] sm:$0xf]
  %v2503 = vld [vmem:[%s3 + $0xc] sm:$0xf]
  %2505 = vrot.lane.b32.xlu0 %v2499, 32
  %v2506 = vpop.permute.xlu0 %2505
  %v2511 = vunpack.c.l.b16 %v2500
  %v2512 = vunpack.c.l.b16 %v2501
  %v2513 = vunpack.c.l.b16 %v2502
  %v2514 = vunpack.c.l.b16 %v2503
  %v2515 = vpack.c.b16 %v2512, %v2511
  %v2516 = vpack.c.b16 %v2514, %v2513
  %v2520 = vsel %vm1175, %v2506, 0
  %2522 = vmatprep.subr.bf16.mxu0 0
  %2523 = vmatpush1.bf16.msra.mxu0 %v2515
  %2524 = vmatprep.subr.bf16.mxu0 0
  %2525 = vmatpush1.bf16.msra.mxu0 %v2516
  %2526 = vmatprep.subr.bf16.mxu0 0
  %2527 = vmatpush1.bf16.msra.mxu0 0
  %2528 = vmatprep.subr.bf16.mxu0 0
  %2529 = vmatpush1.bf16.msra.mxu0 0
  %2530 = vmatprep.subr.bf16.mxu0 0
  %2531 = vmatpush1.bf16.msra.mxu0 0
  %2532 = vmatprep.subr.bf16.mxu0 0
  %2533 = vmatpush1.bf16.msra.mxu0 0
  %2534 = vmatprep.subr.bf16.mxu0 0
  %2535 = vmatpush1.bf16.msra.mxu0 0
  %2536 = vmatprep.subr.bf16.mxu0 0
  %2537 = vmatpush1.bf16.msra.mxu0 0
  %2538 = vmatprep.subr.bf16.mxu0 0
  %2539 = vmatpush1.bf16.msra.mxu0 0
  %2540 = vmatprep.subr.bf16.mxu0 0
  %2541 = vmatpush1.bf16.msra.mxu0 0
  %2542 = vmatprep.subr.bf16.mxu0 0
  %2543 = vmatpush1.bf16.msra.mxu0 0
  %2544 = vmatprep.subr.bf16.mxu0 0
  %2545 = vmatpush1.bf16.msra.mxu0 0
  %2546 = vmatprep.subr.bf16.mxu0 0
  %2547 = vmatpush1.bf16.msra.mxu0 0
  %2548 = vmatprep.subr.bf16.mxu0 0
  %2549 = vmatpush1.bf16.msra.mxu0 0
  %2550 = vmatprep.subr.bf16.mxu0 0
  %2551 = vmatpush1.bf16.msra.mxu0 0
  %2552 = vmatprep.subr.bf16.mxu0 0
  %2553 = vmatpush1.bf16.msra.mxu0 0
  %2554 = vmatprep.mubr.bf16.mxu0 0
  %2555 = vmatmul.mubr.bf16.gmra.mrb[0].mxu0 %v2520
  %v2556 = vpop.f32.mrb[0].mxu0
  %v2557 = vadd.f32 0.0, %v2556
  %v2558 = vpop.f32.mrb[0].mxu0
  %v2559 = vpop.f32.mrb[0].mxu0
  %v2560 = vpop.f32.mrb[0].mxu0
  %2561 = vdwg.mxu0
  %v2562 = vadd.f32 %v2498, %v2557
  %v2563 = vxor.u32 %v2562, 2147483648
  %v2564 = vmul.f32 %v2563, 1.442695
  %v2565 = vpow.pop %v2564
  %v2566 = vadd.f32 %v2565, 1.0
  %v2567 = vrcp.pop %v2566
  %v2568 = vmul.f32 1.0, %v2567
  %v2569 = vtanh.pop %v2562
  %v2570 = vmul.f32 %v2568, %v2484
  %2572 = vrot.lane.b32.xlu0 %v2569, 64
  %v2573 = vpop.permute.xlu0 %2572
  %v2575 = vmul.f32 %v2568, %v2573
  %2577 = vrot.lane.b32.xlu0 %v2575, 32
  %v2578 = vpop.permute.xlu0 %2577
  %v2580 = vadd.f32 %v2570, %v2578
  %v2581 = vtanh.pop %v2580
  %2583 = vrot.lane.b32.xlu0 %v2581, 64
  %v2584 = vpop.permute.xlu0 %2583
  %v2586 = vmul.f32 %v2568, %v2584
  %2588 = vrot.lane.b32.xlu0 %v2586, 32
  %v2589 = vpop.permute.xlu0 %2588
  %s2591 = scalar_lea.vmem %s5, 112
  %2592 = vst.msk [vmem:[%s2591] sm:$0xff] %vm1175, %v2589
  %s2593 = scalar_lea.vmem [#allocation4], 120
  %v2594 = vld [vmem:[%s2593] sm:$0xff]
  %v2595 = vpack.c.bf16 %v2586, %v2586
  %v2596 = vld [vmem:[%s3] sm:$0xf]
  %v2597 = vld [vmem:[%s3 + $0x4] sm:$0xf]
  %v2598 = vld [vmem:[%s3 + $0x8] sm:$0xf]
  %v2599 = vld [vmem:[%s3 + $0xc] sm:$0xf]
  %2601 = vrot.lane.b32.xlu0 %v2595, 32
  %v2602 = vpop.permute.xlu0 %2601
  %v2607 = vunpack.c.l.b16 %v2596
  %v2608 = vunpack.c.l.b16 %v2597
  %v2609 = vunpack.c.l.b16 %v2598
  %v2610 = vunpack.c.l.b16 %v2599
  %v2611 = vpack.c.b16 %v2608, %v2607
  %v2612 = vpack.c.b16 %v2610, %v2609
  %v2616 = vsel %vm1175, %v2602, 0
  %2618 = vmatprep.subr.bf16.mxu0 0
  %2619 = vmatpush1.bf16.msra.mxu0 %v2611
  %2620 = vmatprep.subr.bf16.mxu0 0
  %2621 = vmatpush1.bf16.msra.mxu0 %v2612
  %2622 = vmatprep.subr.bf16.mxu0 0
  %2623 = vmatpush1.bf16.msra.mxu0 0
  %2624 = vmatprep.subr.bf16.mxu0 0
  %2625 = vmatpush1.bf16.msra.mxu0 0
  %2626 = vmatprep.subr.bf16.mxu0 0
  %2627 = vmatpush1.bf16.msra.mxu0 0
  %2628 = vmatprep.subr.bf16.mxu0 0
  %2629 = vmatpush1.bf16.msra.mxu0 0
  %2630 = vmatprep.subr.bf16.mxu0 0
  %2631 = vmatpush1.bf16.msra.mxu0 0
  %2632 = vmatprep.subr.bf16.mxu0 0
  %2633 = vmatpush1.bf16.msra.mxu0 0
  %2634 = vmatprep.subr.bf16.mxu0 0
  %2635 = vmatpush1.bf16.msra.mxu0 0
  %2636 = vmatprep.subr.bf16.mxu0 0
  %2637 = vmatpush1.bf16.msra.mxu0 0
  %2638 = vmatprep.subr.bf16.mxu0 0
  %2639 = vmatpush1.bf16.msra.mxu0 0
  %2640 = vmatprep.subr.bf16.mxu0 0
  %2641 = vmatpush1.bf16.msra.mxu0 0
  %2642 = vmatprep.subr.bf16.mxu0 0
  %2643 = vmatpush1.bf16.msra.mxu0 0
  %2644 = vmatprep.subr.bf16.mxu0 0
  %2645 = vmatpush1.bf16.msra.mxu0 0
  %2646 = vmatprep.subr.bf16.mxu0 0
  %2647 = vmatpush1.bf16.msra.mxu0 0
  %2648 = vmatprep.subr.bf16.mxu0 0
  %2649 = vmatpush1.bf16.msra.mxu0 0
  %2650 = vmatprep.mubr.bf16.mxu0 0
  %2651 = vmatmul.mubr.bf16.gmra.mrb[0].mxu0 %v2616
  %v2652 = vpop.f32.mrb[0].mxu0
  %v2653 = vadd.f32 0.0, %v2652
  %v2654 = vpop.f32.mrb[0].mxu0
  %v2655 = vpop.f32.mrb[0].mxu0
  %v2656 = vpop.f32.mrb[0].mxu0
  %2657 = vdwg.mxu0
  %v2658 = vadd.f32 %v2594, %v2653
  %v2659 = vxor.u32 %v2658, 2147483648
  %v2660 = vmul.f32 %v2659, 1.442695
  %v2661 = vpow.pop %v2660
  %v2662 = vadd.f32 %v2661, 1.0
  %v2663 = vrcp.pop %v2662
  %v2664 = vmul.f32 1.0, %v2663
  %v2665 = vtanh.pop %v2658
  %v2666 = vmul.f32 %v2664, %v2580
  %2668 = vrot.lane.b32.xlu0 %v2665, 64
  %v2669 = vpop.permute.xlu0 %2668
  %v2671 = vmul.f32 %v2664, %v2669
  %2673 = vrot.lane.b32.xlu0 %v2671, 32
  %v2674 = vpop.permute.xlu0 %2673
  %v2676 = vadd.f32 %v2666, %v2674
  %v2677 = vtanh.pop %v2676
  %2679 = vrot.lane.b32.xlu0 %v2677, 64
  %v2680 = vpop.permute.xlu0 %2679
  %v2682 = vmul.f32 %v2664, %v2680
  %2684 = vrot.lane.b32.xlu0 %v2682, 32
  %v2685 = vpop.permute.xlu0 %2684
  %s2687 = scalar_lea.vmem %s5, 120
  %2688 = vst.msk [vmem:[%s2687] sm:$0xff] %vm1175, %v2685
  // Predicated region
  $region29: #{custom_rnn_forward.1} parent=0 // pred_check
    _
  $region30: #{custom_rnn_forward.1} parent=0 // pred_check_branch
    %2690 = sbr.rel (0) target = $region32
  $region31: #{custom_rnn_forward.1} parent=0 // pred_region
    _
  $region32: #{custom_rnn_forward.1} parent=0 // pred_fallthru
    _
  // Predicated region
  $region33: #{custom_rnn_forward.1} parent=0 // pred_check
    _
  $region34: #{custom_rnn_forward.1} parent=0 // pred_check_branch
    %2692 = sbr.rel (0) target = $region36
  $region35: #{custom_rnn_forward.1} parent=0 // pred_region
    _
  $region36: #{custom_rnn_forward.1} parent=0 // pred_fallthru
    _

</llo_original>
